<compile_context>
chip_gen: v7x
topology: tpu7x:2x2x1
jax: 0.10.0
libtpu: 0.0.40
codegen_flags: <defaults>
</compile_context>

<pallas_src>
import functools

import jax
import jax.numpy as jnp
from jax import lax
from jax.experimental import pallas as pl
from jax.experimental.pallas import tpu as pltpu

_VMEM_LIMIT_BYTES = 32 * 1024 * 1024  # explicit scoped-VMEM budget (all gens)


def _sigmoid(x):
    # One EUP transcendental instead of exp + divide.
    return 0.5 * jnp.tanh(0.5 * x) + 0.5


def _round_up(x, m):
    return ((x + m - 1) // m) * m


def _pick_t_blk(seq_len, cap=32):
    """Largest divisor of seq_len not exceeding cap: bounds the unroll and the
    per-block VMEM footprint; the time grid axis covers the rest."""
    for t in range(min(seq_len, cap), 0, -1):
        if seq_len % t == 0:
            return t
    return 1


# ----------------------------------------------------------------------------
# Shared recurrence body: fused input projection + t_blk LSTM steps.
# ----------------------------------------------------------------------------
def _lstm_block_body(x_ref, wih_ref, whh_ref, b_ref, gx_scr, h_scr, c_scr, *,
                     hidden, t_blk, b_blk, store_fn=None):
    H = hidden
    in_dim = x_ref.shape[-1]

    # Fused input projection for the whole time block: one big MXU matmul
    # (M = t_blk * b_blk rows), bias folded in, staged in VMEM scratch.
    # Reshape only merges leading dims (b_blk is a multiple of the sublane
    # tile) so it is layout-free.
    x2 = x_ref[...].reshape(t_blk * b_blk, in_dim).astype(jnp.bfloat16)
    gx_scr[...] = (
        jnp.dot(x2, wih_ref[...], preferred_element_type=jnp.float32)
        + b_ref[...]
    )

    whh = whh_ref[...]  # (H, 4H) bf16, resident in vregs/VMEM

    def step(t, carry):
        h, c = carry  # (b_blk, H) f32
        row = pl.multiple_of(t * b_blk, b_blk)
        # One dense (b_blk, 4H) slab per step -> flat vreg pressure.
        gates = gx_scr[pl.ds(row, b_blk), :] + jnp.dot(
            h.astype(jnp.bfloat16), whh, preferred_element_type=jnp.float32)
        # Full-width transcendentals (2 EUP passes over 4H lanes), then slice.
        sig = _sigmoid(gates)
        tnh = jnp.tanh(gates)
        i_g = sig[:, 0 * H:1 * H]
        f_g = sig[:, 1 * H:2 * H]
        g_g = tnh[:, 2 * H:3 * H]
        o_g = sig[:, 3 * H:4 * H]
        c = f_g * c + i_g * g_g
        h = o_g * jnp.tanh(c)
        if store_fn is not None:
            store_fn(t, h)
        return h, c

    h, c = lax.fori_loop(0, t_blk, step, (h_scr[...], c_scr[...]), unroll=True)
    h_scr[...] = h
    c_scr[...] = c
    return h


# ----------------------------------------------------------------------------
# Kernel A: intermediate layer -> time-major hidden sequence (bf16).
# ----------------------------------------------------------------------------
def _lstm_layer_kernel(x_ref, wih_ref, whh_ref, b_ref, hseq_ref,
                       gx_scr, h_scr, c_scr, *, hidden, t_blk, b_blk):
    @pl.when(pl.program_id(1) == 0)
    def _():
        h_scr[...] = jnp.zeros_like(h_scr)
        c_scr[...] = jnp.zeros_like(c_scr)

    def store(t, h):
        # Time-major output: one dense (b_blk, H) slab per step.
        hseq_ref[t] = h.astype(hseq_ref.dtype)

    _lstm_block_body(x_ref, wih_ref, whh_ref, b_ref, gx_scr, h_scr, c_scr,
                     hidden=hidden, t_blk=t_blk, b_blk=b_blk, store_fn=store)


def lstm_layer(x_tm, w_ih_t, w_hh_t, bias, hidden, t_blk, b_blk):
    """x_tm: (S, Bp, in_dim) time-major -> (S, Bp, H) bf16 hidden sequence."""
    S, Bp, in_dim = x_tm.shape
    G = 4 * hidden
    nb, nt = Bp // b_blk, S // t_blk
    kernel = functools.partial(_lstm_layer_kernel, hidden=hidden,
                               t_blk=t_blk, b_blk=b_blk)
    return pl.pallas_call(
        kernel,
        out_shape=jax.ShapeDtypeStruct((S, Bp, hidden), jnp.bfloat16),
        grid_spec=pltpu.PrefetchScalarGridSpec(
            num_scalar_prefetch=0,
            grid=(nb, nt),
            in_specs=[
                pl.BlockSpec((t_blk, b_blk, in_dim), lambda b, t: (t, b, 0)),
                pl.BlockSpec((in_dim, G), lambda b, t: (0, 0)),
                pl.BlockSpec((hidden, G), lambda b, t: (0, 0)),
                pl.BlockSpec((1, G), lambda b, t: (0, 0)),
            ],
            out_specs=pl.BlockSpec((t_blk, b_blk, hidden),
                                   lambda b, t: (t, b, 0)),
            scratch_shapes=[
                pltpu.VMEM((t_blk * b_blk, G), jnp.float32),  # staged gates_x
                pltpu.VMEM((b_blk, hidden), jnp.float32),     # h state
                pltpu.VMEM((b_blk, hidden), jnp.float32),     # c state
            ],
        ),
        compiler_params=pltpu.CompilerParams(
            dimension_semantics=("parallel", "arbitrary"),
            vmem_limit_bytes=_VMEM_LIMIT_BYTES),
    )(x_tm, w_ih_t, w_hh_t, bias)


# ----------------------------------------------------------------------------
# Kernel B: LAST layer with the Linear head fused in.  Only the (Bp, O) logits
# are written (no hidden-sequence writeback at all).
# ----------------------------------------------------------------------------
def _lstm_layer_fc_kernel(x_ref, wih_ref, whh_ref, b_ref, fcw_ref, fcb_ref,
                          out_ref, gx_scr, h_scr, c_scr, *,
                          hidden, t_blk, b_blk):
    @pl.when(pl.program_id(1) == 0)
    def _():
        h_scr[...] = jnp.zeros_like(h_scr)
        c_scr[...] = jnp.zeros_like(c_scr)

    h_last = _lstm_block_body(x_ref, wih_ref, whh_ref, b_ref,
                              gx_scr, h_scr, c_scr,
                              hidden=hidden, t_blk=t_blk, b_blk=b_blk)

    @pl.when(pl.program_id(1) == pl.num_programs(1) - 1)
    def _():
        out_ref[...] = (
            jnp.dot(h_last.astype(jnp.bfloat16), fcw_ref[...],
                    preferred_element_type=jnp.float32)
            + fcb_ref[...]
        ).astype(out_ref.dtype)


def lstm_layer_fc(x_tm, w_ih_t, w_hh_t, bias, fc_w_t, fc_b,
                  hidden, t_blk, b_blk):
    S, Bp, in_dim = x_tm.shape
    G = 4 * hidden
    O = fc_w_t.shape[1]
    nb, nt = Bp // b_blk, S // t_blk
    kernel = functools.partial(_lstm_layer_fc_kernel, hidden=hidden,
                               t_blk=t_blk, b_blk=b_blk)
    return pl.pallas_call(
        kernel,
        out_shape=jax.ShapeDtypeStruct((Bp, O), jnp.float32),
        grid_spec=pltpu.PrefetchScalarGridSpec(
            num_scalar_prefetch=0,
            grid=(nb, nt),
            in_specs=[
                pl.BlockSpec((t_blk, b_blk, in_dim), lambda b, t: (t, b, 0)),
                pl.BlockSpec((in_dim, G), lambda b, t: (0, 0)),
                pl.BlockSpec((hidden, G), lambda b, t: (0, 0)),
                pl.BlockSpec((1, G), lambda b, t: (0, 0)),
                pl.BlockSpec((hidden, O), lambda b, t: (0, 0)),
                pl.BlockSpec((1, O), lambda b, t: (0, 0)),
            ],
            out_specs=pl.BlockSpec((b_blk, O), lambda b, t: (b, 0)),
            scratch_shapes=[
                pltpu.VMEM((t_blk * b_blk, G), jnp.float32),  # staged gates_x
                pltpu.VMEM((b_blk, hidden), jnp.float32),     # h state
                pltpu.VMEM((b_blk, hidden), jnp.float32),     # c state
            ],
        ),
        compiler_params=pltpu.CompilerParams(
            dimension_semantics=("parallel", "arbitrary"),
            vmem_limit_bytes=_VMEM_LIMIT_BYTES),
    )(x_tm, w_ih_t, w_hh_t, bias, fc_w_t, fc_b)


# ----------------------------------------------------------------------------
# Full module forward: multi-layer LSTM (zero init state) + fc(out[:, -1, :]).
# ----------------------------------------------------------------------------
def lstm_module_forward(x_bsi, params, hidden_dim, *, t_blk=None, b_blk=None):
    """x_bsi: (B, S, input_dim), batch_first.  Returns (B, output_dim) f32."""
    B, S, _ = x_bsi.shape
    H = hidden_dim
    if t_blk is None:
        t_blk = _pick_t_blk(S, cap=32)
    assert S % t_blk == 0

    # Batch blocking: multiple of 16 (bf16 sublane packing, better MXU fill),
    # and >= 2 batch blocks once the batch is big enough (v7x megacore).
    if b_blk is None:
        Bp = _round_up(B, 16)
        if Bp >= 32:
            b_blk = min(128, _round_up(Bp // 2, 16))
        else:
            b_blk = Bp
    Bp = _round_up(max(B, b_blk), b_blk)

    # (B, S, I) -> time-major (S, Bp, I): per-step gate reads and hidden
    # writebacks inside the kernels become dense sublane-contiguous slabs.
    x = jnp.pad(x_bsi, ((0, Bp - B), (0, 0), (0, 0)))
    x = jnp.transpose(x, (1, 0, 2))                       # (S, Bp, In) f32

    layers = params["layers"]
    n_layers = len(layers)
    out = None
    for li, lyr in enumerate(layers):
        w_ih_t, w_hh_t, bias = lyr["w_ih_t"], lyr["w_hh_t"], lyr["bias"]
        if li < n_layers - 1:
            # hidden sequence stored bf16 -> halves inter-layer HBM traffic
            x = lstm_layer(x, w_ih_t, w_hh_t, bias, H, t_blk, b_blk)
        else:
            out = lstm_layer_fc(x, w_ih_t, w_hh_t, bias,
                                params["fc_w_t"], params["fc_b"],
                                H, t_blk, b_blk)
    return out[:B]


# ----------------------------------------------------------------------------
# Parameter init (PyTorch-equivalent shapes / init) + one-time bf16 pre-cast.
# ----------------------------------------------------------------------------
def init_params(key, input_dim, hidden_dim, layer_dim, output_dim):
    """f32 master params, uniform(-1/sqrt(H), 1/sqrt(H)) like nn.LSTM/Linear."""
    bound = hidden_dim ** -0.5
    layers = []
    for layer in range(layer_dim):
        in_dim = input_dim if layer == 0 else hidden_dim
        key, k1, k2, k3, k4 = jax.random.split(key, 5)
        w_ih = jax.random.uniform(k1, (4 * hidden_dim, in_dim),
                                  jnp.float32, -bound, bound)
        w_hh = jax.random.uniform(k2, (4 * hidden_dim, hidden_dim),
                                  jnp.float32, -bound, bound)
        b_ih = jax.random.uniform(k3, (4 * hidden_dim,), jnp.float32,
                                  -bound, bound)
        b_hh = jax.random.uniform(k4, (4 * hidden_dim,), jnp.float32,
                                  -bound, bound)
        layers.append({"w_ih_t": w_ih.T, "w_hh_t": w_hh.T,
                       "bias": (b_ih + b_hh).reshape(1, 4 * hidden_dim)})
    key, k5, k6 = jax.random.split(key, 3)
    fc_w = jax.random.uniform(k5, (output_dim, hidden_dim),
                              jnp.float32, -bound, bound)
    fc_b = jax.random.uniform(k6, (output_dim,), jnp.float32, -bound, bound)
    return {"layers": layers, "fc_w_t": fc_w.T,
            "fc_b": fc_b.reshape(1, output_dim)}


def prepare_params(params):
    """Pre-cast all MXU operands to bf16 ONCE, outside the jitted forward."""
    layers = [{"w_ih_t": l["w_ih_t"].astype(jnp.bfloat16),
               "w_hh_t": l["w_hh_t"].astype(jnp.bfloat16),
               "bias": l["bias"]} for l in params["layers"]]
    return {"layers": layers,
            "fc_w_t": params["fc_w_t"].astype(jnp.bfloat16),
            "fc_b": params["fc_b"]}


# ----------------------------------------------------------------------------
# Pure-JAX f32 reference (correctness check only).
# ----------------------------------------------------------------------------
def reference_forward(x_bsi, params, hidden_dim):
    B = x_bsi.shape[0]
    x = jnp.transpose(x_bsi, (1, 0, 2))     # (S, B, In)
    H = hidden_dim
    for lyr in params["layers"]:
        w_ih_t, w_hh_t, b = lyr["w_ih_t"], lyr["w_hh_t"], lyr["bias"]
        h = jnp.zeros((B, H), jnp.float32)
        c = jnp.zeros((B, H), jnp.float32)
        outs = []
        for t in range(x.shape[0]):
            gates = x[t] @ w_ih_t + h @ w_hh_t + b
            i = jax.nn.sigmoid(gates[:, 0 * H:1 * H])
            f = jax.nn.sigmoid(gates[:, 1 * H:2 * H])
            g = jnp.tanh(gates[:, 2 * H:3 * H])
            o = jax.nn.sigmoid(gates[:, 3 * H:4 * H])
            c = f * c + i * g
            h = o * jnp.tanh(c)
            outs.append(h)
        x = jnp.stack(outs, axis=0)
    return x[-1] @ params["fc_w_t"] + params["fc_b"]


if __name__ == "__main__":
    # Small shapes consistent with the module's forward (batch_first LSTM).
    batch, seq = 2, 8
    input_dim, hidden_dim, layer_dim, output_dim = 16, 32, 2, 4

    key = jax.random.PRNGKey(0)
    key, kx = jax.random.split(key)
    x = jax.random.normal(kx, (batch, seq, input_dim), jnp.float32)

    params = init_params(key, input_dim, hidden_dim, layer_dim, output_dim)
    kparams = prepare_params(params)     # bf16 pre-cast once, outside jit

    fwd = jax.jit(functools.partial(lstm_module_forward, hidden_dim=hidden_dim))
    out = jax.block_until_ready(fwd(x, kparams))

    ref = reference_forward(x, params, hidden_dim)
    assert out.shape == (batch, output_dim)
    # Tolerance loosened vs pure-f32: MXU operands / inter-layer hidden are
    # bf16 (f32 accumulation); structure and semantics are identical.
    assert jnp.allclose(out, ref, atol=5e-2, rtol=5e-2), "mismatch vs reference"

    print("KERNEL_OK")
</pallas_src>

<mosaic_0001>
module attributes {stable_mosaic.version = 11 : i64} {
  func.func @_lstm_layer_kernel(%arg0: i32, %arg1: i32, %arg2: memref<8x16x16xf32, #tpu.memory_space<vmem>>, %arg3: memref<16x128xbf16, #tpu.memory_space<vmem>>, %arg4: memref<32x128xbf16, #tpu.memory_space<vmem>>, %arg5: memref<1x128xf32, #tpu.memory_space<vmem>>, %arg6: memref<8x16x32xbf16, #tpu.memory_space<vmem>>, %arg7: memref<128x128xf32, #tpu.memory_space<vmem>>, %arg8: memref<16x32xf32, #tpu.memory_space<vmem>>, %arg9: memref<16x32xf32, #tpu.memory_space<vmem>>) attributes {dimension_semantics = [#tpu.dimension_semantics<parallel>, #tpu.dimension_semantics<arbitrary>], iteration_bounds = array<i64: 1, 1>, scalar_prefetch = 0 : i64, scratch_operands = 3 : i64, tpu.core_type = #tpu.core_type<tc>, window_params = [{transform_indices = @transform_0, window_bounds = array<i64: 8, 16, 16>}, {pipeline_mode = #tpu.pipeline_mode<synchronous>, transform_indices = @transform_1, window_bounds = array<i64: 16, 128>}, {pipeline_mode = #tpu.pipeline_mode<synchronous>, transform_indices = @transform_2, window_bounds = array<i64: 32, 128>}, {pipeline_mode = #tpu.pipeline_mode<synchronous>, transform_indices = @transform_3, window_bounds = array<i64: 1, 128>}, {transform_indices = @transform_4, window_bounds = array<i64: 8, 16, 32>}]} {
    %c0_i32 = arith.constant 0 : i32
    %0 = arith.cmpi eq, %arg1, %c0_i32 : i32
    %1 = arith.extui %0 : i1 to i32
    %c0_i32_0 = arith.constant 0 : i32
    %2 = arith.cmpi ne, %1, %c0_i32_0 : i32
    scf.if %2 {
      %cst_83 = arith.constant 0.000000e+00 : f32
      %249 = vector.broadcast %cst_83 : f32 to vector<16x32xf32>
      %c0_84 = arith.constant 0 : index
      %c0_85 = arith.constant 0 : index
      %250 = vector.load %arg8[%c0_84, %c0_85] : memref<16x32xf32, #tpu.memory_space<vmem>>, vector<16x32xf32>
      tpu.vector_store %arg8[%c0_84, %c0_85], %249 {strides = array<i32>} : memref<16x32xf32, #tpu.memory_space<vmem>>, vector<16x32xf32>,
      %cst_86 = arith.constant 0.000000e+00 : f32
      %251 = vector.broadcast %cst_86 : f32 to vector<16x32xf32>
      %c0_87 = arith.constant 0 : index
      %c0_88 = arith.constant 0 : index
      %252 = vector.load %arg9[%c0_87, %c0_88] : memref<16x32xf32, #tpu.memory_space<vmem>>, vector<16x32xf32>
      tpu.vector_store %arg9[%c0_87, %c0_88], %251 {strides = array<i32>} : memref<16x32xf32, #tpu.memory_space<vmem>>, vector<16x32xf32>,
    } else {
    }
    %c0 = arith.constant 0 : index
    %c0_1 = arith.constant 0 : index
    %c0_2 = arith.constant 0 : index
    %3 = vector.load %arg2[%c0, %c0_1, %c0_2] : memref<8x16x16xf32, #tpu.memory_space<vmem>>, vector<8x16x16xf32>
    %4 = vector.shape_cast %3 : vector<8x16x16xf32> to vector<128x16xf32>
    %5 = arith.truncf %4 : vector<128x16xf32> to vector<128x16xbf16>
    %c0_3 = arith.constant 0 : index
    %c0_4 = arith.constant 0 : index
    %6 = vector.load %arg3[%c0_3, %c0_4] : memref<16x128xbf16, #tpu.memory_space<vmem>>, vector<16x128xbf16>
    %cst = arith.constant dense<0.000000e+00> : vector<128x128xf32>
    %7 = tpu.matmul %5, %6, %cst {dimension_numbers = #tpu.dot_dimension_numbers<[1], [0], [0], [1], [0, 0, 1, 1], [], []>} : vector<128x16xbf16>, vector<16x128xbf16>, vector<128x128xf32> -> vector<128x128xf32>
    %c0_5 = arith.constant 0 : index
    %c0_6 = arith.constant 0 : index
    %8 = vector.load %arg5[%c0_5, %c0_6] : memref<1x128xf32, #tpu.memory_space<vmem>>, vector<1x128xf32>
    %9 = vector.broadcast %8 : vector<1x128xf32> to vector<128x128xf32>
    %10 = arith.addf %7, %9 : vector<128x128xf32>
    %c0_7 = arith.constant 0 : index
    %c0_8 = arith.constant 0 : index
    %11 = vector.load %arg7[%c0_7, %c0_8] : memref<128x128xf32, #tpu.memory_space<vmem>>, vector<128x128xf32>
    tpu.vector_store %arg7[%c0_7, %c0_8], %10 {strides = array<i32>} : memref<128x128xf32, #tpu.memory_space<vmem>>, vector<128x128xf32>,
    %c0_9 = arith.constant 0 : index
    %c0_10 = arith.constant 0 : index
    %12 = vector.load %arg4[%c0_9, %c0_10] : memref<32x128xbf16, #tpu.memory_space<vmem>>, vector<32x128xbf16>
    %c0_11 = arith.constant 0 : index
    %c0_12 = arith.constant 0 : index
    %13 = vector.load %arg8[%c0_11, %c0_12] : memref<16x32xf32, #tpu.memory_space<vmem>>, vector<16x32xf32>
    %c0_13 = arith.constant 0 : index
    %c0_14 = arith.constant 0 : index
    %14 = vector.load %arg9[%c0_13, %c0_14] : memref<16x32xf32, #tpu.memory_space<vmem>>, vector<16x32xf32>
    %c0_i32_15 = arith.constant 0 : i32
    %c16_i32 = arith.constant 16 : i32
    %15 = arith.muli %c0_i32_15, %c16_i32 : i32
    %16 = tpu.assume_multiple %15, 16 : i32
    %17 = arith.index_cast %16 : i32 to index
    %c0_16 = arith.constant 0 : index
    %18 = vector.load %arg7[%17, %c0_16] : memref<128x128xf32, #tpu.memory_space<vmem>>, vector<16x128xf32>
    %19 = arith.truncf %13 : vector<16x32xf32> to vector<16x32xbf16>
    %cst_17 = arith.constant dense<0.000000e+00> : vector<16x128xf32>
    %20 = tpu.matmul %19, %12, %cst_17 {dimension_numbers = #tpu.dot_dimension_numbers<[1], [0], [0], [1], [0, 0, 1, 1], [], []>} : vector<16x32xbf16>, vector<32x128xbf16>, vector<16x128xf32> -> vector<16x128xf32>
    %21 = arith.addf %18, %20 : vector<16x128xf32>
    %cst_18 = arith.constant 5.000000e-01 : f32
    %22 = vector.broadcast %cst_18 : f32 to vector<16x128xf32>
    %23 = arith.mulf %22, %21 : vector<16x128xf32>
    %24 = math.tanh %23 : vector<16x128xf32>
    %cst_19 = arith.constant 5.000000e-01 : f32
    %25 = vector.broadcast %cst_19 : f32 to vector<16x128xf32>
    %26 = arith.mulf %25, %24 : vector<16x128xf32>
    %cst_20 = arith.constant 5.000000e-01 : f32
    %27 = vector.broadcast %cst_20 : f32 to vector<16x128xf32>
    %28 = arith.addf %26, %27 : vector<16x128xf32>
    %29 = math.tanh %21 : vector<16x128xf32>
    %30 = vector.extract_strided_slice %28 {offsets = [0, 0], sizes = [16, 32], strides = [1, 1]} : vector<16x128xf32> to vector<16x32xf32>
    %31 = vector.extract_strided_slice %28 {offsets = [0, 32], sizes = [16, 32], strides = [1, 1]} : vector<16x128xf32> to vector<16x32xf32>
    %32 = vector.extract_strided_slice %29 {offsets = [0, 64], sizes = [16, 32], strides = [1, 1]} : vector<16x128xf32> to vector<16x32xf32>
    %33 = vector.extract_strided_slice %28 {offsets = [0, 96], sizes = [16, 32], strides = [1, 1]} : vector<16x128xf32> to vector<16x32xf32>
    %34 = arith.mulf %31, %14 : vector<16x32xf32>
    %35 = arith.mulf %30, %32 : vector<16x32xf32>
    %36 = arith.addf %34, %35 : vector<16x32xf32>
    %37 = math.tanh %36 : vector<16x32xf32>
    %38 = arith.mulf %33, %37 : vector<16x32xf32>
    %39 = arith.truncf %38 : vector<16x32xf32> to vector<16x32xbf16>
    %40 = arith.index_cast %c0_i32_15 : i32 to index
    %c0_21 = arith.constant 0 : index
    %c0_22 = arith.constant 0 : index
    %41 = vector.load %arg6[%40, %c0_21, %c0_22] : memref<8x16x32xbf16, #tpu.memory_space<vmem>>, vector<1x16x32xbf16>
    %42 = vector.shape_cast %41 : vector<1x16x32xbf16> to vector<16x32xbf16>
    %43 = vector.shape_cast %39 : vector<16x32xbf16> to vector<1x16x32xbf16>
    tpu.vector_store %arg6[%40, %c0_21, %c0_22], %43 {strides = array<i32>} : memref<8x16x32xbf16, #tpu.memory_space<vmem>>, vector<1x16x32xbf16>,
    %c1_i32 = arith.constant 1 : i32
    %c16_i32_23 = arith.constant 16 : i32
    %44 = arith.muli %c1_i32, %c16_i32_23 : i32
    %45 = tpu.assume_multiple %44, 16 : i32
    %46 = arith.index_cast %45 : i32 to index
    %c0_24 = arith.constant 0 : index
    %47 = vector.load %arg7[%46, %c0_24] : memref<128x128xf32, #tpu.memory_space<vmem>>, vector<16x128xf32>
    %48 = arith.truncf %38 : vector<16x32xf32> to vector<16x32xbf16>
    %cst_25 = arith.constant dense<0.000000e+00> : vector<16x128xf32>
    %49 = tpu.matmul %48, %12, %cst_25 {dimension_numbers = #tpu.dot_dimension_numbers<[1], [0], [0], [1], [0, 0, 1, 1], [], []>} : vector<16x32xbf16>, vector<32x128xbf16>, vector<16x128xf32> -> vector<16x128xf32>
    %50 = arith.addf %47, %49 : vector<16x128xf32>
    %cst_26 = arith.constant 5.000000e-01 : f32
    %51 = vector.broadcast %cst_26 : f32 to vector<16x128xf32>
    %52 = arith.mulf %51, %50 : vector<16x128xf32>
    %53 = math.tanh %52 : vector<16x128xf32>
    %cst_27 = arith.constant 5.000000e-01 : f32
    %54 = vector.broadcast %cst_27 : f32 to vector<16x128xf32>
    %55 = arith.mulf %54, %53 : vector<16x128xf32>
    %cst_28 = arith.constant 5.000000e-01 : f32
    %56 = vector.broadcast %cst_28 : f32 to vector<16x128xf32>
    %57 = arith.addf %55, %56 : vector<16x128xf32>
    %58 = math.tanh %50 : vector<16x128xf32>
    %59 = vector.extract_strided_slice %57 {offsets = [0, 0], sizes = [16, 32], strides = [1, 1]} : vector<16x128xf32> to vector<16x32xf32>
    %60 = vector.extract_strided_slice %57 {offsets = [0, 32], sizes = [16, 32], strides = [1, 1]} : vector<16x128xf32> to vector<16x32xf32>
    %61 = vector.extract_strided_slice %58 {offsets = [0, 64], sizes = [16, 32], strides = [1, 1]} : vector<16x128xf32> to vector<16x32xf32>
    %62 = vector.extract_strided_slice %57 {offsets = [0, 96], sizes = [16, 32], strides = [1, 1]} : vector<16x128xf32> to vector<16x32xf32>
    %63 = arith.mulf %60, %36 : vector<16x32xf32>
    %64 = arith.mulf %59, %61 : vector<16x32xf32>
    %65 = arith.addf %63, %64 : vector<16x32xf32>
    %66 = math.tanh %65 : vector<16x32xf32>
    %67 = arith.mulf %62, %66 : vector<16x32xf32>
    %68 = arith.truncf %67 : vector<16x32xf32> to vector<16x32xbf16>
    %69 = arith.index_cast %c1_i32 : i32 to index
    %c0_29 = arith.constant 0 : index
    %c0_30 = arith.constant 0 : index
    %70 = vector.load %arg6[%69, %c0_29, %c0_30] : memref<8x16x32xbf16, #tpu.memory_space<vmem>>, vector<1x16x32xbf16>
    %71 = vector.shape_cast %70 : vector<1x16x32xbf16> to vector<16x32xbf16>
    %72 = vector.shape_cast %68 : vector<16x32xbf16> to vector<1x16x32xbf16>
    tpu.vector_store %arg6[%69, %c0_29, %c0_30], %72 {strides = array<i32>} : memref<8x16x32xbf16, #tpu.memory_space<vmem>>, vector<1x16x32xbf16>,
    %c2_i32 = arith.constant 2 : i32
    %c16_i32_31 = arith.constant 16 : i32
    %73 = arith.muli %c2_i32, %c16_i32_31 : i32
    %74 = tpu.assume_multiple %73, 16 : i32
    %75 = arith.index_cast %74 : i32 to index
    %c0_32 = arith.constant 0 : index
    %76 = vector.load %arg7[%75, %c0_32] : memref<128x128xf32, #tpu.memory_space<vmem>>, vector<16x128xf32>
    %77 = arith.truncf %67 : vector<16x32xf32> to vector<16x32xbf16>
    %cst_33 = arith.constant dense<0.000000e+00> : vector<16x128xf32>
    %78 = tpu.matmul %77, %12, %cst_33 {dimension_numbers = #tpu.dot_dimension_numbers<[1], [0], [0], [1], [0, 0, 1, 1], [], []>} : vector<16x32xbf16>, vector<32x128xbf16>, vector<16x128xf32> -> vector<16x128xf32>
    %79 = arith.addf %76, %78 : vector<16x128xf32>
    %cst_34 = arith.constant 5.000000e-01 : f32
    %80 = vector.broadcast %cst_34 : f32 to vector<16x128xf32>
    %81 = arith.mulf %80, %79 : vector<16x128xf32>
    %82 = math.tanh %81 : vector<16x128xf32>
    %cst_35 = arith.constant 5.000000e-01 : f32
    %83 = vector.broadcast %cst_35 : f32 to vector<16x128xf32>
    %84 = arith.mulf %83, %82 : vector<16x128xf32>
    %cst_36 = arith.constant 5.000000e-01 : f32
    %85 = vector.broadcast %cst_36 : f32 to vector<16x128xf32>
    %86 = arith.addf %84, %85 : vector<16x128xf32>
    %87 = math.tanh %79 : vector<16x128xf32>
    %88 = vector.extract_strided_slice %86 {offsets = [0, 0], sizes = [16, 32], strides = [1, 1]} : vector<16x128xf32> to vector<16x32xf32>
    %89 = vector.extract_strided_slice %86 {offsets = [0, 32], sizes = [16, 32], strides = [1, 1]} : vector<16x128xf32> to vector<16x32xf32>
    %90 = vector.extract_strided_slice %87 {offsets = [0, 64], sizes = [16, 32], strides = [1, 1]} : vector<16x128xf32> to vector<16x32xf32>
    %91 = vector.extract_strided_slice %86 {offsets = [0, 96], sizes = [16, 32], strides = [1, 1]} : vector<16x128xf32> to vector<16x32xf32>
    %92 = arith.mulf %89, %65 : vector<16x32xf32>
    %93 = arith.mulf %88, %90 : vector<16x32xf32>
    %94 = arith.addf %92, %93 : vector<16x32xf32>
    %95 = math.tanh %94 : vector<16x32xf32>
    %96 = arith.mulf %91, %95 : vector<16x32xf32>
    %97 = arith.truncf %96 : vector<16x32xf32> to vector<16x32xbf16>
    %98 = arith.index_cast %c2_i32 : i32 to index
    %c0_37 = arith.constant 0 : index
    %c0_38 = arith.constant 0 : index
    %99 = vector.load %arg6[%98, %c0_37, %c0_38] : memref<8x16x32xbf16, #tpu.memory_space<vmem>>, vector<1x16x32xbf16>
    %100 = vector.shape_cast %99 : vector<1x16x32xbf16> to vector<16x32xbf16>
    %101 = vector.shape_cast %97 : vector<16x32xbf16> to vector<1x16x32xbf16>
    tpu.vector_store %arg6[%98, %c0_37, %c0_38], %101 {strides = array<i32>} : memref<8x16x32xbf16, #tpu.memory_space<vmem>>, vector<1x16x32xbf16>,
    %c3_i32 = arith.constant 3 : i32
    %c16_i32_39 = arith.constant 16 : i32
    %102 = arith.muli %c3_i32, %c16_i32_39 : i32
    %103 = tpu.assume_multiple %102, 16 : i32
    %104 = arith.index_cast %103 : i32 to index
    %c0_40 = arith.constant 0 : index
    %105 = vector.load %arg7[%104, %c0_40] : memref<128x128xf32, #tpu.memory_space<vmem>>, vector<16x128xf32>
    %106 = arith.truncf %96 : vector<16x32xf32> to vector<16x32xbf16>
    %cst_41 = arith.constant dense<0.000000e+00> : vector<16x128xf32>
    %107 = tpu.matmul %106, %12, %cst_41 {dimension_numbers = #tpu.dot_dimension_numbers<[1], [0], [0], [1], [0, 0, 1, 1], [], []>} : vector<16x32xbf16>, vector<32x128xbf16>, vector<16x128xf32> -> vector<16x128xf32>
    %108 = arith.addf %105, %107 : vector<16x128xf32>
    %cst_42 = arith.constant 5.000000e-01 : f32
    %109 = vector.broadcast %cst_42 : f32 to vector<16x128xf32>
    %110 = arith.mulf %109, %108 : vector<16x128xf32>
    %111 = math.tanh %110 : vector<16x128xf32>
    %cst_43 = arith.constant 5.000000e-01 : f32
    %112 = vector.broadcast %cst_43 : f32 to vector<16x128xf32>
    %113 = arith.mulf %112, %111 : vector<16x128xf32>
    %cst_44 = arith.constant 5.000000e-01 : f32
    %114 = vector.broadcast %cst_44 : f32 to vector<16x128xf32>
    %115 = arith.addf %113, %114 : vector<16x128xf32>
    %116 = math.tanh %108 : vector<16x128xf32>
    %117 = vector.extract_strided_slice %115 {offsets = [0, 0], sizes = [16, 32], strides = [1, 1]} : vector<16x128xf32> to vector<16x32xf32>
    %118 = vector.extract_strided_slice %115 {offsets = [0, 32], sizes = [16, 32], strides = [1, 1]} : vector<16x128xf32> to vector<16x32xf32>
    %119 = vector.extract_strided_slice %116 {offsets = [0, 64], sizes = [16, 32], strides = [1, 1]} : vector<16x128xf32> to vector<16x32xf32>
    %120 = vector.extract_strided_slice %115 {offsets = [0, 96], sizes = [16, 32], strides = [1, 1]} : vector<16x128xf32> to vector<16x32xf32>
    %121 = arith.mulf %118, %94 : vector<16x32xf32>
    %122 = arith.mulf %117, %119 : vector<16x32xf32>
    %123 = arith.addf %121, %122 : vector<16x32xf32>
    %124 = math.tanh %123 : vector<16x32xf32>
    %125 = arith.mulf %120, %124 : vector<16x32xf32>
    %126 = arith.truncf %125 : vector<16x32xf32> to vector<16x32xbf16>
    %127 = arith.index_cast %c3_i32 : i32 to index
    %c0_45 = arith.constant 0 : index
    %c0_46 = arith.constant 0 : index
    %128 = vector.load %arg6[%127, %c0_45, %c0_46] : memref<8x16x32xbf16, #tpu.memory_space<vmem>>, vector<1x16x32xbf16>
    %129 = vector.shape_cast %128 : vector<1x16x32xbf16> to vector<16x32xbf16>
    %130 = vector.shape_cast %126 : vector<16x32xbf16> to vector<1x16x32xbf16>
    tpu.vector_store %arg6[%127, %c0_45, %c0_46], %130 {strides = array<i32>} : memref<8x16x32xbf16, #tpu.memory_space<vmem>>, vector<1x16x32xbf16>,
    %c4_i32 = arith.constant 4 : i32
    %c16_i32_47 = arith.constant 16 : i32
    %131 = arith.muli %c4_i32, %c16_i32_47 : i32
    %132 = tpu.assume_multiple %131, 16 : i32
    %133 = arith.index_cast %132 : i32 to index
    %c0_48 = arith.constant 0 : index
    %134 = vector.load %arg7[%133, %c0_48] : memref<128x128xf32, #tpu.memory_space<vmem>>, vector<16x128xf32>
    %135 = arith.truncf %125 : vector<16x32xf32> to vector<16x32xbf16>
    %cst_49 = arith.constant dense<0.000000e+00> : vector<16x128xf32>
    %136 = tpu.matmul %135, %12, %cst_49 {dimension_numbers = #tpu.dot_dimension_numbers<[1], [0], [0], [1], [0, 0, 1, 1], [], []>} : vector<16x32xbf16>, vector<32x128xbf16>, vector<16x128xf32> -> vector<16x128xf32>
    %137 = arith.addf %134, %136 : vector<16x128xf32>
    %cst_50 = arith.constant 5.000000e-01 : f32
    %138 = vector.broadcast %cst_50 : f32 to vector<16x128xf32>
    %139 = arith.mulf %138, %137 : vector<16x128xf32>
    %140 = math.tanh %139 : vector<16x128xf32>
    %cst_51 = arith.constant 5.000000e-01 : f32
    %141 = vector.broadcast %cst_51 : f32 to vector<16x128xf32>
    %142 = arith.mulf %141, %140 : vector<16x128xf32>
    %cst_52 = arith.constant 5.000000e-01 : f32
    %143 = vector.broadcast %cst_52 : f32 to vector<16x128xf32>
    %144 = arith.addf %142, %143 : vector<16x128xf32>
    %145 = math.tanh %137 : vector<16x128xf32>
    %146 = vector.extract_strided_slice %144 {offsets = [0, 0], sizes = [16, 32], strides = [1, 1]} : vector<16x128xf32> to vector<16x32xf32>
    %147 = vector.extract_strided_slice %144 {offsets = [0, 32], sizes = [16, 32], strides = [1, 1]} : vector<16x128xf32> to vector<16x32xf32>
    %148 = vector.extract_strided_slice %145 {offsets = [0, 64], sizes = [16, 32], strides = [1, 1]} : vector<16x128xf32> to vector<16x32xf32>
    %149 = vector.extract_strided_slice %144 {offsets = [0, 96], sizes = [16, 32], strides = [1, 1]} : vector<16x128xf32> to vector<16x32xf32>
    %150 = arith.mulf %147, %123 : vector<16x32xf32>
    %151 = arith.mulf %146, %148 : vector<16x32xf32>
    %152 = arith.addf %150, %151 : vector<16x32xf32>
    %153 = math.tanh %152 : vector<16x32xf32>
    %154 = arith.mulf %149, %153 : vector<16x32xf32>
    %155 = arith.truncf %154 : vector<16x32xf32> to vector<16x32xbf16>
    %156 = arith.index_cast %c4_i32 : i32 to index
    %c0_53 = arith.constant 0 : index
    %c0_54 = arith.constant 0 : index
    %157 = vector.load %arg6[%156, %c0_53, %c0_54] : memref<8x16x32xbf16, #tpu.memory_space<vmem>>, vector<1x16x32xbf16>
    %158 = vector.shape_cast %157 : vector<1x16x32xbf16> to vector<16x32xbf16>
    %159 = vector.shape_cast %155 : vector<16x32xbf16> to vector<1x16x32xbf16>
    tpu.vector_store %arg6[%156, %c0_53, %c0_54], %159 {strides = array<i32>} : memref<8x16x32xbf16, #tpu.memory_space<vmem>>, vector<1x16x32xbf16>,
    %c5_i32 = arith.constant 5 : i32
    %c16_i32_55 = arith.constant 16 : i32
    %160 = arith.muli %c5_i32, %c16_i32_55 : i32
    %161 = tpu.assume_multiple %160, 16 : i32
    %162 = arith.index_cast %161 : i32 to index
    %c0_56 = arith.constant 0 : index
    %163 = vector.load %arg7[%162, %c0_56] : memref<128x128xf32, #tpu.memory_space<vmem>>, vector<16x128xf32>
    %164 = arith.truncf %154 : vector<16x32xf32> to vector<16x32xbf16>
    %cst_57 = arith.constant dense<0.000000e+00> : vector<16x128xf32>
    %165 = tpu.matmul %164, %12, %cst_57 {dimension_numbers = #tpu.dot_dimension_numbers<[1], [0], [0], [1], [0, 0, 1, 1], [], []>} : vector<16x32xbf16>, vector<32x128xbf16>, vector<16x128xf32> -> vector<16x128xf32>
    %166 = arith.addf %163, %165 : vector<16x128xf32>
    %cst_58 = arith.constant 5.000000e-01 : f32
    %167 = vector.broadcast %cst_58 : f32 to vector<16x128xf32>
    %168 = arith.mulf %167, %166 : vector<16x128xf32>
    %169 = math.tanh %168 : vector<16x128xf32>
    %cst_59 = arith.constant 5.000000e-01 : f32
    %170 = vector.broadcast %cst_59 : f32 to vector<16x128xf32>
    %171 = arith.mulf %170, %169 : vector<16x128xf32>
    %cst_60 = arith.constant 5.000000e-01 : f32
    %172 = vector.broadcast %cst_60 : f32 to vector<16x128xf32>
    %173 = arith.addf %171, %172 : vector<16x128xf32>
    %174 = math.tanh %166 : vector<16x128xf32>
    %175 = vector.extract_strided_slice %173 {offsets = [0, 0], sizes = [16, 32], strides = [1, 1]} : vector<16x128xf32> to vector<16x32xf32>
    %176 = vector.extract_strided_slice %173 {offsets = [0, 32], sizes = [16, 32], strides = [1, 1]} : vector<16x128xf32> to vector<16x32xf32>
    %177 = vector.extract_strided_slice %174 {offsets = [0, 64], sizes = [16, 32], strides = [1, 1]} : vector<16x128xf32> to vector<16x32xf32>
    %178 = vector.extract_strided_slice %173 {offsets = [0, 96], sizes = [16, 32], strides = [1, 1]} : vector<16x128xf32> to vector<16x32xf32>
    %179 = arith.mulf %176, %152 : vector<16x32xf32>
    %180 = arith.mulf %175, %177 : vector<16x32xf32>
    %181 = arith.addf %179, %180 : vector<16x32xf32>
    %182 = math.tanh %181 : vector<16x32xf32>
    %183 = arith.mulf %178, %182 : vector<16x32xf32>
    %184 = arith.truncf %183 : vector<16x32xf32> to vector<16x32xbf16>
    %185 = arith.index_cast %c5_i32 : i32 to index
    %c0_61 = arith.constant 0 : index
    %c0_62 = arith.constant 0 : index
    %186 = vector.load %arg6[%185, %c0_61, %c0_62] : memref<8x16x32xbf16, #tpu.memory_space<vmem>>, vector<1x16x32xbf16>
    %187 = vector.shape_cast %186 : vector<1x16x32xbf16> to vector<16x32xbf16>
    %188 = vector.shape_cast %184 : vector<16x32xbf16> to vector<1x16x32xbf16>
    tpu.vector_store %arg6[%185, %c0_61, %c0_62], %188 {strides = array<i32>} : memref<8x16x32xbf16, #tpu.memory_space<vmem>>, vector<1x16x32xbf16>,
    %c6_i32 = arith.constant 6 : i32
    %c16_i32_63 = arith.constant 16 : i32
    %189 = arith.muli %c6_i32, %c16_i32_63 : i32
    %190 = tpu.assume_multiple %189, 16 : i32
    %191 = arith.index_cast %190 : i32 to index
    %c0_64 = arith.constant 0 : index
    %192 = vector.load %arg7[%191, %c0_64] : memref<128x128xf32, #tpu.memory_space<vmem>>, vector<16x128xf32>
    %193 = arith.truncf %183 : vector<16x32xf32> to vector<16x32xbf16>
    %cst_65 = arith.constant dense<0.000000e+00> : vector<16x128xf32>
    %194 = tpu.matmul %193, %12, %cst_65 {dimension_numbers = #tpu.dot_dimension_numbers<[1], [0], [0], [1], [0, 0, 1, 1], [], []>} : vector<16x32xbf16>, vector<32x128xbf16>, vector<16x128xf32> -> vector<16x128xf32>
    %195 = arith.addf %192, %194 : vector<16x128xf32>
    %cst_66 = arith.constant 5.000000e-01 : f32
    %196 = vector.broadcast %cst_66 : f32 to vector<16x128xf32>
    %197 = arith.mulf %196, %195 : vector<16x128xf32>
    %198 = math.tanh %197 : vector<16x128xf32>
    %cst_67 = arith.constant 5.000000e-01 : f32
    %199 = vector.broadcast %cst_67 : f32 to vector<16x128xf32>
    %200 = arith.mulf %199, %198 : vector<16x128xf32>
    %cst_68 = arith.constant 5.000000e-01 : f32
    %201 = vector.broadcast %cst_68 : f32 to vector<16x128xf32>
    %202 = arith.addf %200, %201 : vector<16x128xf32>
    %203 = math.tanh %195 : vector<16x128xf32>
    %204 = vector.extract_strided_slice %202 {offsets = [0, 0], sizes = [16, 32], strides = [1, 1]} : vector<16x128xf32> to vector<16x32xf32>
    %205 = vector.extract_strided_slice %202 {offsets = [0, 32], sizes = [16, 32], strides = [1, 1]} : vector<16x128xf32> to vector<16x32xf32>
    %206 = vector.extract_strided_slice %203 {offsets = [0, 64], sizes = [16, 32], strides = [1, 1]} : vector<16x128xf32> to vector<16x32xf32>
    %207 = vector.extract_strided_slice %202 {offsets = [0, 96], sizes = [16, 32], strides = [1, 1]} : vector<16x128xf32> to vector<16x32xf32>
    %208 = arith.mulf %205, %181 : vector<16x32xf32>
    %209 = arith.mulf %204, %206 : vector<16x32xf32>
    %210 = arith.addf %208, %209 : vector<16x32xf32>
    %211 = math.tanh %210 : vector<16x32xf32>
    %212 = arith.mulf %207, %211 : vector<16x32xf32>
    %213 = arith.truncf %212 : vector<16x32xf32> to vector<16x32xbf16>
    %214 = arith.index_cast %c6_i32 : i32 to index
    %c0_69 = arith.constant 0 : index
    %c0_70 = arith.constant 0 : index
    %215 = vector.load %arg6[%214, %c0_69, %c0_70] : memref<8x16x32xbf16, #tpu.memory_space<vmem>>, vector<1x16x32xbf16>
    %216 = vector.shape_cast %215 : vector<1x16x32xbf16> to vector<16x32xbf16>
    %217 = vector.shape_cast %213 : vector<16x32xbf16> to vector<1x16x32xbf16>
    tpu.vector_store %arg6[%214, %c0_69, %c0_70], %217 {strides = array<i32>} : memref<8x16x32xbf16, #tpu.memory_space<vmem>>, vector<1x16x32xbf16>,
    %c7_i32 = arith.constant 7 : i32
    %c16_i32_71 = arith.constant 16 : i32
    %218 = arith.muli %c7_i32, %c16_i32_71 : i32
    %219 = tpu.assume_multiple %218, 16 : i32
    %220 = arith.index_cast %219 : i32 to index
    %c0_72 = arith.constant 0 : index
    %221 = vector.load %arg7[%220, %c0_72] : memref<128x128xf32, #tpu.memory_space<vmem>>, vector<16x128xf32>
    %222 = arith.truncf %212 : vector<16x32xf32> to vector<16x32xbf16>
    %cst_73 = arith.constant dense<0.000000e+00> : vector<16x128xf32>
    %223 = tpu.matmul %222, %12, %cst_73 {dimension_numbers = #tpu.dot_dimension_numbers<[1], [0], [0], [1], [0, 0, 1, 1], [], []>} : vector<16x32xbf16>, vector<32x128xbf16>, vector<16x128xf32> -> vector<16x128xf32>
    %224 = arith.addf %221, %223 : vector<16x128xf32>
    %cst_74 = arith.constant 5.000000e-01 : f32
    %225 = vector.broadcast %cst_74 : f32 to vector<16x128xf32>
    %226 = arith.mulf %225, %224 : vector<16x128xf32>
    %227 = math.tanh %226 : vector<16x128xf32>
    %cst_75 = arith.constant 5.000000e-01 : f32
    %228 = vector.broadcast %cst_75 : f32 to vector<16x128xf32>
    %229 = arith.mulf %228, %227 : vector<16x128xf32>
    %cst_76 = arith.constant 5.000000e-01 : f32
    %230 = vector.broadcast %cst_76 : f32 to vector<16x128xf32>
    %231 = arith.addf %229, %230 : vector<16x128xf32>
    %232 = math.tanh %224 : vector<16x128xf32>
    %233 = vector.extract_strided_slice %231 {offsets = [0, 0], sizes = [16, 32], strides = [1, 1]} : vector<16x128xf32> to vector<16x32xf32>
    %234 = vector.extract_strided_slice %231 {offsets = [0, 32], sizes = [16, 32], strides = [1, 1]} : vector<16x128xf32> to vector<16x32xf32>
    %235 = vector.extract_strided_slice %232 {offsets = [0, 64], sizes = [16, 32], strides = [1, 1]} : vector<16x128xf32> to vector<16x32xf32>
    %236 = vector.extract_strided_slice %231 {offsets = [0, 96], sizes = [16, 32], strides = [1, 1]} : vector<16x128xf32> to vector<16x32xf32>
    %237 = arith.mulf %234, %210 : vector<16x32xf32>
    %238 = arith.mulf %233, %235 : vector<16x32xf32>
    %239 = arith.addf %237, %238 : vector<16x32xf32>
    %240 = math.tanh %239 : vector<16x32xf32>
    %241 = arith.mulf %236, %240 : vector<16x32xf32>
    %242 = arith.truncf %241 : vector<16x32xf32> to vector<16x32xbf16>
    %243 = arith.index_cast %c7_i32 : i32 to index
    %c0_77 = arith.constant 0 : index
    %c0_78 = arith.constant 0 : index
    %244 = vector.load %arg6[%243, %c0_77, %c0_78] : memref<8x16x32xbf16, #tpu.memory_space<vmem>>, vector<1x16x32xbf16>
    %245 = vector.shape_cast %244 : vector<1x16x32xbf16> to vector<16x32xbf16>
    %246 = vector.shape_cast %242 : vector<16x32xbf16> to vector<1x16x32xbf16>
    tpu.vector_store %arg6[%243, %c0_77, %c0_78], %246 {strides = array<i32>} : memref<8x16x32xbf16, #tpu.memory_space<vmem>>, vector<1x16x32xbf16>,
    %c8_i32 = arith.constant 8 : i32
    %c0_79 = arith.constant 0 : index
    %c0_80 = arith.constant 0 : index
    %247 = vector.load %arg8[%c0_79, %c0_80] : memref<16x32xf32, #tpu.memory_space<vmem>>, vector<16x32xf32>
    tpu.vector_store %arg8[%c0_79, %c0_80], %241 {strides = array<i32>} : memref<16x32xf32, #tpu.memory_space<vmem>>, vector<16x32xf32>,
    %c0_81 = arith.constant 0 : index
    %c0_82 = arith.constant 0 : index
    %248 = vector.load %arg9[%c0_81, %c0_82] : memref<16x32xf32, #tpu.memory_space<vmem>>, vector<16x32xf32>
    tpu.vector_store %arg9[%c0_81, %c0_82], %239 {strides = array<i32>} : memref<16x32xf32, #tpu.memory_space<vmem>>, vector<16x32xf32>,
    return
  }
  func.func @transform_0(%arg0: i32, %arg1: i32) -> (i32, i32, i32) {
    %c0_i32 = arith.constant 0 : i32
    %c0_i32_0 = arith.constant 0 : i32
    return %arg1, %arg0, %c0_i32 : i32, i32, i32
  }
  func.func @transform_1(%arg0: i32, %arg1: i32) -> (i32, i32) {
    %c0_i32 = arith.constant 0 : i32
    %c0_i32_0 = arith.constant 0 : i32
    %c0_i32_1 = arith.constant 0 : i32
    return %c0_i32, %c0_i32_0 : i32, i32
  }
  func.func @transform_2(%arg0: i32, %arg1: i32) -> (i32, i32) {
    %c0_i32 = arith.constant 0 : i32
    %c0_i32_0 = arith.constant 0 : i32
    %c0_i32_1 = arith.constant 0 : i32
    return %c0_i32, %c0_i32_0 : i32, i32
  }
  func.func @transform_3(%arg0: i32, %arg1: i32) -> (i32, i32) {
    %c0_i32 = arith.constant 0 : i32
    %c0_i32_0 = arith.constant 0 : i32
    %c0_i32_1 = arith.constant 0 : i32
    return %c0_i32, %c0_i32_0 : i32, i32
  }
  func.func @transform_4(%arg0: i32, %arg1: i32) -> (i32, i32, i32) {
    %c0_i32 = arith.constant 0 : i32
    %c0_i32_0 = arith.constant 0 : i32
    return %arg1, %arg0, %c0_i32 : i32, i32, i32
  }
}

module attributes {stable_mosaic.version = 11 : i64} {
  func.func @_lstm_layer_fc_kernel(%arg0: i32, %arg1: i32, %arg2: memref<8x16x32xbf16, #tpu.memory_space<vmem>>, %arg3: memref<32x128xbf16, #tpu.memory_space<vmem>>, %arg4: memref<32x128xbf16, #tpu.memory_space<vmem>>, %arg5: memref<1x128xf32, #tpu.memory_space<vmem>>, %arg6: memref<32x4xbf16, #tpu.memory_space<vmem>>, %arg7: memref<1x4xf32, #tpu.memory_space<vmem>>, %arg8: memref<16x4xf32, #tpu.memory_space<vmem>>, %arg9: memref<128x128xf32, #tpu.memory_space<vmem>>, %arg10: memref<16x32xf32, #tpu.memory_space<vmem>>, %arg11: memref<16x32xf32, #tpu.memory_space<vmem>>) attributes {dimension_semantics = [#tpu.dimension_semantics<parallel>, #tpu.dimension_semantics<arbitrary>], iteration_bounds = array<i64: 1, 1>, scalar_prefetch = 0 : i64, scratch_operands = 3 : i64, tpu.core_type = #tpu.core_type<tc>, window_params = [{transform_indices = @transform_0, window_bounds = array<i64: 8, 16, 32>}, {pipeline_mode = #tpu.pipeline_mode<synchronous>, transform_indices = @transform_1, window_bounds = array<i64: 32, 128>}, {pipeline_mode = #tpu.pipeline_mode<synchronous>, transform_indices = @transform_2, window_bounds = array<i64: 32, 128>}, {pipeline_mode = #tpu.pipeline_mode<synchronous>, transform_indices = @transform_3, window_bounds = array<i64: 1, 128>}, {pipeline_mode = #tpu.pipeline_mode<synchronous>, transform_indices = @transform_4, window_bounds = array<i64: 32, 4>}, {pipeline_mode = #tpu.pipeline_mode<synchronous>, transform_indices = @transform_5, window_bounds = array<i64: 1, 4>}, {transform_indices = @transform_6, window_bounds = array<i64: 16, 4>}]} {
    %c0_i32 = arith.constant 0 : i32
    %0 = arith.cmpi eq, %arg1, %c0_i32 : i32
    %1 = arith.extui %0 : i1 to i32
    %c0_i32_0 = arith.constant 0 : i32
    %2 = arith.cmpi ne, %1, %c0_i32_0 : i32
    scf.if %2 {
      %cst_69 = arith.constant 0.000000e+00 : f32
      %211 = vector.broadcast %cst_69 : f32 to vector<16x32xf32>
      %c0_70 = arith.constant 0 : index
      %c0_71 = arith.constant 0 : index
      %212 = vector.load %arg10[%c0_70, %c0_71] : memref<16x32xf32, #tpu.memory_space<vmem>>, vector<16x32xf32>
      tpu.vector_store %arg10[%c0_70, %c0_71], %211 {strides = array<i32>} : memref<16x32xf32, #tpu.memory_space<vmem>>, vector<16x32xf32>,
      %cst_72 = arith.constant 0.000000e+00 : f32
      %213 = vector.broadcast %cst_72 : f32 to vector<16x32xf32>
      %c0_73 = arith.constant 0 : index
      %c0_74 = arith.constant 0 : index
      %214 = vector.load %arg11[%c0_73, %c0_74] : memref<16x32xf32, #tpu.memory_space<vmem>>, vector<16x32xf32>
      tpu.vector_store %arg11[%c0_73, %c0_74], %213 {strides = array<i32>} : memref<16x32xf32, #tpu.memory_space<vmem>>, vector<16x32xf32>,
    } else {
    }
    %c0 = arith.constant 0 : index
    %c0_1 = arith.constant 0 : index
    %c0_2 = arith.constant 0 : index
    %3 = vector.load %arg2[%c0, %c0_1, %c0_2] : memref<8x16x32xbf16, #tpu.memory_space<vmem>>, vector<8x16x32xbf16>
    %4 = vector.shape_cast %3 : vector<8x16x32xbf16> to vector<128x32xbf16>
    %c0_3 = arith.constant 0 : index
    %c0_4 = arith.constant 0 : index
    %5 = vector.load %arg3[%c0_3, %c0_4] : memref<32x128xbf16, #tpu.memory_space<vmem>>, vector<32x128xbf16>
    %cst = arith.constant dense<0.000000e+00> : vector<128x128xf32>
    %6 = tpu.matmul %4, %5, %cst {dimension_numbers = #tpu.dot_dimension_numbers<[1], [0], [0], [1], [0, 0, 1, 1], [], []>} : vector<128x32xbf16>, vector<32x128xbf16>, vector<128x128xf32> -> vector<128x128xf32>
    %c0_5 = arith.constant 0 : index
    %c0_6 = arith.constant 0 : index
    %7 = vector.load %arg5[%c0_5, %c0_6] : memref<1x128xf32, #tpu.memory_space<vmem>>, vector<1x128xf32>
    %8 = vector.broadcast %7 : vector<1x128xf32> to vector<128x128xf32>
    %9 = arith.addf %6, %8 : vector<128x128xf32>
    %c0_7 = arith.constant 0 : index
    %c0_8 = arith.constant 0 : index
    %10 = vector.load %arg9[%c0_7, %c0_8] : memref<128x128xf32, #tpu.memory_space<vmem>>, vector<128x128xf32>
    tpu.vector_store %arg9[%c0_7, %c0_8], %9 {strides = array<i32>} : memref<128x128xf32, #tpu.memory_space<vmem>>, vector<128x128xf32>,
    %c0_9 = arith.constant 0 : index
    %c0_10 = arith.constant 0 : index
    %11 = vector.load %arg4[%c0_9, %c0_10] : memref<32x128xbf16, #tpu.memory_space<vmem>>, vector<32x128xbf16>
    %c0_11 = arith.constant 0 : index
    %c0_12 = arith.constant 0 : index
    %12 = vector.load %arg10[%c0_11, %c0_12] : memref<16x32xf32, #tpu.memory_space<vmem>>, vector<16x32xf32>
    %c0_13 = arith.constant 0 : index
    %c0_14 = arith.constant 0 : index
    %13 = vector.load %arg11[%c0_13, %c0_14] : memref<16x32xf32, #tpu.memory_space<vmem>>, vector<16x32xf32>
    %c0_i32_15 = arith.constant 0 : i32
    %c16_i32 = arith.constant 16 : i32
    %14 = arith.muli %c0_i32_15, %c16_i32 : i32
    %15 = tpu.assume_multiple %14, 16 : i32
    %16 = arith.index_cast %15 : i32 to index
    %c0_16 = arith.constant 0 : index
    %17 = vector.load %arg9[%16, %c0_16] : memref<128x128xf32, #tpu.memory_space<vmem>>, vector<16x128xf32>
    %18 = arith.truncf %12 : vector<16x32xf32> to vector<16x32xbf16>
    %cst_17 = arith.constant dense<0.000000e+00> : vector<16x128xf32>
    %19 = tpu.matmul %18, %11, %cst_17 {dimension_numbers = #tpu.dot_dimension_numbers<[1], [0], [0], [1], [0, 0, 1, 1], [], []>} : vector<16x32xbf16>, vector<32x128xbf16>, vector<16x128xf32> -> vector<16x128xf32>
    %20 = arith.addf %17, %19 : vector<16x128xf32>
    %cst_18 = arith.constant 5.000000e-01 : f32
    %21 = vector.broadcast %cst_18 : f32 to vector<16x128xf32>
    %22 = arith.mulf %21, %20 : vector<16x128xf32>
    %23 = math.tanh %22 : vector<16x128xf32>
    %cst_19 = arith.constant 5.000000e-01 : f32
    %24 = vector.broadcast %cst_19 : f32 to vector<16x128xf32>
    %25 = arith.mulf %24, %23 : vector<16x128xf32>
    %cst_20 = arith.constant 5.000000e-01 : f32
    %26 = vector.broadcast %cst_20 : f32 to vector<16x128xf32>
    %27 = arith.addf %25, %26 : vector<16x128xf32>
    %28 = math.tanh %20 : vector<16x128xf32>
    %29 = vector.extract_strided_slice %27 {offsets = [0, 0], sizes = [16, 32], strides = [1, 1]} : vector<16x128xf32> to vector<16x32xf32>
    %30 = vector.extract_strided_slice %27 {offsets = [0, 32], sizes = [16, 32], strides = [1, 1]} : vector<16x128xf32> to vector<16x32xf32>
    %31 = vector.extract_strided_slice %28 {offsets = [0, 64], sizes = [16, 32], strides = [1, 1]} : vector<16x128xf32> to vector<16x32xf32>
    %32 = vector.extract_strided_slice %27 {offsets = [0, 96], sizes = [16, 32], strides = [1, 1]} : vector<16x128xf32> to vector<16x32xf32>
    %33 = arith.mulf %30, %13 : vector<16x32xf32>
    %34 = arith.mulf %29, %31 : vector<16x32xf32>
    %35 = arith.addf %33, %34 : vector<16x32xf32>
    %36 = math.tanh %35 : vector<16x32xf32>
    %37 = arith.mulf %32, %36 : vector<16x32xf32>
    %c1_i32 = arith.constant 1 : i32
    %c16_i32_21 = arith.constant 16 : i32
    %38 = arith.muli %c1_i32, %c16_i32_21 : i32
    %39 = tpu.assume_multiple %38, 16 : i32
    %40 = arith.index_cast %39 : i32 to index
    %c0_22 = arith.constant 0 : index
    %41 = vector.load %arg9[%40, %c0_22] : memref<128x128xf32, #tpu.memory_space<vmem>>, vector<16x128xf32>
    %42 = arith.truncf %37 : vector<16x32xf32> to vector<16x32xbf16>
    %cst_23 = arith.constant dense<0.000000e+00> : vector<16x128xf32>
    %43 = tpu.matmul %42, %11, %cst_23 {dimension_numbers = #tpu.dot_dimension_numbers<[1], [0], [0], [1], [0, 0, 1, 1], [], []>} : vector<16x32xbf16>, vector<32x128xbf16>, vector<16x128xf32> -> vector<16x128xf32>
    %44 = arith.addf %41, %43 : vector<16x128xf32>
    %cst_24 = arith.constant 5.000000e-01 : f32
    %45 = vector.broadcast %cst_24 : f32 to vector<16x128xf32>
    %46 = arith.mulf %45, %44 : vector<16x128xf32>
    %47 = math.tanh %46 : vector<16x128xf32>
    %cst_25 = arith.constant 5.000000e-01 : f32
    %48 = vector.broadcast %cst_25 : f32 to vector<16x128xf32>
    %49 = arith.mulf %48, %47 : vector<16x128xf32>
    %cst_26 = arith.constant 5.000000e-01 : f32
    %50 = vector.broadcast %cst_26 : f32 to vector<16x128xf32>
    %51 = arith.addf %49, %50 : vector<16x128xf32>
    %52 = math.tanh %44 : vector<16x128xf32>
    %53 = vector.extract_strided_slice %51 {offsets = [0, 0], sizes = [16, 32], strides = [1, 1]} : vector<16x128xf32> to vector<16x32xf32>
    %54 = vector.extract_strided_slice %51 {offsets = [0, 32], sizes = [16, 32], strides = [1, 1]} : vector<16x128xf32> to vector<16x32xf32>
    %55 = vector.extract_strided_slice %52 {offsets = [0, 64], sizes = [16, 32], strides = [1, 1]} : vector<16x128xf32> to vector<16x32xf32>
    %56 = vector.extract_strided_slice %51 {offsets = [0, 96], sizes = [16, 32], strides = [1, 1]} : vector<16x128xf32> to vector<16x32xf32>
    %57 = arith.mulf %54, %35 : vector<16x32xf32>
    %58 = arith.mulf %53, %55 : vector<16x32xf32>
    %59 = arith.addf %57, %58 : vector<16x32xf32>
    %60 = math.tanh %59 : vector<16x32xf32>
    %61 = arith.mulf %56, %60 : vector<16x32xf32>
    %c2_i32 = arith.constant 2 : i32
    %c16_i32_27 = arith.constant 16 : i32
    %62 = arith.muli %c2_i32, %c16_i32_27 : i32
    %63 = tpu.assume_multiple %62, 16 : i32
    %64 = arith.index_cast %63 : i32 to index
    %c0_28 = arith.constant 0 : index
    %65 = vector.load %arg9[%64, %c0_28] : memref<128x128xf32, #tpu.memory_space<vmem>>, vector<16x128xf32>
    %66 = arith.truncf %61 : vector<16x32xf32> to vector<16x32xbf16>
    %cst_29 = arith.constant dense<0.000000e+00> : vector<16x128xf32>
    %67 = tpu.matmul %66, %11, %cst_29 {dimension_numbers = #tpu.dot_dimension_numbers<[1], [0], [0], [1], [0, 0, 1, 1], [], []>} : vector<16x32xbf16>, vector<32x128xbf16>, vector<16x128xf32> -> vector<16x128xf32>
    %68 = arith.addf %65, %67 : vector<16x128xf32>
    %cst_30 = arith.constant 5.000000e-01 : f32
    %69 = vector.broadcast %cst_30 : f32 to vector<16x128xf32>
    %70 = arith.mulf %69, %68 : vector<16x128xf32>
    %71 = math.tanh %70 : vector<16x128xf32>
    %cst_31 = arith.constant 5.000000e-01 : f32
    %72 = vector.broadcast %cst_31 : f32 to vector<16x128xf32>
    %73 = arith.mulf %72, %71 : vector<16x128xf32>
    %cst_32 = arith.constant 5.000000e-01 : f32
    %74 = vector.broadcast %cst_32 : f32 to vector<16x128xf32>
    %75 = arith.addf %73, %74 : vector<16x128xf32>
    %76 = math.tanh %68 : vector<16x128xf32>
    %77 = vector.extract_strided_slice %75 {offsets = [0, 0], sizes = [16, 32], strides = [1, 1]} : vector<16x128xf32> to vector<16x32xf32>
    %78 = vector.extract_strided_slice %75 {offsets = [0, 32], sizes = [16, 32], strides = [1, 1]} : vector<16x128xf32> to vector<16x32xf32>
    %79 = vector.extract_strided_slice %76 {offsets = [0, 64], sizes = [16, 32], strides = [1, 1]} : vector<16x128xf32> to vector<16x32xf32>
    %80 = vector.extract_strided_slice %75 {offsets = [0, 96], sizes = [16, 32], strides = [1, 1]} : vector<16x128xf32> to vector<16x32xf32>
    %81 = arith.mulf %78, %59 : vector<16x32xf32>
    %82 = arith.mulf %77, %79 : vector<16x32xf32>
    %83 = arith.addf %81, %82 : vector<16x32xf32>
    %84 = math.tanh %83 : vector<16x32xf32>
    %85 = arith.mulf %80, %84 : vector<16x32xf32>
    %c3_i32 = arith.constant 3 : i32
    %c16_i32_33 = arith.constant 16 : i32
    %86 = arith.muli %c3_i32, %c16_i32_33 : i32
    %87 = tpu.assume_multiple %86, 16 : i32
    %88 = arith.index_cast %87 : i32 to index
    %c0_34 = arith.constant 0 : index
    %89 = vector.load %arg9[%88, %c0_34] : memref<128x128xf32, #tpu.memory_space<vmem>>, vector<16x128xf32>
    %90 = arith.truncf %85 : vector<16x32xf32> to vector<16x32xbf16>
    %cst_35 = arith.constant dense<0.000000e+00> : vector<16x128xf32>
    %91 = tpu.matmul %90, %11, %cst_35 {dimension_numbers = #tpu.dot_dimension_numbers<[1], [0], [0], [1], [0, 0, 1, 1], [], []>} : vector<16x32xbf16>, vector<32x128xbf16>, vector<16x128xf32> -> vector<16x128xf32>
    %92 = arith.addf %89, %91 : vector<16x128xf32>
    %cst_36 = arith.constant 5.000000e-01 : f32
    %93 = vector.broadcast %cst_36 : f32 to vector<16x128xf32>
    %94 = arith.mulf %93, %92 : vector<16x128xf32>
    %95 = math.tanh %94 : vector<16x128xf32>
    %cst_37 = arith.constant 5.000000e-01 : f32
    %96 = vector.broadcast %cst_37 : f32 to vector<16x128xf32>
    %97 = arith.mulf %96, %95 : vector<16x128xf32>
    %cst_38 = arith.constant 5.000000e-01 : f32
    %98 = vector.broadcast %cst_38 : f32 to vector<16x128xf32>
    %99 = arith.addf %97, %98 : vector<16x128xf32>
    %100 = math.tanh %92 : vector<16x128xf32>
    %101 = vector.extract_strided_slice %99 {offsets = [0, 0], sizes = [16, 32], strides = [1, 1]} : vector<16x128xf32> to vector<16x32xf32>
    %102 = vector.extract_strided_slice %99 {offsets = [0, 32], sizes = [16, 32], strides = [1, 1]} : vector<16x128xf32> to vector<16x32xf32>
    %103 = vector.extract_strided_slice %100 {offsets = [0, 64], sizes = [16, 32], strides = [1, 1]} : vector<16x128xf32> to vector<16x32xf32>
    %104 = vector.extract_strided_slice %99 {offsets = [0, 96], sizes = [16, 32], strides = [1, 1]} : vector<16x128xf32> to vector<16x32xf32>
    %105 = arith.mulf %102, %83 : vector<16x32xf32>
    %106 = arith.mulf %101, %103 : vector<16x32xf32>
    %107 = arith.addf %105, %106 : vector<16x32xf32>
    %108 = math.tanh %107 : vector<16x32xf32>
    %109 = arith.mulf %104, %108 : vector<16x32xf32>
    %c4_i32 = arith.constant 4 : i32
    %c16_i32_39 = arith.constant 16 : i32
    %110 = arith.muli %c4_i32, %c16_i32_39 : i32
    %111 = tpu.assume_multiple %110, 16 : i32
    %112 = arith.index_cast %111 : i32 to index
    %c0_40 = arith.constant 0 : index
    %113 = vector.load %arg9[%112, %c0_40] : memref<128x128xf32, #tpu.memory_space<vmem>>, vector<16x128xf32>
    %114 = arith.truncf %109 : vector<16x32xf32> to vector<16x32xbf16>
    %cst_41 = arith.constant dense<0.000000e+00> : vector<16x128xf32>
    %115 = tpu.matmul %114, %11, %cst_41 {dimension_numbers = #tpu.dot_dimension_numbers<[1], [0], [0], [1], [0, 0, 1, 1], [], []>} : vector<16x32xbf16>, vector<32x128xbf16>, vector<16x128xf32> -> vector<16x128xf32>
    %116 = arith.addf %113, %115 : vector<16x128xf32>
    %cst_42 = arith.constant 5.000000e-01 : f32
    %117 = vector.broadcast %cst_42 : f32 to vector<16x128xf32>
    %118 = arith.mulf %117, %116 : vector<16x128xf32>
    %119 = math.tanh %118 : vector<16x128xf32>
    %cst_43 = arith.constant 5.000000e-01 : f32
    %120 = vector.broadcast %cst_43 : f32 to vector<16x128xf32>
    %121 = arith.mulf %120, %119 : vector<16x128xf32>
    %cst_44 = arith.constant 5.000000e-01 : f32
    %122 = vector.broadcast %cst_44 : f32 to vector<16x128xf32>
    %123 = arith.addf %121, %122 : vector<16x128xf32>
    %124 = math.tanh %116 : vector<16x128xf32>
    %125 = vector.extract_strided_slice %123 {offsets = [0, 0], sizes = [16, 32], strides = [1, 1]} : vector<16x128xf32> to vector<16x32xf32>
    %126 = vector.extract_strided_slice %123 {offsets = [0, 32], sizes = [16, 32], strides = [1, 1]} : vector<16x128xf32> to vector<16x32xf32>
    %127 = vector.extract_strided_slice %124 {offsets = [0, 64], sizes = [16, 32], strides = [1, 1]} : vector<16x128xf32> to vector<16x32xf32>
    %128 = vector.extract_strided_slice %123 {offsets = [0, 96], sizes = [16, 32], strides = [1, 1]} : vector<16x128xf32> to vector<16x32xf32>
    %129 = arith.mulf %126, %107 : vector<16x32xf32>
    %130 = arith.mulf %125, %127 : vector<16x32xf32>
    %131 = arith.addf %129, %130 : vector<16x32xf32>
    %132 = math.tanh %131 : vector<16x32xf32>
    %133 = arith.mulf %128, %132 : vector<16x32xf32>
    %c5_i32 = arith.constant 5 : i32
    %c16_i32_45 = arith.constant 16 : i32
    %134 = arith.muli %c5_i32, %c16_i32_45 : i32
    %135 = tpu.assume_multiple %134, 16 : i32
    %136 = arith.index_cast %135 : i32 to index
    %c0_46 = arith.constant 0 : index
    %137 = vector.load %arg9[%136, %c0_46] : memref<128x128xf32, #tpu.memory_space<vmem>>, vector<16x128xf32>
    %138 = arith.truncf %133 : vector<16x32xf32> to vector<16x32xbf16>
    %cst_47 = arith.constant dense<0.000000e+00> : vector<16x128xf32>
    %139 = tpu.matmul %138, %11, %cst_47 {dimension_numbers = #tpu.dot_dimension_numbers<[1], [0], [0], [1], [0, 0, 1, 1], [], []>} : vector<16x32xbf16>, vector<32x128xbf16>, vector<16x128xf32> -> vector<16x128xf32>
    %140 = arith.addf %137, %139 : vector<16x128xf32>
    %cst_48 = arith.constant 5.000000e-01 : f32
    %141 = vector.broadcast %cst_48 : f32 to vector<16x128xf32>
    %142 = arith.mulf %141, %140 : vector<16x128xf32>
    %143 = math.tanh %142 : vector<16x128xf32>
    %cst_49 = arith.constant 5.000000e-01 : f32
    %144 = vector.broadcast %cst_49 : f32 to vector<16x128xf32>
    %145 = arith.mulf %144, %143 : vector<16x128xf32>
    %cst_50 = arith.constant 5.000000e-01 : f32
    %146 = vector.broadcast %cst_50 : f32 to vector<16x128xf32>
    %147 = arith.addf %145, %146 : vector<16x128xf32>
    %148 = math.tanh %140 : vector<16x128xf32>
    %149 = vector.extract_strided_slice %147 {offsets = [0, 0], sizes = [16, 32], strides = [1, 1]} : vector<16x128xf32> to vector<16x32xf32>
    %150 = vector.extract_strided_slice %147 {offsets = [0, 32], sizes = [16, 32], strides = [1, 1]} : vector<16x128xf32> to vector<16x32xf32>
    %151 = vector.extract_strided_slice %148 {offsets = [0, 64], sizes = [16, 32], strides = [1, 1]} : vector<16x128xf32> to vector<16x32xf32>
    %152 = vector.extract_strided_slice %147 {offsets = [0, 96], sizes = [16, 32], strides = [1, 1]} : vector<16x128xf32> to vector<16x32xf32>
    %153 = arith.mulf %150, %131 : vector<16x32xf32>
    %154 = arith.mulf %149, %151 : vector<16x32xf32>
    %155 = arith.addf %153, %154 : vector<16x32xf32>
    %156 = math.tanh %155 : vector<16x32xf32>
    %157 = arith.mulf %152, %156 : vector<16x32xf32>
    %c6_i32 = arith.constant 6 : i32
    %c16_i32_51 = arith.constant 16 : i32
    %158 = arith.muli %c6_i32, %c16_i32_51 : i32
    %159 = tpu.assume_multiple %158, 16 : i32
    %160 = arith.index_cast %159 : i32 to index
    %c0_52 = arith.constant 0 : index
    %161 = vector.load %arg9[%160, %c0_52] : memref<128x128xf32, #tpu.memory_space<vmem>>, vector<16x128xf32>
    %162 = arith.truncf %157 : vector<16x32xf32> to vector<16x32xbf16>
    %cst_53 = arith.constant dense<0.000000e+00> : vector<16x128xf32>
    %163 = tpu.matmul %162, %11, %cst_53 {dimension_numbers = #tpu.dot_dimension_numbers<[1], [0], [0], [1], [0, 0, 1, 1], [], []>} : vector<16x32xbf16>, vector<32x128xbf16>, vector<16x128xf32> -> vector<16x128xf32>
    %164 = arith.addf %161, %163 : vector<16x128xf32>
    %cst_54 = arith.constant 5.000000e-01 : f32
    %165 = vector.broadcast %cst_54 : f32 to vector<16x128xf32>
    %166 = arith.mulf %165, %164 : vector<16x128xf32>
    %167 = math.tanh %166 : vector<16x128xf32>
    %cst_55 = arith.constant 5.000000e-01 : f32
    %168 = vector.broadcast %cst_55 : f32 to vector<16x128xf32>
    %169 = arith.mulf %168, %167 : vector<16x128xf32>
    %cst_56 = arith.constant 5.000000e-01 : f32
    %170 = vector.broadcast %cst_56 : f32 to vector<16x128xf32>
    %171 = arith.addf %169, %170 : vector<16x128xf32>
    %172 = math.tanh %164 : vector<16x128xf32>
    %173 = vector.extract_strided_slice %171 {offsets = [0, 0], sizes = [16, 32], strides = [1, 1]} : vector<16x128xf32> to vector<16x32xf32>
    %174 = vector.extract_strided_slice %171 {offsets = [0, 32], sizes = [16, 32], strides = [1, 1]} : vector<16x128xf32> to vector<16x32xf32>
    %175 = vector.extract_strided_slice %172 {offsets = [0, 64], sizes = [16, 32], strides = [1, 1]} : vector<16x128xf32> to vector<16x32xf32>
    %176 = vector.extract_strided_slice %171 {offsets = [0, 96], sizes = [16, 32], strides = [1, 1]} : vector<16x128xf32> to vector<16x32xf32>
    %177 = arith.mulf %174, %155 : vector<16x32xf32>
    %178 = arith.mulf %173, %175 : vector<16x32xf32>
    %179 = arith.addf %177, %178 : vector<16x32xf32>
    %180 = math.tanh %179 : vector<16x32xf32>
    %181 = arith.mulf %176, %180 : vector<16x32xf32>
    %c7_i32 = arith.constant 7 : i32
    %c16_i32_57 = arith.constant 16 : i32
    %182 = arith.muli %c7_i32, %c16_i32_57 : i32
    %183 = tpu.assume_multiple %182, 16 : i32
    %184 = arith.index_cast %183 : i32 to index
    %c0_58 = arith.constant 0 : index
    %185 = vector.load %arg9[%184, %c0_58] : memref<128x128xf32, #tpu.memory_space<vmem>>, vector<16x128xf32>
    %186 = arith.truncf %181 : vector<16x32xf32> to vector<16x32xbf16>
    %cst_59 = arith.constant dense<0.000000e+00> : vector<16x128xf32>
    %187 = tpu.matmul %186, %11, %cst_59 {dimension_numbers = #tpu.dot_dimension_numbers<[1], [0], [0], [1], [0, 0, 1, 1], [], []>} : vector<16x32xbf16>, vector<32x128xbf16>, vector<16x128xf32> -> vector<16x128xf32>
    %188 = arith.addf %185, %187 : vector<16x128xf32>
    %cst_60 = arith.constant 5.000000e-01 : f32
    %189 = vector.broadcast %cst_60 : f32 to vector<16x128xf32>
    %190 = arith.mulf %189, %188 : vector<16x128xf32>
    %191 = math.tanh %190 : vector<16x128xf32>
    %cst_61 = arith.constant 5.000000e-01 : f32
    %192 = vector.broadcast %cst_61 : f32 to vector<16x128xf32>
    %193 = arith.mulf %192, %191 : vector<16x128xf32>
    %cst_62 = arith.constant 5.000000e-01 : f32
    %194 = vector.broadcast %cst_62 : f32 to vector<16x128xf32>
    %195 = arith.addf %193, %194 : vector<16x128xf32>
    %196 = math.tanh %188 : vector<16x128xf32>
    %197 = vector.extract_strided_slice %195 {offsets = [0, 0], sizes = [16, 32], strides = [1, 1]} : vector<16x128xf32> to vector<16x32xf32>
    %198 = vector.extract_strided_slice %195 {offsets = [0, 32], sizes = [16, 32], strides = [1, 1]} : vector<16x128xf32> to vector<16x32xf32>
    %199 = vector.extract_strided_slice %196 {offsets = [0, 64], sizes = [16, 32], strides = [1, 1]} : vector<16x128xf32> to vector<16x32xf32>
    %200 = vector.extract_strided_slice %195 {offsets = [0, 96], sizes = [16, 32], strides = [1, 1]} : vector<16x128xf32> to vector<16x32xf32>
    %201 = arith.mulf %198, %179 : vector<16x32xf32>
    %202 = arith.mulf %197, %199 : vector<16x32xf32>
    %203 = arith.addf %201, %202 : vector<16x32xf32>
    %204 = math.tanh %203 : vector<16x32xf32>
    %205 = arith.mulf %200, %204 : vector<16x32xf32>
    %c8_i32 = arith.constant 8 : i32
    %c0_63 = arith.constant 0 : index
    %c0_64 = arith.constant 0 : index
    %206 = vector.load %arg10[%c0_63, %c0_64] : memref<16x32xf32, #tpu.memory_space<vmem>>, vector<16x32xf32>
    tpu.vector_store %arg10[%c0_63, %c0_64], %205 {strides = array<i32>} : memref<16x32xf32, #tpu.memory_space<vmem>>, vector<16x32xf32>,
    %c0_65 = arith.constant 0 : index
    %c0_66 = arith.constant 0 : index
    %207 = vector.load %arg11[%c0_65, %c0_66] : memref<16x32xf32, #tpu.memory_space<vmem>>, vector<16x32xf32>
    tpu.vector_store %arg11[%c0_65, %c0_66], %203 {strides = array<i32>} : memref<16x32xf32, #tpu.memory_space<vmem>>, vector<16x32xf32>,
    %c0_i32_67 = arith.constant 0 : i32
    %208 = arith.cmpi eq, %arg1, %c0_i32_67 : i32
    %209 = arith.extui %208 : i1 to i32
    %c0_i32_68 = arith.constant 0 : i32
    %210 = arith.cmpi ne, %209, %c0_i32_68 : i32
    scf.if %210 {
      %211 = arith.truncf %205 : vector<16x32xf32> to vector<16x32xbf16>
      %c0_69 = arith.constant 0 : index
      %c0_70 = arith.constant 0 : index
      %212 = vector.load %arg6[%c0_69, %c0_70] : memref<32x4xbf16, #tpu.memory_space<vmem>>, vector<32x4xbf16>
      %cst_71 = arith.constant dense<0.000000e+00> : vector<16x4xf32>
      %213 = tpu.matmul %211, %212, %cst_71 {dimension_numbers = #tpu.dot_dimension_numbers<[1], [0], [0], [1], [0, 0, 1, 1], [], []>} : vector<16x32xbf16>, vector<32x4xbf16>, vector<16x4xf32> -> vector<16x4xf32>
      %c0_72 = arith.constant 0 : index
      %c0_73 = arith.constant 0 : index
      %214 = vector.load %arg7[%c0_72, %c0_73] : memref<1x4xf32, #tpu.memory_space<vmem>>, vector<1x4xf32>
      %215 = vector.broadcast %214 : vector<1x4xf32> to vector<16x4xf32>
      %216 = arith.addf %213, %215 : vector<16x4xf32>
      %c0_74 = arith.constant 0 : index
      %c0_75 = arith.constant 0 : index
      %217 = vector.load %arg8[%c0_74, %c0_75] : memref<16x4xf32, #tpu.memory_space<vmem>>, vector<16x4xf32>
      tpu.vector_store %arg8[%c0_74, %c0_75], %216 {strides = array<i32>} : memref<16x4xf32, #tpu.memory_space<vmem>>, vector<16x4xf32>,
    } else {
    }
    return
  }
  func.func @transform_0(%arg0: i32, %arg1: i32) -> (i32, i32, i32) {
    %c0_i32 = arith.constant 0 : i32
    %c0_i32_0 = arith.constant 0 : i32
    return %arg1, %arg0, %c0_i32 : i32, i32, i32
  }
  func.func @transform_1(%arg0: i32, %arg1: i32) -> (i32, i32) {
    %c0_i32 = arith.constant 0 : i32
    %c0_i32_0 = arith.constant 0 : i32
    %c0_i32_1 = arith.constant 0 : i32
    return %c0_i32, %c0_i32_0 : i32, i32
  }
  func.func @transform_2(%arg0: i32, %arg1: i32) -> (i32, i32) {
    %c0_i32 = arith.constant 0 : i32
    %c0_i32_0 = arith.constant 0 : i32
    %c0_i32_1 = arith.constant 0 : i32
    return %c0_i32, %c0_i32_0 : i32, i32
  }
  func.func @transform_3(%arg0: i32, %arg1: i32) -> (i32, i32) {
    %c0_i32 = arith.constant 0 : i32
    %c0_i32_0 = arith.constant 0 : i32
    %c0_i32_1 = arith.constant 0 : i32
    return %c0_i32, %c0_i32_0 : i32, i32
  }
  func.func @transform_4(%arg0: i32, %arg1: i32) -> (i32, i32) {
    %c0_i32 = arith.constant 0 : i32
    %c0_i32_0 = arith.constant 0 : i32
    %c0_i32_1 = arith.constant 0 : i32
    return %c0_i32, %c0_i32_0 : i32, i32
  }
  func.func @transform_5(%arg0: i32, %arg1: i32) -> (i32, i32) {
    %c0_i32 = arith.constant 0 : i32
    %c0_i32_0 = arith.constant 0 : i32
    %c0_i32_1 = arith.constant 0 : i32
    return %c0_i32, %c0_i32_0 : i32, i32
  }
  func.func @transform_6(%arg0: i32, %arg1: i32) -> (i32, i32) {
    %c0_i32 = arith.constant 0 : i32
    %c0_i32_0 = arith.constant 0 : i32
    return %arg0, %c0_i32 : i32, i32
  }
}

</mosaic_0001>

<llo_original>
// kernel: lstm_module_forward.2
$region0: #{lstm_module_forward.2}
  #allocation0 [shape = 'u32[]', space=smem, size = 0x4, offset = 0x4, fixed_abs, tag = 'smem constant byte address 0x4 - core index']
  #allocation1 [shape = 'u32[144,128]{1,0:T(1,128)}', space=vmem, size = 0x12000, scoped, tag = 'internal scratch']
  #allocation2 [shape = 'f32[128,128]{1,0:T(8,128)}', space=vmem, size = 0x10000, scoped, tag = 'scratch operand']
  #allocation3 [shape = 'f32[16,32]{1,0:T(8,128)}', space=vmem, size = 0x2000, scoped, tag = 'scratch operand']
  #allocation4 [shape = 'f32[16,32]{1,0:T(8,128)}', space=vmem, size = 0x2000, scoped, tag = 'scratch operand']
  %s0 = inlined_call_operand.vmem [shape: f32[8,16,16], index: 0, kind: input, shape index: {}]
  %s1 = inlined_call_operand.vmem [shape: bf16[16,128], index: 1, kind: input, shape index: {}]
  %s2 = inlined_call_operand.vmem [shape: bf16[32,128], index: 2, kind: input, shape index: {}]
  %s3 = inlined_call_operand.vmem [shape: f32[1,128], index: 3, kind: input, shape index: {}]
  %s4 = inlined_call_operand.vmem [shape: bf16[8,16,32], index: 4, kind: output, shape index: {}]
  %s5 = sld [smem:[#allocation0]]
  $region30: #{lstm_module_forward.2} parent=0
    _
  %s7 = ssub.s32 1, %s5
  %s8 = scalar_select 0, %s7, %s5
  // Predicated region
  $region2: #{lstm_module_forward.2} parent=0 // pred_check
    _
  $region3: #{lstm_module_forward.2} parent=0 // pred_check_branch
    %10 = sbr.rel (0) target = $region5
  $region4: #{lstm_module_forward.2} parent=0 // pred_region
    _
  $region5: #{lstm_module_forward.2} parent=0 // pred_fallthru
    _
  // Predicated region
  $region6: #{lstm_module_forward.2} parent=0 // pred_check
    _
  $region7: #{lstm_module_forward.2} parent=0 // pred_check_branch
    %12 = sbr.rel (0) target = $region9
  $region8: #{lstm_module_forward.2} parent=0 // pred_region
    _
  $region9: #{lstm_module_forward.2} parent=0 // pred_fallthru
    _
  // Predicated region
  $region10: #{lstm_module_forward.2} parent=0 // pred_check
    _
  $region11: #{lstm_module_forward.2} parent=0 // pred_check_branch
    %14 = sbr.rel (0) target = $region13
  $region12: #{lstm_module_forward.2} parent=0 // pred_region
    _
  $region13: #{lstm_module_forward.2} parent=0 // pred_fallthru
    _
  // Predicated region
  $region14: #{lstm_module_forward.2} parent=0 // pred_check
    _
  $region15: #{lstm_module_forward.2} parent=0 // pred_check_branch
    %16 = sbr.rel (0) target = $region17
  $region16: #{lstm_module_forward.2} parent=0 // pred_region
    _
  $region17: #{lstm_module_forward.2} parent=0 // pred_fallthru
    _
  %p18 = scmp.eq.s32.totalorder 0, 0
  // Predicated region
  $region18: #{lstm_module_forward.2} parent=0 // pred_check
    %p19 = pneg %p18
  $region19: #{lstm_module_forward.2} parent=0 // pred_check_branch
    %21 = sbr.rel (%p19) target = $region21
  $region20: #{lstm_module_forward.2} parent=0 // pred_region
    %vm22 = vcmask 261120
    %23 = vst.msk [vmem:[#allocation3] sm:$0xff] %vm22, 0.0
    %24 = vst.msk [vmem:[#allocation3 + $0x8] sm:$0xff] %vm22, 0.0
    %25 = vst.msk [vmem:[#allocation4] sm:$0xff] %vm22, 0.0
    %26 = vst.msk [vmem:[#allocation4 + $0x8] sm:$0xff] %vm22, 0.0
  $region21: #{lstm_module_forward.2} parent=0 // pred_fallthru
    _
  %v27 = vld [vmem:[%s0] sm:$0xff]
  %v28 = vld [vmem:[%s0 + $0x8] sm:$0xff]
  %v29 = vld [vmem:[%s0 + $0x10] sm:$0xff]
  %v30 = vld [vmem:[%s0 + $0x18] sm:$0xff]
  %v31 = vld [vmem:[%s0 + $0x20] sm:$0xff]
  %v32 = vld [vmem:[%s0 + $0x28] sm:$0xff]
  %v33 = vld [vmem:[%s0 + $0x30] sm:$0xff]
  %v34 = vld [vmem:[%s0 + $0x38] sm:$0xff]
  %v35 = vld [vmem:[%s0 + $0x40] sm:$0xff]
  %v36 = vld [vmem:[%s0 + $0x48] sm:$0xff]
  %v37 = vld [vmem:[%s0 + $0x50] sm:$0xff]
  %v38 = vld [vmem:[%s0 + $0x58] sm:$0xff]
  %v39 = vld [vmem:[%s0 + $0x60] sm:$0xff]
  %v40 = vld [vmem:[%s0 + $0x68] sm:$0xff]
  %v41 = vld [vmem:[%s0 + $0x70] sm:$0xff]
  %v42 = vld [vmem:[%s0 + $0x78] sm:$0xff]
  %v43 = vpack.c.bf16 %v28, %v27
  %v44 = vpack.c.bf16 %v30, %v29
  %v45 = vpack.c.bf16 %v32, %v31
  %v46 = vpack.c.bf16 %v34, %v33
  %v47 = vpack.c.bf16 %v36, %v35
  %v48 = vpack.c.bf16 %v38, %v37
  %v49 = vpack.c.bf16 %v40, %v39
  %v50 = vpack.c.bf16 %v42, %v41
  %v51 = vld [vmem:[%s1] sm:$0xf]
  %v52 = vld [vmem:[%s1 + $0x4] sm:$0xf]
  %v53 = vld [vmem:[%s3] sm:$0x1]
  %v55 = vlaneseq
  %v56 = vshrl.u32 %v55, 7
  %v57 = vsub.s32 0, %v56
  %v58 = vrot.slane %v53, %v57
  %v62 = vunpack.c.l.b16 %v51
  %v63 = vunpack.c.l.b16 %v52
  %v64 = vpack.c.b16 %v63, %v62
  %vm66 = vcmask 130048
  %v68 = vsel %vm66, %v43, 0
  %v71 = vsel %vm66, %v44, 0
  %v74 = vsel %vm66, %v45, 0
  %v77 = vsel %vm66, %v46, 0
  %v80 = vsel %vm66, %v47, 0
  %v83 = vsel %vm66, %v48, 0
  %v86 = vsel %vm66, %v49, 0
  %v89 = vsel %vm66, %v50, 0
  %91 = vmatprep.subr.bf16.mxu0 0
  %92 = vmatpush1.bf16.msra.mxu0 %v64
  %93 = vmatprep.subr.bf16.mxu0 0
  %94 = vmatpush1.bf16.msra.mxu0 0
  %95 = vmatprep.subr.bf16.mxu0 0
  %96 = vmatpush1.bf16.msra.mxu0 0
  %97 = vmatprep.subr.bf16.mxu0 0
  %98 = vmatpush1.bf16.msra.mxu0 0
  %99 = vmatprep.subr.bf16.mxu0 0
  %100 = vmatpush1.bf16.msra.mxu0 0
  %101 = vmatprep.subr.bf16.mxu0 0
  %102 = vmatpush1.bf16.msra.mxu0 0
  %103 = vmatprep.subr.bf16.mxu0 0
  %104 = vmatpush1.bf16.msra.mxu0 0
  %105 = vmatprep.subr.bf16.mxu0 0
  %106 = vmatpush1.bf16.msra.mxu0 0
  %107 = vmatprep.subr.bf16.mxu0 0
  %108 = vmatpush1.bf16.msra.mxu0 0
  %109 = vmatprep.subr.bf16.mxu0 0
  %110 = vmatpush1.bf16.msra.mxu0 0
  %111 = vmatprep.subr.bf16.mxu0 0
  %112 = vmatpush1.bf16.msra.mxu0 0
  %113 = vmatprep.subr.bf16.mxu0 0
  %114 = vmatpush1.bf16.msra.mxu0 0
  %115 = vmatprep.subr.bf16.mxu0 0
  %116 = vmatpush1.bf16.msra.mxu0 0
  %117 = vmatprep.subr.bf16.mxu0 0
  %118 = vmatpush1.bf16.msra.mxu0 0
  %119 = vmatprep.subr.bf16.mxu0 0
  %120 = vmatpush1.bf16.msra.mxu0 0
  %121 = vmatprep.subr.bf16.mxu0 0
  %122 = vmatpush1.bf16.msra.mxu0 0
  %123 = vmatprep.mubr.bf16.mxu0 0
  %124 = vmatmul.mubr.bf16.gmra.mrb[0].mxu0 %v68
  %v125 = vpop.f32.mrb[0].mxu0
  %v126 = vadd.f32 %v58, %v125
  %v127 = vpop.f32.mrb[0].mxu0
  %v128 = vpop.f32.mrb[0].mxu0
  %v129 = vadd.f32 %v58, %v128
  %v130 = vpop.f32.mrb[0].mxu0
  %131 = vmatprep.mubr.bf16.mxu0 0
  %132 = vmatmul.mubr.bf16.gmra.mrb[0].mxu0 %v71
  %v133 = vpop.f32.mrb[0].mxu0
  %v134 = vadd.f32 %v58, %v133
  %v135 = vpop.f32.mrb[0].mxu0
  %v136 = vpop.f32.mrb[0].mxu0
  %v137 = vadd.f32 %v58, %v136
  %v138 = vpop.f32.mrb[0].mxu0
  %139 = vmatprep.mubr.bf16.mxu0 0
  %140 = vmatmul.mubr.bf16.gmra.mrb[0].mxu0 %v74
  %v141 = vpop.f32.mrb[0].mxu0
  %v142 = vadd.f32 %v58, %v141
  %v143 = vpop.f32.mrb[0].mxu0
  %v144 = vpop.f32.mrb[0].mxu0
  %v145 = vadd.f32 %v58, %v144
  %v146 = vpop.f32.mrb[0].mxu0
  %147 = vmatprep.mubr.bf16.mxu0 0
  %148 = vmatmul.mubr.bf16.gmra.mrb[0].mxu0 %v77
  %v149 = vpop.f32.mrb[0].mxu0
  %v150 = vadd.f32 %v58, %v149
  %v151 = vpop.f32.mrb[0].mxu0
  %v152 = vpop.f32.mrb[0].mxu0
  %v153 = vadd.f32 %v58, %v152
  %v154 = vpop.f32.mrb[0].mxu0
  %155 = vmatprep.mubr.bf16.mxu0 0
  %156 = vmatmul.mubr.bf16.gmra.mrb[0].mxu0 %v80
  %v157 = vpop.f32.mrb[0].mxu0
  %v158 = vadd.f32 %v58, %v157
  %v159 = vpop.f32.mrb[0].mxu0
  %v160 = vpop.f32.mrb[0].mxu0
  %v161 = vadd.f32 %v58, %v160
  %v162 = vpop.f32.mrb[0].mxu0
  %163 = vmatprep.mubr.bf16.mxu0 0
  %164 = vmatmul.mubr.bf16.gmra.mrb[0].mxu0 %v83
  %v165 = vpop.f32.mrb[0].mxu0
  %v166 = vadd.f32 %v58, %v165
  %v167 = vpop.f32.mrb[0].mxu0
  %v168 = vpop.f32.mrb[0].mxu0
  %v169 = vadd.f32 %v58, %v168
  %v170 = vpop.f32.mrb[0].mxu0
  %171 = vmatprep.mubr.bf16.mxu0 0
  %172 = vmatmul.mubr.bf16.gmra.mrb[0].mxu0 %v86
  %v173 = vpop.f32.mrb[0].mxu0
  %v174 = vadd.f32 %v58, %v173
  %v175 = vpop.f32.mrb[0].mxu0
  %v176 = vpop.f32.mrb[0].mxu0
  %v177 = vadd.f32 %v58, %v176
  %v178 = vpop.f32.mrb[0].mxu0
  %179 = vmatprep.mubr.bf16.mxu0 0
  %180 = vmatmul.mubr.bf16.gmra.mrb[0].mxu0 %v89
  %v181 = vpop.f32.mrb[0].mxu0
  %v182 = vadd.f32 %v58, %v181
  %v183 = vpop.f32.mrb[0].mxu0
  %v184 = vpop.f32.mrb[0].mxu0
  %v185 = vadd.f32 %v58, %v184
  %v186 = vpop.f32.mrb[0].mxu0
  %187 = vdwg.mxu0
  %188 = vst [vmem:[#allocation2] sm:$0xff] %v126
  %189 = vst [vmem:[#allocation2 + $0x8] sm:$0xff] %v129
  %190 = vst [vmem:[#allocation2 + $0x10] sm:$0xff] %v134
  %191 = vst [vmem:[#allocation2 + $0x18] sm:$0xff] %v137
  %192 = vst [vmem:[#allocation2 + $0x20] sm:$0xff] %v142
  %193 = vst [vmem:[#allocation2 + $0x28] sm:$0xff] %v145
  %194 = vst [vmem:[#allocation2 + $0x30] sm:$0xff] %v150
  %195 = vst [vmem:[#allocation2 + $0x38] sm:$0xff] %v153
  %196 = vst [vmem:[#allocation2 + $0x40] sm:$0xff] %v158
  %197 = vst [vmem:[#allocation2 + $0x48] sm:$0xff] %v161
  %198 = vst [vmem:[#allocation2 + $0x50] sm:$0xff] %v166
  %199 = vst [vmem:[#allocation2 + $0x58] sm:$0xff] %v169
  %200 = vst [vmem:[#allocation2 + $0x60] sm:$0xff] %v174
  %201 = vst [vmem:[#allocation2 + $0x68] sm:$0xff] %v177
  %202 = vst [vmem:[#allocation2 + $0x70] sm:$0xff] %v182
  %203 = vst [vmem:[#allocation2 + $0x78] sm:$0xff] %v185
  %v204 = vld [vmem:[%s2] sm:$0xf]
  %v205 = vld [vmem:[%s2 + $0x4] sm:$0xf]
  %v206 = vld [vmem:[%s2 + $0x8] sm:$0xf]
  %v207 = vld [vmem:[%s2 + $0xc] sm:$0xf]
  %v208 = vld [vmem:[#allocation3] sm:$0xff]
  %v209 = vld [vmem:[#allocation3 + $0x8] sm:$0xff]
  %v210 = vld [vmem:[#allocation4] sm:$0xff]
  %v211 = vld [vmem:[#allocation4 + $0x8] sm:$0xff]
  %v212 = vld [vmem:[#allocation2] sm:$0xff]
  %v213 = vld [vmem:[#allocation2 + $0x8] sm:$0xff]
  %v214 = vpack.c.bf16 %v209, %v208
  %v219 = vunpack.c.l.b16 %v204
  %v220 = vunpack.c.l.b16 %v205
  %v221 = vunpack.c.l.b16 %v206
  %v222 = vunpack.c.l.b16 %v207
  %v223 = vpack.c.b16 %v220, %v219
  %v224 = vpack.c.b16 %v222, %v221
  %vm227 = vcmask 261120
  %v229 = vsel %vm227, %v214, 0
  %231 = vmatprep.subr.bf16.mxu0 0
  %232 = vmatpush1.bf16.msra.mxu0 %v223
  %233 = vmatprep.subr.bf16.mxu0 0
  %234 = vmatpush1.bf16.msra.mxu0 %v224
  %235 = vmatprep.subr.bf16.mxu0 0
  %236 = vmatpush1.bf16.msra.mxu0 0
  %237 = vmatprep.subr.bf16.mxu0 0
  %238 = vmatpush1.bf16.msra.mxu0 0
  %239 = vmatprep.subr.bf16.mxu0 0
  %240 = vmatpush1.bf16.msra.mxu0 0
  %241 = vmatprep.subr.bf16.mxu0 0
  %242 = vmatpush1.bf16.msra.mxu0 0
  %243 = vmatprep.subr.bf16.mxu0 0
  %244 = vmatpush1.bf16.msra.mxu0 0
  %245 = vmatprep.subr.bf16.mxu0 0
  %246 = vmatpush1.bf16.msra.mxu0 0
  %247 = vmatprep.subr.bf16.mxu0 0
  %248 = vmatpush1.bf16.msra.mxu0 0
  %249 = vmatprep.subr.bf16.mxu0 0
  %250 = vmatpush1.bf16.msra.mxu0 0
  %251 = vmatprep.subr.bf16.mxu0 0
  %252 = vmatpush1.bf16.msra.mxu0 0
  %253 = vmatprep.subr.bf16.mxu0 0
  %254 = vmatpush1.bf16.msra.mxu0 0
  %255 = vmatprep.subr.bf16.mxu0 0
  %256 = vmatpush1.bf16.msra.mxu0 0
  %257 = vmatprep.subr.bf16.mxu0 0
  %258 = vmatpush1.bf16.msra.mxu0 0
  %259 = vmatprep.subr.bf16.mxu0 0
  %260 = vmatpush1.bf16.msra.mxu0 0
  %261 = vmatprep.subr.bf16.mxu0 0
  %262 = vmatpush1.bf16.msra.mxu0 0
  %263 = vmatprep.mubr.bf16.mxu0 0
  %264 = vmatmul.mubr.bf16.gmra.mrb[0].mxu0 %v229
  %v265 = vpop.f32.mrb[0].mxu0
  %v266 = vadd.f32 0.0, %v265
  %v267 = vpop.f32.mrb[0].mxu0
  %v268 = vpop.f32.mrb[0].mxu0
  %v269 = vadd.f32 0.0, %v268
  %v270 = vpop.f32.mrb[0].mxu0
  %271 = vdwg.mxu0
  %v272 = vadd.f32 %v212, %v266
  %v273 = vadd.f32 %v213, %v269
  %v274 = vmul.f32 %v272, 0.5
  %v275 = vmul.f32 %v273, 0.5
  %v276 = vtanh.pop %v274
  %v277 = vtanh.pop %v275
  %v278 = vmul.f32 %v276, 0.5
  %v279 = vmul.f32 %v277, 0.5
  %v280 = vadd.f32 %v278, 0.5
  %v281 = vadd.f32 %v279, 0.5
  %v282 = vtanh.pop %v272
  %v283 = vtanh.pop %v273
  %286 = vrot.lane.b32.xlu0 %v210, 32
  %v287 = vpop.permute.xlu0 %286
  %288 = vrot.lane.b32.xlu0 %v211, 32
  %v289 = vpop.permute.xlu0 %288
  %v292 = vmul.f32 %v280, %v287
  %v293 = vmul.f32 %v281, %v289
  %296 = vrot.lane.b32.xlu0 %v282, 64
  %v297 = vpop.permute.xlu0 %296
  %298 = vrot.lane.b32.xlu0 %v283, 64
  %v299 = vpop.permute.xlu0 %298
  %v302 = vmul.f32 %v280, %v297
  %v303 = vmul.f32 %v281, %v299
  %306 = vrot.lane.b32.xlu0 %v302, 32
  %v307 = vpop.permute.xlu0 %306
  %308 = vrot.lane.b32.xlu0 %v303, 32
  %v309 = vpop.permute.xlu0 %308
  %v312 = vadd.f32 %v292, %v307
  %v313 = vadd.f32 %v293, %v309
  %v314 = vtanh.pop %v312
  %v315 = vtanh.pop %v313
  %318 = vrot.lane.b32.xlu0 %v314, 64
  %v319 = vpop.permute.xlu0 %318
  %320 = vrot.lane.b32.xlu0 %v315, 64
  %v321 = vpop.permute.xlu0 %320
  %v324 = vmul.f32 %v280, %v319
  %v325 = vmul.f32 %v281, %v321
  %v326 = vpack.c.bf16 %v325, %v324
  %v328 = vunpack.c.l.b16 %v326
  %v329 = vunpack.c.h.b16 %v326
  %v330 = vpack.c.b16 %v328, %v328
  %v331 = vpack.c.b16 %v329, %v329
  %332 = vrot.lane.b32.xlu0 %v330, 32
  %v333 = vpop.permute.xlu0 %332
  %334 = vrot.lane.b32.xlu0 %v331, 32
  %v335 = vpop.permute.xlu0 %334
  %vm338 = vcmask 257024
  %339 = vst.msk [vmem:[%s4] sm:$0xf] %vm338, %v333
  %340 = vst.msk [vmem:[%s4 + $0x4] sm:$0xf] %vm338, %v335
  %s341 = scalar_lea.vmem [#allocation2], 16
  %v342 = vld [vmem:[%s341] sm:$0xff]
  %v343 = vld [vmem:[%s341 + $0x8] sm:$0xff]
  %344 = vrot.lane.b32.xlu0 %v326, 32
  %v345 = vpop.permute.xlu0 %344
  %v347 = vsel %vm227, %v345, 0
  %349 = vmatprep.subr.bf16.mxu0 0
  %350 = vmatpush1.bf16.msra.mxu0 %v223
  %351 = vmatprep.subr.bf16.mxu0 0
  %352 = vmatpush1.bf16.msra.mxu0 %v224
  %353 = vmatprep.subr.bf16.mxu0 0
  %354 = vmatpush1.bf16.msra.mxu0 0
  %355 = vmatprep.subr.bf16.mxu0 0
  %356 = vmatpush1.bf16.msra.mxu0 0
  %357 = vmatprep.subr.bf16.mxu0 0
  %358 = vmatpush1.bf16.msra.mxu0 0
  %359 = vmatprep.subr.bf16.mxu0 0
  %360 = vmatpush1.bf16.msra.mxu0 0
  %361 = vmatprep.subr.bf16.mxu0 0
  %362 = vmatpush1.bf16.msra.mxu0 0
  %363 = vmatprep.subr.bf16.mxu0 0
  %364 = vmatpush1.bf16.msra.mxu0 0
  %365 = vmatprep.subr.bf16.mxu0 0
  %366 = vmatpush1.bf16.msra.mxu0 0
  %367 = vmatprep.subr.bf16.mxu0 0
  %368 = vmatpush1.bf16.msra.mxu0 0
  %369 = vmatprep.subr.bf16.mxu0 0
  %370 = vmatpush1.bf16.msra.mxu0 0
  %371 = vmatprep.subr.bf16.mxu0 0
  %372 = vmatpush1.bf16.msra.mxu0 0
  %373 = vmatprep.subr.bf16.mxu0 0
  %374 = vmatpush1.bf16.msra.mxu0 0
  %375 = vmatprep.subr.bf16.mxu0 0
  %376 = vmatpush1.bf16.msra.mxu0 0
  %377 = vmatprep.subr.bf16.mxu0 0
  %378 = vmatpush1.bf16.msra.mxu0 0
  %379 = vmatprep.subr.bf16.mxu0 0
  %380 = vmatpush1.bf16.msra.mxu0 0
  %381 = vmatprep.mubr.bf16.mxu0 0
  %382 = vmatmul.mubr.bf16.gmra.mrb[0].mxu0 %v347
  %v383 = vpop.f32.mrb[0].mxu0
  %v384 = vadd.f32 0.0, %v383
  %v385 = vpop.f32.mrb[0].mxu0
  %v386 = vpop.f32.mrb[0].mxu0
  %v387 = vadd.f32 0.0, %v386
  %v388 = vpop.f32.mrb[0].mxu0
  %389 = vdwg.mxu0
  %v390 = vadd.f32 %v342, %v384
  %v391 = vadd.f32 %v343, %v387
  %v392 = vmul.f32 %v390, 0.5
  %v393 = vmul.f32 %v391, 0.5
  %v394 = vtanh.pop %v392
  %v395 = vtanh.pop %v393
  %v396 = vmul.f32 %v394, 0.5
  %v397 = vmul.f32 %v395, 0.5
  %v398 = vadd.f32 %v396, 0.5
  %v399 = vadd.f32 %v397, 0.5
  %v400 = vtanh.pop %v390
  %v401 = vtanh.pop %v391
  %v402 = vmul.f32 %v398, %v312
  %v403 = vmul.f32 %v399, %v313
  %406 = vrot.lane.b32.xlu0 %v400, 64
  %v407 = vpop.permute.xlu0 %406
  %408 = vrot.lane.b32.xlu0 %v401, 64
  %v409 = vpop.permute.xlu0 %408
  %v412 = vmul.f32 %v398, %v407
  %v413 = vmul.f32 %v399, %v409
  %416 = vrot.lane.b32.xlu0 %v412, 32
  %v417 = vpop.permute.xlu0 %416
  %418 = vrot.lane.b32.xlu0 %v413, 32
  %v419 = vpop.permute.xlu0 %418
  %v422 = vadd.f32 %v402, %v417
  %v423 = vadd.f32 %v403, %v419
  %v424 = vtanh.pop %v422
  %v425 = vtanh.pop %v423
  %428 = vrot.lane.b32.xlu0 %v424, 64
  %v429 = vpop.permute.xlu0 %428
  %430 = vrot.lane.b32.xlu0 %v425, 64
  %v431 = vpop.permute.xlu0 %430
  %v434 = vmul.f32 %v398, %v429
  %v435 = vmul.f32 %v399, %v431
  %v436 = vpack.c.bf16 %v435, %v434
  %v438 = vunpack.c.l.b16 %v436
  %v439 = vunpack.c.h.b16 %v436
  %v440 = vpack.c.b16 %v438, %v438
  %v441 = vpack.c.b16 %v439, %v439
  %442 = vrot.lane.b32.xlu0 %v440, 32
  %v443 = vpop.permute.xlu0 %442
  %444 = vrot.lane.b32.xlu0 %v441, 32
  %v445 = vpop.permute.xlu0 %444
  %s448 = scalar_lea.vmem %s4, 8
  %449 = vst.msk [vmem:[%s448] sm:$0xf] %vm338, %v443
  %450 = vst.msk [vmem:[%s448 + $0x4] sm:$0xf] %vm338, %v445
  %s451 = scalar_lea.vmem [#allocation2], 32
  %v452 = vld [vmem:[%s451] sm:$0xff]
  %v453 = vld [vmem:[%s451 + $0x8] sm:$0xff]
  %454 = vrot.lane.b32.xlu0 %v436, 32
  %v455 = vpop.permute.xlu0 %454
  %v457 = vsel %vm227, %v455, 0
  %459 = vmatprep.subr.bf16.mxu0 0
  %460 = vmatpush1.bf16.msra.mxu0 %v223
  %461 = vmatprep.subr.bf16.mxu0 0
  %462 = vmatpush1.bf16.msra.mxu0 %v224
  %463 = vmatprep.subr.bf16.mxu0 0
  %464 = vmatpush1.bf16.msra.mxu0 0
  %465 = vmatprep.subr.bf16.mxu0 0
  %466 = vmatpush1.bf16.msra.mxu0 0
  %467 = vmatprep.subr.bf16.mxu0 0
  %468 = vmatpush1.bf16.msra.mxu0 0
  %469 = vmatprep.subr.bf16.mxu0 0
  %470 = vmatpush1.bf16.msra.mxu0 0
  %471 = vmatprep.subr.bf16.mxu0 0
  %472 = vmatpush1.bf16.msra.mxu0 0
  %473 = vmatprep.subr.bf16.mxu0 0
  %474 = vmatpush1.bf16.msra.mxu0 0
  %475 = vmatprep.subr.bf16.mxu0 0
  %476 = vmatpush1.bf16.msra.mxu0 0
  %477 = vmatprep.subr.bf16.mxu0 0
  %478 = vmatpush1.bf16.msra.mxu0 0
  %479 = vmatprep.subr.bf16.mxu0 0
  %480 = vmatpush1.bf16.msra.mxu0 0
  %481 = vmatprep.subr.bf16.mxu0 0
  %482 = vmatpush1.bf16.msra.mxu0 0
  %483 = vmatprep.subr.bf16.mxu0 0
  %484 = vmatpush1.bf16.msra.mxu0 0
  %485 = vmatprep.subr.bf16.mxu0 0
  %486 = vmatpush1.bf16.msra.mxu0 0
  %487 = vmatprep.subr.bf16.mxu0 0
  %488 = vmatpush1.bf16.msra.mxu0 0
  %489 = vmatprep.subr.bf16.mxu0 0
  %490 = vmatpush1.bf16.msra.mxu0 0
  %491 = vmatprep.mubr.bf16.mxu0 0
  %492 = vmatmul.mubr.bf16.gmra.mrb[0].mxu0 %v457
  %v493 = vpop.f32.mrb[0].mxu0
  %v494 = vadd.f32 0.0, %v493
  %v495 = vpop.f32.mrb[0].mxu0
  %v496 = vpop.f32.mrb[0].mxu0
  %v497 = vadd.f32 0.0, %v496
  %v498 = vpop.f32.mrb[0].mxu0
  %499 = vdwg.mxu0
  %v500 = vadd.f32 %v452, %v494
  %v501 = vadd.f32 %v453, %v497
  %v502 = vmul.f32 %v500, 0.5
  %v503 = vmul.f32 %v501, 0.5
  %v504 = vtanh.pop %v502
  %v505 = vtanh.pop %v503
  %v506 = vmul.f32 %v504, 0.5
  %v507 = vmul.f32 %v505, 0.5
  %v508 = vadd.f32 %v506, 0.5
  %v509 = vadd.f32 %v507, 0.5
  %v510 = vtanh.pop %v500
  %v511 = vtanh.pop %v501
  %v512 = vmul.f32 %v508, %v422
  %v513 = vmul.f32 %v509, %v423
  %516 = vrot.lane.b32.xlu0 %v510, 64
  %v517 = vpop.permute.xlu0 %516
  %518 = vrot.lane.b32.xlu0 %v511, 64
  %v519 = vpop.permute.xlu0 %518
  %v522 = vmul.f32 %v508, %v517
  %v523 = vmul.f32 %v509, %v519
  %526 = vrot.lane.b32.xlu0 %v522, 32
  %v527 = vpop.permute.xlu0 %526
  %528 = vrot.lane.b32.xlu0 %v523, 32
  %v529 = vpop.permute.xlu0 %528
  %v532 = vadd.f32 %v512, %v527
  %v533 = vadd.f32 %v513, %v529
  %v534 = vtanh.pop %v532
  %v535 = vtanh.pop %v533
  %538 = vrot.lane.b32.xlu0 %v534, 64
  %v539 = vpop.permute.xlu0 %538
  %540 = vrot.lane.b32.xlu0 %v535, 64
  %v541 = vpop.permute.xlu0 %540
  %v544 = vmul.f32 %v508, %v539
  %v545 = vmul.f32 %v509, %v541
  %v546 = vpack.c.bf16 %v545, %v544
  %v548 = vunpack.c.l.b16 %v546
  %v549 = vunpack.c.h.b16 %v546
  %v550 = vpack.c.b16 %v548, %v548
  %v551 = vpack.c.b16 %v549, %v549
  %552 = vrot.lane.b32.xlu0 %v550, 32
  %v553 = vpop.permute.xlu0 %552
  %554 = vrot.lane.b32.xlu0 %v551, 32
  %v555 = vpop.permute.xlu0 %554
  %s558 = scalar_lea.vmem %s4, 16
  %559 = vst.msk [vmem:[%s558] sm:$0xf] %vm338, %v553
  %560 = vst.msk [vmem:[%s558 + $0x4] sm:$0xf] %vm338, %v555
  %s561 = scalar_lea.vmem [#allocation2], 48
  %v562 = vld [vmem:[%s561] sm:$0xff]
  %v563 = vld [vmem:[%s561 + $0x8] sm:$0xff]
  %564 = vrot.lane.b32.xlu0 %v546, 32
  %v565 = vpop.permute.xlu0 %564
  %v567 = vsel %vm227, %v565, 0
  %569 = vmatprep.subr.bf16.mxu0 0
  %570 = vmatpush1.bf16.msra.mxu0 %v223
  %571 = vmatprep.subr.bf16.mxu0 0
  %572 = vmatpush1.bf16.msra.mxu0 %v224
  %573 = vmatprep.subr.bf16.mxu0 0
  %574 = vmatpush1.bf16.msra.mxu0 0
  %575 = vmatprep.subr.bf16.mxu0 0
  %576 = vmatpush1.bf16.msra.mxu0 0
  %577 = vmatprep.subr.bf16.mxu0 0
  %578 = vmatpush1.bf16.msra.mxu0 0
  %579 = vmatprep.subr.bf16.mxu0 0
  %580 = vmatpush1.bf16.msra.mxu0 0
  %581 = vmatprep.subr.bf16.mxu0 0
  %582 = vmatpush1.bf16.msra.mxu0 0
  %583 = vmatprep.subr.bf16.mxu0 0
  %584 = vmatpush1.bf16.msra.mxu0 0
  %585 = vmatprep.subr.bf16.mxu0 0
  %586 = vmatpush1.bf16.msra.mxu0 0
  %587 = vmatprep.subr.bf16.mxu0 0
  %588 = vmatpush1.bf16.msra.mxu0 0
  %589 = vmatprep.subr.bf16.mxu0 0
  %590 = vmatpush1.bf16.msra.mxu0 0
  %591 = vmatprep.subr.bf16.mxu0 0
  %592 = vmatpush1.bf16.msra.mxu0 0
  %593 = vmatprep.subr.bf16.mxu0 0
  %594 = vmatpush1.bf16.msra.mxu0 0
  %595 = vmatprep.subr.bf16.mxu0 0
  %596 = vmatpush1.bf16.msra.mxu0 0
  %597 = vmatprep.subr.bf16.mxu0 0
  %598 = vmatpush1.bf16.msra.mxu0 0
  %599 = vmatprep.subr.bf16.mxu0 0
  %600 = vmatpush1.bf16.msra.mxu0 0
  %601 = vmatprep.mubr.bf16.mxu0 0
  %602 = vmatmul.mubr.bf16.gmra.mrb[0].mxu0 %v567
  %v603 = vpop.f32.mrb[0].mxu0
  %v604 = vadd.f32 0.0, %v603
  %v605 = vpop.f32.mrb[0].mxu0
  %v606 = vpop.f32.mrb[0].mxu0
  %v607 = vadd.f32 0.0, %v606
  %v608 = vpop.f32.mrb[0].mxu0
  %609 = vdwg.mxu0
  %v610 = vadd.f32 %v562, %v604
  %v611 = vadd.f32 %v563, %v607
  %v612 = vmul.f32 %v610, 0.5
  %v613 = vmul.f32 %v611, 0.5
  %v614 = vtanh.pop %v612
  %v615 = vtanh.pop %v613
  %v616 = vmul.f32 %v614, 0.5
  %v617 = vmul.f32 %v615, 0.5
  %v618 = vadd.f32 %v616, 0.5
  %v619 = vadd.f32 %v617, 0.5
  %v620 = vtanh.pop %v610
  %v621 = vtanh.pop %v611
  %v622 = vmul.f32 %v618, %v532
  %v623 = vmul.f32 %v619, %v533
  %626 = vrot.lane.b32.xlu0 %v620, 64
  %v627 = vpop.permute.xlu0 %626
  %628 = vrot.lane.b32.xlu0 %v621, 64
  %v629 = vpop.permute.xlu0 %628
  %v632 = vmul.f32 %v618, %v627
  %v633 = vmul.f32 %v619, %v629
  %636 = vrot.lane.b32.xlu0 %v632, 32
  %v637 = vpop.permute.xlu0 %636
  %638 = vrot.lane.b32.xlu0 %v633, 32
  %v639 = vpop.permute.xlu0 %638
  %v642 = vadd.f32 %v622, %v637
  %v643 = vadd.f32 %v623, %v639
  %v644 = vtanh.pop %v642
  %v645 = vtanh.pop %v643
  %648 = vrot.lane.b32.xlu0 %v644, 64
  %v649 = vpop.permute.xlu0 %648
  %650 = vrot.lane.b32.xlu0 %v645, 64
  %v651 = vpop.permute.xlu0 %650
  %v654 = vmul.f32 %v618, %v649
  %v655 = vmul.f32 %v619, %v651
  %v656 = vpack.c.bf16 %v655, %v654
  %v658 = vunpack.c.l.b16 %v656
  %v659 = vunpack.c.h.b16 %v656
  %v660 = vpack.c.b16 %v658, %v658
  %v661 = vpack.c.b16 %v659, %v659
  %662 = vrot.lane.b32.xlu0 %v660, 32
  %v663 = vpop.permute.xlu0 %662
  %664 = vrot.lane.b32.xlu0 %v661, 32
  %v665 = vpop.permute.xlu0 %664
  %s668 = scalar_lea.vmem %s4, 24
  %669 = vst.msk [vmem:[%s668] sm:$0xf] %vm338, %v663
  %670 = vst.msk [vmem:[%s668 + $0x4] sm:$0xf] %vm338, %v665
  %s671 = scalar_lea.vmem [#allocation2], 64
  %v672 = vld [vmem:[%s671] sm:$0xff]
  %v673 = vld [vmem:[%s671 + $0x8] sm:$0xff]
  %674 = vrot.lane.b32.xlu0 %v656, 32
  %v675 = vpop.permute.xlu0 %674
  %v677 = vsel %vm227, %v675, 0
  %679 = vmatprep.subr.bf16.mxu0 0
  %680 = vmatpush1.bf16.msra.mxu0 %v223
  %681 = vmatprep.subr.bf16.mxu0 0
  %682 = vmatpush1.bf16.msra.mxu0 %v224
  %683 = vmatprep.subr.bf16.mxu0 0
  %684 = vmatpush1.bf16.msra.mxu0 0
  %685 = vmatprep.subr.bf16.mxu0 0
  %686 = vmatpush1.bf16.msra.mxu0 0
  %687 = vmatprep.subr.bf16.mxu0 0
  %688 = vmatpush1.bf16.msra.mxu0 0
  %689 = vmatprep.subr.bf16.mxu0 0
  %690 = vmatpush1.bf16.msra.mxu0 0
  %691 = vmatprep.subr.bf16.mxu0 0
  %692 = vmatpush1.bf16.msra.mxu0 0
  %693 = vmatprep.subr.bf16.mxu0 0
  %694 = vmatpush1.bf16.msra.mxu0 0
  %695 = vmatprep.subr.bf16.mxu0 0
  %696 = vmatpush1.bf16.msra.mxu0 0
  %697 = vmatprep.subr.bf16.mxu0 0
  %698 = vmatpush1.bf16.msra.mxu0 0
  %699 = vmatprep.subr.bf16.mxu0 0
  %700 = vmatpush1.bf16.msra.mxu0 0
  %701 = vmatprep.subr.bf16.mxu0 0
  %702 = vmatpush1.bf16.msra.mxu0 0
  %703 = vmatprep.subr.bf16.mxu0 0
  %704 = vmatpush1.bf16.msra.mxu0 0
  %705 = vmatprep.subr.bf16.mxu0 0
  %706 = vmatpush1.bf16.msra.mxu0 0
  %707 = vmatprep.subr.bf16.mxu0 0
  %708 = vmatpush1.bf16.msra.mxu0 0
  %709 = vmatprep.subr.bf16.mxu0 0
  %710 = vmatpush1.bf16.msra.mxu0 0
  %711 = vmatprep.mubr.bf16.mxu0 0
  %712 = vmatmul.mubr.bf16.gmra.mrb[0].mxu0 %v677
  %v713 = vpop.f32.mrb[0].mxu0
  %v714 = vadd.f32 0.0, %v713
  %v715 = vpop.f32.mrb[0].mxu0
  %v716 = vpop.f32.mrb[0].mxu0
  %v717 = vadd.f32 0.0, %v716
  %v718 = vpop.f32.mrb[0].mxu0
  %719 = vdwg.mxu0
  %v720 = vadd.f32 %v672, %v714
  %v721 = vadd.f32 %v673, %v717
  %v722 = vmul.f32 %v720, 0.5
  %v723 = vmul.f32 %v721, 0.5
  %v724 = vtanh.pop %v722
  %v725 = vtanh.pop %v723
  %v726 = vmul.f32 %v724, 0.5
  %v727 = vmul.f32 %v725, 0.5
  %v728 = vadd.f32 %v726, 0.5
  %v729 = vadd.f32 %v727, 0.5
  %v730 = vtanh.pop %v720
  %v731 = vtanh.pop %v721
  %v732 = vmul.f32 %v728, %v642
  %v733 = vmul.f32 %v729, %v643
  %736 = vrot.lane.b32.xlu0 %v730, 64
  %v737 = vpop.permute.xlu0 %736
  %738 = vrot.lane.b32.xlu0 %v731, 64
  %v739 = vpop.permute.xlu0 %738
  %v742 = vmul.f32 %v728, %v737
  %v743 = vmul.f32 %v729, %v739
  %746 = vrot.lane.b32.xlu0 %v742, 32
  %v747 = vpop.permute.xlu0 %746
  %748 = vrot.lane.b32.xlu0 %v743, 32
  %v749 = vpop.permute.xlu0 %748
  %v752 = vadd.f32 %v732, %v747
  %v753 = vadd.f32 %v733, %v749
  %v754 = vtanh.pop %v752
  %v755 = vtanh.pop %v753
  %758 = vrot.lane.b32.xlu0 %v754, 64
  %v759 = vpop.permute.xlu0 %758
  %760 = vrot.lane.b32.xlu0 %v755, 64
  %v761 = vpop.permute.xlu0 %760
  %v764 = vmul.f32 %v728, %v759
  %v765 = vmul.f32 %v729, %v761
  %v766 = vpack.c.bf16 %v765, %v764
  %v768 = vunpack.c.l.b16 %v766
  %v769 = vunpack.c.h.b16 %v766
  %v770 = vpack.c.b16 %v768, %v768
  %v771 = vpack.c.b16 %v769, %v769
  %772 = vrot.lane.b32.xlu0 %v770, 32
  %v773 = vpop.permute.xlu0 %772
  %774 = vrot.lane.b32.xlu0 %v771, 32
  %v775 = vpop.permute.xlu0 %774
  %s778 = scalar_lea.vmem %s4, 32
  %779 = vst.msk [vmem:[%s778] sm:$0xf] %vm338, %v773
  %780 = vst.msk [vmem:[%s778 + $0x4] sm:$0xf] %vm338, %v775
  %s781 = scalar_lea.vmem [#allocation2], 80
  %v782 = vld [vmem:[%s781] sm:$0xff]
  %v783 = vld [vmem:[%s781 + $0x8] sm:$0xff]
  %784 = vrot.lane.b32.xlu0 %v766, 32
  %v785 = vpop.permute.xlu0 %784
  %v787 = vsel %vm227, %v785, 0
  %789 = vmatprep.subr.bf16.mxu0 0
  %790 = vmatpush1.bf16.msra.mxu0 %v223
  %791 = vmatprep.subr.bf16.mxu0 0
  %792 = vmatpush1.bf16.msra.mxu0 %v224
  %793 = vmatprep.subr.bf16.mxu0 0
  %794 = vmatpush1.bf16.msra.mxu0 0
  %795 = vmatprep.subr.bf16.mxu0 0
  %796 = vmatpush1.bf16.msra.mxu0 0
  %797 = vmatprep.subr.bf16.mxu0 0
  %798 = vmatpush1.bf16.msra.mxu0 0
  %799 = vmatprep.subr.bf16.mxu0 0
  %800 = vmatpush1.bf16.msra.mxu0 0
  %801 = vmatprep.subr.bf16.mxu0 0
  %802 = vmatpush1.bf16.msra.mxu0 0
  %803 = vmatprep.subr.bf16.mxu0 0
  %804 = vmatpush1.bf16.msra.mxu0 0
  %805 = vmatprep.subr.bf16.mxu0 0
  %806 = vmatpush1.bf16.msra.mxu0 0
  %807 = vmatprep.subr.bf16.mxu0 0
  %808 = vmatpush1.bf16.msra.mxu0 0
  %809 = vmatprep.subr.bf16.mxu0 0
  %810 = vmatpush1.bf16.msra.mxu0 0
  %811 = vmatprep.subr.bf16.mxu0 0
  %812 = vmatpush1.bf16.msra.mxu0 0
  %813 = vmatprep.subr.bf16.mxu0 0
  %814 = vmatpush1.bf16.msra.mxu0 0
  %815 = vmatprep.subr.bf16.mxu0 0
  %816 = vmatpush1.bf16.msra.mxu0 0
  %817 = vmatprep.subr.bf16.mxu0 0
  %818 = vmatpush1.bf16.msra.mxu0 0
  %819 = vmatprep.subr.bf16.mxu0 0
  %820 = vmatpush1.bf16.msra.mxu0 0
  %821 = vmatprep.mubr.bf16.mxu0 0
  %822 = vmatmul.mubr.bf16.gmra.mrb[0].mxu0 %v787
  %v823 = vpop.f32.mrb[0].mxu0
  %v824 = vadd.f32 0.0, %v823
  %v825 = vpop.f32.mrb[0].mxu0
  %v826 = vpop.f32.mrb[0].mxu0
  %v827 = vadd.f32 0.0, %v826
  %v828 = vpop.f32.mrb[0].mxu0
  %829 = vdwg.mxu0
  %v830 = vadd.f32 %v782, %v824
  %v831 = vadd.f32 %v783, %v827
  %v832 = vmul.f32 %v830, 0.5
  %v833 = vmul.f32 %v831, 0.5
  %v834 = vtanh.pop %v832
  %v835 = vtanh.pop %v833
  %v836 = vmul.f32 %v834, 0.5
  %v837 = vmul.f32 %v835, 0.5
  %v838 = vadd.f32 %v836, 0.5
  %v839 = vadd.f32 %v837, 0.5
  %v840 = vtanh.pop %v830
  %v841 = vtanh.pop %v831
  %v842 = vmul.f32 %v838, %v752
  %v843 = vmul.f32 %v839, %v753
  %846 = vrot.lane.b32.xlu0 %v840, 64
  %v847 = vpop.permute.xlu0 %846
  %848 = vrot.lane.b32.xlu0 %v841, 64
  %v849 = vpop.permute.xlu0 %848
  %v852 = vmul.f32 %v838, %v847
  %v853 = vmul.f32 %v839, %v849
  %856 = vrot.lane.b32.xlu0 %v852, 32
  %v857 = vpop.permute.xlu0 %856
  %858 = vrot.lane.b32.xlu0 %v853, 32
  %v859 = vpop.permute.xlu0 %858
  %v862 = vadd.f32 %v842, %v857
  %v863 = vadd.f32 %v843, %v859
  %v864 = vtanh.pop %v862
  %v865 = vtanh.pop %v863
  %868 = vrot.lane.b32.xlu0 %v864, 64
  %v869 = vpop.permute.xlu0 %868
  %870 = vrot.lane.b32.xlu0 %v865, 64
  %v871 = vpop.permute.xlu0 %870
  %v874 = vmul.f32 %v838, %v869
  %v875 = vmul.f32 %v839, %v871
  %v876 = vpack.c.bf16 %v875, %v874
  %v878 = vunpack.c.l.b16 %v876
  %v879 = vunpack.c.h.b16 %v876
  %v880 = vpack.c.b16 %v878, %v878
  %v881 = vpack.c.b16 %v879, %v879
  %882 = vrot.lane.b32.xlu0 %v880, 32
  %v883 = vpop.permute.xlu0 %882
  %884 = vrot.lane.b32.xlu0 %v881, 32
  %v885 = vpop.permute.xlu0 %884
  %s888 = scalar_lea.vmem %s4, 40
  %889 = vst.msk [vmem:[%s888] sm:$0xf] %vm338, %v883
  %890 = vst.msk [vmem:[%s888 + $0x4] sm:$0xf] %vm338, %v885
  %s891 = scalar_lea.vmem [#allocation2], 96
  %v892 = vld [vmem:[%s891] sm:$0xff]
  %v893 = vld [vmem:[%s891 + $0x8] sm:$0xff]
  %894 = vrot.lane.b32.xlu0 %v876, 32
  %v895 = vpop.permute.xlu0 %894
  %v897 = vsel %vm227, %v895, 0
  %899 = vmatprep.subr.bf16.mxu0 0
  %900 = vmatpush1.bf16.msra.mxu0 %v223
  %901 = vmatprep.subr.bf16.mxu0 0
  %902 = vmatpush1.bf16.msra.mxu0 %v224
  %903 = vmatprep.subr.bf16.mxu0 0
  %904 = vmatpush1.bf16.msra.mxu0 0
  %905 = vmatprep.subr.bf16.mxu0 0
  %906 = vmatpush1.bf16.msra.mxu0 0
  %907 = vmatprep.subr.bf16.mxu0 0
  %908 = vmatpush1.bf16.msra.mxu0 0
  %909 = vmatprep.subr.bf16.mxu0 0
  %910 = vmatpush1.bf16.msra.mxu0 0
  %911 = vmatprep.subr.bf16.mxu0 0
  %912 = vmatpush1.bf16.msra.mxu0 0
  %913 = vmatprep.subr.bf16.mxu0 0
  %914 = vmatpush1.bf16.msra.mxu0 0
  %915 = vmatprep.subr.bf16.mxu0 0
  %916 = vmatpush1.bf16.msra.mxu0 0
  %917 = vmatprep.subr.bf16.mxu0 0
  %918 = vmatpush1.bf16.msra.mxu0 0
  %919 = vmatprep.subr.bf16.mxu0 0
  %920 = vmatpush1.bf16.msra.mxu0 0
  %921 = vmatprep.subr.bf16.mxu0 0
  %922 = vmatpush1.bf16.msra.mxu0 0
  %923 = vmatprep.subr.bf16.mxu0 0
  %924 = vmatpush1.bf16.msra.mxu0 0
  %925 = vmatprep.subr.bf16.mxu0 0
  %926 = vmatpush1.bf16.msra.mxu0 0
  %927 = vmatprep.subr.bf16.mxu0 0
  %928 = vmatpush1.bf16.msra.mxu0 0
  %929 = vmatprep.subr.bf16.mxu0 0
  %930 = vmatpush1.bf16.msra.mxu0 0
  %931 = vmatprep.mubr.bf16.mxu0 0
  %932 = vmatmul.mubr.bf16.gmra.mrb[0].mxu0 %v897
  %v933 = vpop.f32.mrb[0].mxu0
  %v934 = vadd.f32 0.0, %v933
  %v935 = vpop.f32.mrb[0].mxu0
  %v936 = vpop.f32.mrb[0].mxu0
  %v937 = vadd.f32 0.0, %v936
  %v938 = vpop.f32.mrb[0].mxu0
  %939 = vdwg.mxu0
  %v940 = vadd.f32 %v892, %v934
  %v941 = vadd.f32 %v893, %v937
  %v942 = vmul.f32 %v940, 0.5
  %v943 = vmul.f32 %v941, 0.5
  %v944 = vtanh.pop %v942
  %v945 = vtanh.pop %v943
  %v946 = vmul.f32 %v944, 0.5
  %v947 = vmul.f32 %v945, 0.5
  %v948 = vadd.f32 %v946, 0.5
  %v949 = vadd.f32 %v947, 0.5
  %v950 = vtanh.pop %v940
  %v951 = vtanh.pop %v941
  %v952 = vmul.f32 %v948, %v862
  %v953 = vmul.f32 %v949, %v863
  %956 = vrot.lane.b32.xlu0 %v950, 64
  %v957 = vpop.permute.xlu0 %956
  %958 = vrot.lane.b32.xlu0 %v951, 64
  %v959 = vpop.permute.xlu0 %958
  %v962 = vmul.f32 %v948, %v957
  %v963 = vmul.f32 %v949, %v959
  %966 = vrot.lane.b32.xlu0 %v962, 32
  %v967 = vpop.permute.xlu0 %966
  %968 = vrot.lane.b32.xlu0 %v963, 32
  %v969 = vpop.permute.xlu0 %968
  %v972 = vadd.f32 %v952, %v967
  %v973 = vadd.f32 %v953, %v969
  %v974 = vtanh.pop %v972
  %v975 = vtanh.pop %v973
  %978 = vrot.lane.b32.xlu0 %v974, 64
  %v979 = vpop.permute.xlu0 %978
  %980 = vrot.lane.b32.xlu0 %v975, 64
  %v981 = vpop.permute.xlu0 %980
  %v984 = vmul.f32 %v948, %v979
  %v985 = vmul.f32 %v949, %v981
  %v986 = vpack.c.bf16 %v985, %v984
  %v988 = vunpack.c.l.b16 %v986
  %v989 = vunpack.c.h.b16 %v986
  %v990 = vpack.c.b16 %v988, %v988
  %v991 = vpack.c.b16 %v989, %v989
  %992 = vrot.lane.b32.xlu0 %v990, 32
  %v993 = vpop.permute.xlu0 %992
  %994 = vrot.lane.b32.xlu0 %v991, 32
  %v995 = vpop.permute.xlu0 %994
  %s998 = scalar_lea.vmem %s4, 48
  %999 = vst.msk [vmem:[%s998] sm:$0xf] %vm338, %v993
  %1000 = vst.msk [vmem:[%s998 + $0x4] sm:$0xf] %vm338, %v995
  %s1001 = scalar_lea.vmem [#allocation2], 112
  %v1002 = vld [vmem:[%s1001] sm:$0xff]
  %v1003 = vld [vmem:[%s1001 + $0x8] sm:$0xff]
  %1004 = vrot.lane.b32.xlu0 %v986, 32
  %v1005 = vpop.permute.xlu0 %1004
  %v1007 = vsel %vm227, %v1005, 0
  %1009 = vmatprep.subr.bf16.mxu0 0
  %1010 = vmatpush1.bf16.msra.mxu0 %v223
  %1011 = vmatprep.subr.bf16.mxu0 0
  %1012 = vmatpush1.bf16.msra.mxu0 %v224
  %1013 = vmatprep.subr.bf16.mxu0 0
  %1014 = vmatpush1.bf16.msra.mxu0 0
  %1015 = vmatprep.subr.bf16.mxu0 0
  %1016 = vmatpush1.bf16.msra.mxu0 0
  %1017 = vmatprep.subr.bf16.mxu0 0
  %1018 = vmatpush1.bf16.msra.mxu0 0
  %1019 = vmatprep.subr.bf16.mxu0 0
  %1020 = vmatpush1.bf16.msra.mxu0 0
  %1021 = vmatprep.subr.bf16.mxu0 0
  %1022 = vmatpush1.bf16.msra.mxu0 0
  %1023 = vmatprep.subr.bf16.mxu0 0
  %1024 = vmatpush1.bf16.msra.mxu0 0
  %1025 = vmatprep.subr.bf16.mxu0 0
  %1026 = vmatpush1.bf16.msra.mxu0 0
  %1027 = vmatprep.subr.bf16.mxu0 0
  %1028 = vmatpush1.bf16.msra.mxu0 0
  %1029 = vmatprep.subr.bf16.mxu0 0
  %1030 = vmatpush1.bf16.msra.mxu0 0
  %1031 = vmatprep.subr.bf16.mxu0 0
  %1032 = vmatpush1.bf16.msra.mxu0 0
  %1033 = vmatprep.subr.bf16.mxu0 0
  %1034 = vmatpush1.bf16.msra.mxu0 0
  %1035 = vmatprep.subr.bf16.mxu0 0
  %1036 = vmatpush1.bf16.msra.mxu0 0
  %1037 = vmatprep.subr.bf16.mxu0 0
  %1038 = vmatpush1.bf16.msra.mxu0 0
  %1039 = vmatprep.subr.bf16.mxu0 0
  %1040 = vmatpush1.bf16.msra.mxu0 0
  %1041 = vmatprep.mubr.bf16.mxu0 0
  %1042 = vmatmul.mubr.bf16.gmra.mrb[0].mxu0 %v1007
  %v1043 = vpop.f32.mrb[0].mxu0
  %v1044 = vadd.f32 0.0, %v1043
  %v1045 = vpop.f32.mrb[0].mxu0
  %v1046 = vpop.f32.mrb[0].mxu0
  %v1047 = vadd.f32 0.0, %v1046
  %v1048 = vpop.f32.mrb[0].mxu0
  %1049 = vdwg.mxu0
  %v1050 = vadd.f32 %v1002, %v1044
  %v1051 = vadd.f32 %v1003, %v1047
  %v1052 = vmul.f32 %v1050, 0.5
  %v1053 = vmul.f32 %v1051, 0.5
  %v1054 = vtanh.pop %v1052
  %v1055 = vtanh.pop %v1053
  %v1056 = vmul.f32 %v1054, 0.5
  %v1057 = vmul.f32 %v1055, 0.5
  %v1058 = vadd.f32 %v1056, 0.5
  %v1059 = vadd.f32 %v1057, 0.5
  %v1060 = vtanh.pop %v1050
  %v1061 = vtanh.pop %v1051
  %v1062 = vmul.f32 %v1058, %v972
  %v1063 = vmul.f32 %v1059, %v973
  %1066 = vrot.lane.b32.xlu0 %v1060, 64
  %v1067 = vpop.permute.xlu0 %1066
  %1068 = vrot.lane.b32.xlu0 %v1061, 64
  %v1069 = vpop.permute.xlu0 %1068
  %v1072 = vmul.f32 %v1058, %v1067
  %v1073 = vmul.f32 %v1059, %v1069
  %1076 = vrot.lane.b32.xlu0 %v1072, 32
  %v1077 = vpop.permute.xlu0 %1076
  %1078 = vrot.lane.b32.xlu0 %v1073, 32
  %v1079 = vpop.permute.xlu0 %1078
  %v1082 = vadd.f32 %v1062, %v1077
  %v1083 = vadd.f32 %v1063, %v1079
  %v1084 = vtanh.pop %v1082
  %v1085 = vtanh.pop %v1083
  %1088 = vrot.lane.b32.xlu0 %v1084, 64
  %v1089 = vpop.permute.xlu0 %1088
  %1090 = vrot.lane.b32.xlu0 %v1085, 64
  %v1091 = vpop.permute.xlu0 %1090
  %v1094 = vmul.f32 %v1058, %v1089
  %v1095 = vmul.f32 %v1059, %v1091
  %v1096 = vpack.c.bf16 %v1095, %v1094
  %v1098 = vunpack.c.l.b16 %v1096
  %v1099 = vunpack.c.h.b16 %v1096
  %v1100 = vpack.c.b16 %v1098, %v1098
  %v1101 = vpack.c.b16 %v1099, %v1099
  %1102 = vrot.lane.b32.xlu0 %v1100, 32
  %v1103 = vpop.permute.xlu0 %1102
  %1104 = vrot.lane.b32.xlu0 %v1101, 32
  %v1105 = vpop.permute.xlu0 %1104
  %s1108 = scalar_lea.vmem %s4, 56
  %1109 = vst.msk [vmem:[%s1108] sm:$0xf] %vm338, %v1103
  %1110 = vst.msk [vmem:[%s1108 + $0x4] sm:$0xf] %vm338, %v1105
  %1113 = vrot.lane.b32.xlu0 %v1094, 32
  %v1114 = vpop.permute.xlu0 %1113
  %1115 = vrot.lane.b32.xlu0 %v1095, 32
  %v1116 = vpop.permute.xlu0 %1115
  %1119 = vst.msk [vmem:[#allocation3] sm:$0xff] %vm227, %v1114
  %1120 = vst.msk [vmem:[#allocation3 + $0x8] sm:$0xff] %vm227, %v1116
  %1123 = vrot.lane.b32.xlu0 %v1082, 96
  %v1124 = vpop.permute.xlu0 %1123
  %1125 = vrot.lane.b32.xlu0 %v1083, 96
  %v1126 = vpop.permute.xlu0 %1125
  %1129 = vst.msk [vmem:[#allocation4] sm:$0xff] %vm227, %v1124
  %1130 = vst.msk [vmem:[#allocation4 + $0x8] sm:$0xff] %vm227, %v1126
  // Predicated region
  $region22: #{lstm_module_forward.2} parent=0 // pred_check
    _
  $region23: #{lstm_module_forward.2} parent=0 // pred_check_branch
    %1132 = sbr.rel (0) target = $region25
  $region24: #{lstm_module_forward.2} parent=0 // pred_region
    _
  $region25: #{lstm_module_forward.2} parent=0 // pred_fallthru
    _
  // Predicated region
  $region26: #{lstm_module_forward.2} parent=0 // pred_check
    _
  $region27: #{lstm_module_forward.2} parent=0 // pred_check_branch
    %1134 = sbr.rel (0) target = $region29
  $region28: #{lstm_module_forward.2} parent=0 // pred_region
    _
  $region29: #{lstm_module_forward.2} parent=0 // pred_fallthru
    _

// kernel: lstm_module_forward.3
$region0: #{lstm_module_forward.3}
  #allocation0 [shape = 'u32[]', space=smem, size = 0x4, offset = 0x4, fixed_abs, tag = 'smem constant byte address 0x4 - core index']
  #allocation1 [shape = 'u32[144,128]{1,0:T(1,128)}', space=vmem, size = 0x12000, scoped, tag = 'internal scratch']
  #allocation2 [shape = 'f32[128,128]{1,0:T(8,128)}', space=vmem, size = 0x10000, scoped, tag = 'scratch operand']
  #allocation3 [shape = 'f32[16,32]{1,0:T(8,128)}', space=vmem, size = 0x2000, scoped, tag = 'scratch operand']
  #allocation4 [shape = 'f32[16,32]{1,0:T(8,128)}', space=vmem, size = 0x2000, scoped, tag = 'scratch operand']
  %s0 = inlined_call_operand.vmem [shape: bf16[8,16,32], index: 0, kind: input, shape index: {}]
  %s1 = inlined_call_operand.vmem [shape: bf16[32,128], index: 1, kind: input, shape index: {}]
  %s2 = inlined_call_operand.vmem [shape: bf16[32,128], index: 2, kind: input, shape index: {}]
  %s3 = inlined_call_operand.vmem [shape: f32[1,128], index: 3, kind: input, shape index: {}]
  %s4 = inlined_call_operand.vmem [shape: bf16[32,4], index: 4, kind: input, shape index: {}]
  %s5 = inlined_call_operand.vmem [shape: f32[1,4], index: 5, kind: input, shape index: {}]
  %s6 = inlined_call_operand.vmem [shape: f32[16,4], index: 6, kind: output, shape index: {}]
  %s7 = sld [smem:[#allocation0]]
  $region42: #{lstm_module_forward.3} parent=0
    _
  %s9 = ssub.s32 1, %s7
  %s10 = scalar_select 0, %s9, %s7
  // Predicated region
  $region2: #{lstm_module_forward.3} parent=0 // pred_check
    _
  $region3: #{lstm_module_forward.3} parent=0 // pred_check_branch
    %12 = sbr.rel (0) target = $region5
  $region4: #{lstm_module_forward.3} parent=0 // pred_region
    _
  $region5: #{lstm_module_forward.3} parent=0 // pred_fallthru
    _
  // Predicated region
  $region6: #{lstm_module_forward.3} parent=0 // pred_check
    _
  $region7: #{lstm_module_forward.3} parent=0 // pred_check_branch
    %14 = sbr.rel (0) target = $region9
  $region8: #{lstm_module_forward.3} parent=0 // pred_region
    _
  $region9: #{lstm_module_forward.3} parent=0 // pred_fallthru
    _
  // Predicated region
  $region10: #{lstm_module_forward.3} parent=0 // pred_check
    _
  $region11: #{lstm_module_forward.3} parent=0 // pred_check_branch
    %16 = sbr.rel (0) target = $region13
  $region12: #{lstm_module_forward.3} parent=0 // pred_region
    _
  $region13: #{lstm_module_forward.3} parent=0 // pred_fallthru
    _
  // Predicated region
  $region14: #{lstm_module_forward.3} parent=0 // pred_check
    _
  $region15: #{lstm_module_forward.3} parent=0 // pred_check_branch
    %18 = sbr.rel (0) target = $region17
  $region16: #{lstm_module_forward.3} parent=0 // pred_region
    _
  $region17: #{lstm_module_forward.3} parent=0 // pred_fallthru
    _
  // Predicated region
  $region18: #{lstm_module_forward.3} parent=0 // pred_check
    _
  $region19: #{lstm_module_forward.3} parent=0 // pred_check_branch
    %20 = sbr.rel (0) target = $region21
  $region20: #{lstm_module_forward.3} parent=0 // pred_region
    _
  $region21: #{lstm_module_forward.3} parent=0 // pred_fallthru
    _
  // Predicated region
  $region22: #{lstm_module_forward.3} parent=0 // pred_check
    _
  $region23: #{lstm_module_forward.3} parent=0 // pred_check_branch
    %22 = sbr.rel (0) target = $region25
  $region24: #{lstm_module_forward.3} parent=0 // pred_region
    _
  $region25: #{lstm_module_forward.3} parent=0 // pred_fallthru
    _
  %p24 = scmp.eq.s32.totalorder 0, 0
  // Predicated region
  $region26: #{lstm_module_forward.3} parent=0 // pred_check
    %p25 = pneg %p24
  $region27: #{lstm_module_forward.3} parent=0 // pred_check_branch
    %27 = sbr.rel (%p25) target = $region29
  $region28: #{lstm_module_forward.3} parent=0 // pred_region
    %vm28 = vcmask 261120
    %29 = vst.msk [vmem:[#allocation3] sm:$0xff] %vm28, 0.0
    %30 = vst.msk [vmem:[#allocation3 + $0x8] sm:$0xff] %vm28, 0.0
    %31 = vst.msk [vmem:[#allocation4] sm:$0xff] %vm28, 0.0
    %32 = vst.msk [vmem:[#allocation4 + $0x8] sm:$0xff] %vm28, 0.0
  $region29: #{lstm_module_forward.3} parent=0 // pred_fallthru
    _
  %v33 = vld [vmem:[%s0] sm:$0xf]
  %v34 = vld [vmem:[%s0 + $0x4] sm:$0xf]
  %v35 = vld [vmem:[%s0 + $0x8] sm:$0xf]
  %v36 = vld [vmem:[%s0 + $0xc] sm:$0xf]
  %v37 = vld [vmem:[%s0 + $0x10] sm:$0xf]
  %v38 = vld [vmem:[%s0 + $0x14] sm:$0xf]
  %v39 = vld [vmem:[%s0 + $0x18] sm:$0xf]
  %v40 = vld [vmem:[%s0 + $0x1c] sm:$0xf]
  %v41 = vld [vmem:[%s0 + $0x20] sm:$0xf]
  %v42 = vld [vmem:[%s0 + $0x24] sm:$0xf]
  %v43 = vld [vmem:[%s0 + $0x28] sm:$0xf]
  %v44 = vld [vmem:[%s0 + $0x2c] sm:$0xf]
  %v45 = vld [vmem:[%s0 + $0x30] sm:$0xf]
  %v46 = vld [vmem:[%s0 + $0x34] sm:$0xf]
  %v47 = vld [vmem:[%s0 + $0x38] sm:$0xf]
  %v48 = vld [vmem:[%s0 + $0x3c] sm:$0xf]
  %v49 = vld [vmem:[%s1] sm:$0xf]
  %v50 = vld [vmem:[%s1 + $0x4] sm:$0xf]
  %v51 = vld [vmem:[%s1 + $0x8] sm:$0xf]
  %v52 = vld [vmem:[%s1 + $0xc] sm:$0xf]
  %v53 = vld [vmem:[%s3] sm:$0x1]
  %v55 = vlaneseq
  %v56 = vshrl.u32 %v55, 7
  %v57 = vsub.s32 0, %v56
  %v58 = vrot.slane %v53, %v57
  %v76 = vunpack.c.l.b16 %v33
  %v77 = vunpack.c.l.b16 %v34
  %v78 = vunpack.c.l.b16 %v35
  %v79 = vunpack.c.l.b16 %v36
  %v80 = vunpack.c.l.b16 %v37
  %v81 = vunpack.c.l.b16 %v38
  %v82 = vunpack.c.l.b16 %v39
  %v83 = vunpack.c.l.b16 %v40
  %v84 = vunpack.c.l.b16 %v41
  %v85 = vunpack.c.l.b16 %v42
  %v86 = vunpack.c.l.b16 %v43
  %v87 = vunpack.c.l.b16 %v44
  %v88 = vunpack.c.l.b16 %v45
  %v89 = vunpack.c.l.b16 %v46
  %v90 = vunpack.c.l.b16 %v47
  %v91 = vunpack.c.l.b16 %v48
  %v92 = vpack.c.b16 %v77, %v76
  %v93 = vpack.c.b16 %v79, %v78
  %v94 = vpack.c.b16 %v81, %v80
  %v95 = vpack.c.b16 %v83, %v82
  %v96 = vpack.c.b16 %v85, %v84
  %v97 = vpack.c.b16 %v87, %v86
  %v98 = vpack.c.b16 %v89, %v88
  %v99 = vpack.c.b16 %v91, %v90
  %v104 = vunpack.c.l.b16 %v49
  %v105 = vunpack.c.l.b16 %v50
  %v106 = vunpack.c.l.b16 %v51
  %v107 = vunpack.c.l.b16 %v52
  %v108 = vpack.c.b16 %v105, %v104
  %v109 = vpack.c.b16 %v107, %v106
  %vm112 = vcmask 261120
  %v114 = vsel %vm112, %v92, 0
  %v117 = vsel %vm112, %v93, 0
  %v120 = vsel %vm112, %v94, 0
  %v123 = vsel %vm112, %v95, 0
  %v126 = vsel %vm112, %v96, 0
  %v129 = vsel %vm112, %v97, 0
  %v132 = vsel %vm112, %v98, 0
  %v135 = vsel %vm112, %v99, 0
  %137 = vmatprep.subr.bf16.mxu0 0
  %138 = vmatpush1.bf16.msra.mxu0 %v108
  %139 = vmatprep.subr.bf16.mxu0 0
  %140 = vmatpush1.bf16.msra.mxu0 %v109
  %141 = vmatprep.subr.bf16.mxu0 0
  %142 = vmatpush1.bf16.msra.mxu0 0
  %143 = vmatprep.subr.bf16.mxu0 0
  %144 = vmatpush1.bf16.msra.mxu0 0
  %145 = vmatprep.subr.bf16.mxu0 0
  %146 = vmatpush1.bf16.msra.mxu0 0
  %147 = vmatprep.subr.bf16.mxu0 0
  %148 = vmatpush1.bf16.msra.mxu0 0
  %149 = vmatprep.subr.bf16.mxu0 0
  %150 = vmatpush1.bf16.msra.mxu0 0
  %151 = vmatprep.subr.bf16.mxu0 0
  %152 = vmatpush1.bf16.msra.mxu0 0
  %153 = vmatprep.subr.bf16.mxu0 0
  %154 = vmatpush1.bf16.msra.mxu0 0
  %155 = vmatprep.subr.bf16.mxu0 0
  %156 = vmatpush1.bf16.msra.mxu0 0
  %157 = vmatprep.subr.bf16.mxu0 0
  %158 = vmatpush1.bf16.msra.mxu0 0
  %159 = vmatprep.subr.bf16.mxu0 0
  %160 = vmatpush1.bf16.msra.mxu0 0
  %161 = vmatprep.subr.bf16.mxu0 0
  %162 = vmatpush1.bf16.msra.mxu0 0
  %163 = vmatprep.subr.bf16.mxu0 0
  %164 = vmatpush1.bf16.msra.mxu0 0
  %165 = vmatprep.subr.bf16.mxu0 0
  %166 = vmatpush1.bf16.msra.mxu0 0
  %167 = vmatprep.subr.bf16.mxu0 0
  %168 = vmatpush1.bf16.msra.mxu0 0
  %169 = vmatprep.mubr.bf16.mxu0 0
  %170 = vmatmul.mubr.bf16.gmra.mrb[0].mxu0 %v114
  %v171 = vpop.f32.mrb[0].mxu0
  %v172 = vadd.f32 %v58, %v171
  %v173 = vpop.f32.mrb[0].mxu0
  %v174 = vpop.f32.mrb[0].mxu0
  %v175 = vadd.f32 %v58, %v174
  %v176 = vpop.f32.mrb[0].mxu0
  %177 = vmatprep.mubr.bf16.mxu0 0
  %178 = vmatmul.mubr.bf16.gmra.mrb[0].mxu0 %v117
  %v179 = vpop.f32.mrb[0].mxu0
  %v180 = vadd.f32 %v58, %v179
  %v181 = vpop.f32.mrb[0].mxu0
  %v182 = vpop.f32.mrb[0].mxu0
  %v183 = vadd.f32 %v58, %v182
  %v184 = vpop.f32.mrb[0].mxu0
  %185 = vmatprep.mubr.bf16.mxu0 0
  %186 = vmatmul.mubr.bf16.gmra.mrb[0].mxu0 %v120
  %v187 = vpop.f32.mrb[0].mxu0
  %v188 = vadd.f32 %v58, %v187
  %v189 = vpop.f32.mrb[0].mxu0
  %v190 = vpop.f32.mrb[0].mxu0
  %v191 = vadd.f32 %v58, %v190
  %v192 = vpop.f32.mrb[0].mxu0
  %193 = vmatprep.mubr.bf16.mxu0 0
  %194 = vmatmul.mubr.bf16.gmra.mrb[0].mxu0 %v123
  %v195 = vpop.f32.mrb[0].mxu0
  %v196 = vadd.f32 %v58, %v195
  %v197 = vpop.f32.mrb[0].mxu0
  %v198 = vpop.f32.mrb[0].mxu0
  %v199 = vadd.f32 %v58, %v198
  %v200 = vpop.f32.mrb[0].mxu0
  %201 = vmatprep.mubr.bf16.mxu0 0
  %202 = vmatmul.mubr.bf16.gmra.mrb[0].mxu0 %v126
  %v203 = vpop.f32.mrb[0].mxu0
  %v204 = vadd.f32 %v58, %v203
  %v205 = vpop.f32.mrb[0].mxu0
  %v206 = vpop.f32.mrb[0].mxu0
  %v207 = vadd.f32 %v58, %v206
  %v208 = vpop.f32.mrb[0].mxu0
  %209 = vmatprep.mubr.bf16.mxu0 0
  %210 = vmatmul.mubr.bf16.gmra.mrb[0].mxu0 %v129
  %v211 = vpop.f32.mrb[0].mxu0
  %v212 = vadd.f32 %v58, %v211
  %v213 = vpop.f32.mrb[0].mxu0
  %v214 = vpop.f32.mrb[0].mxu0
  %v215 = vadd.f32 %v58, %v214
  %v216 = vpop.f32.mrb[0].mxu0
  %217 = vmatprep.mubr.bf16.mxu0 0
  %218 = vmatmul.mubr.bf16.gmra.mrb[0].mxu0 %v132
  %v219 = vpop.f32.mrb[0].mxu0
  %v220 = vadd.f32 %v58, %v219
  %v221 = vpop.f32.mrb[0].mxu0
  %v222 = vpop.f32.mrb[0].mxu0
  %v223 = vadd.f32 %v58, %v222
  %v224 = vpop.f32.mrb[0].mxu0
  %225 = vmatprep.mubr.bf16.mxu0 0
  %226 = vmatmul.mubr.bf16.gmra.mrb[0].mxu0 %v135
  %v227 = vpop.f32.mrb[0].mxu0
  %v228 = vadd.f32 %v58, %v227
  %v229 = vpop.f32.mrb[0].mxu0
  %v230 = vpop.f32.mrb[0].mxu0
  %v231 = vadd.f32 %v58, %v230
  %v232 = vpop.f32.mrb[0].mxu0
  %233 = vdwg.mxu0
  %234 = vst [vmem:[#allocation2] sm:$0xff] %v172
  %235 = vst [vmem:[#allocation2 + $0x8] sm:$0xff] %v175
  %236 = vst [vmem:[#allocation2 + $0x10] sm:$0xff] %v180
  %237 = vst [vmem:[#allocation2 + $0x18] sm:$0xff] %v183
  %238 = vst [vmem:[#allocation2 + $0x20] sm:$0xff] %v188
  %239 = vst [vmem:[#allocation2 + $0x28] sm:$0xff] %v191
  %240 = vst [vmem:[#allocation2 + $0x30] sm:$0xff] %v196
  %241 = vst [vmem:[#allocation2 + $0x38] sm:$0xff] %v199
  %242 = vst [vmem:[#allocation2 + $0x40] sm:$0xff] %v204
  %243 = vst [vmem:[#allocation2 + $0x48] sm:$0xff] %v207
  %244 = vst [vmem:[#allocation2 + $0x50] sm:$0xff] %v212
  %245 = vst [vmem:[#allocation2 + $0x58] sm:$0xff] %v215
  %246 = vst [vmem:[#allocation2 + $0x60] sm:$0xff] %v220
  %247 = vst [vmem:[#allocation2 + $0x68] sm:$0xff] %v223
  %248 = vst [vmem:[#allocation2 + $0x70] sm:$0xff] %v228
  %249 = vst [vmem:[#allocation2 + $0x78] sm:$0xff] %v231
  %v250 = vld [vmem:[%s2] sm:$0xf]
  %v251 = vld [vmem:[%s2 + $0x4] sm:$0xf]
  %v252 = vld [vmem:[%s2 + $0x8] sm:$0xf]
  %v253 = vld [vmem:[%s2 + $0xc] sm:$0xf]
  %v254 = vld [vmem:[#allocation3] sm:$0xff]
  %v255 = vld [vmem:[#allocation3 + $0x8] sm:$0xff]
  %v256 = vld [vmem:[#allocation4] sm:$0xff]
  %v257 = vld [vmem:[#allocation4 + $0x8] sm:$0xff]
  %v258 = vld [vmem:[#allocation2] sm:$0xff]
  %v259 = vld [vmem:[#allocation2 + $0x8] sm:$0xff]
  %v260 = vpack.c.bf16 %v255, %v254
  %v265 = vunpack.c.l.b16 %v250
  %v266 = vunpack.c.l.b16 %v251
  %v267 = vunpack.c.l.b16 %v252
  %v268 = vunpack.c.l.b16 %v253
  %v269 = vpack.c.b16 %v266, %v265
  %v270 = vpack.c.b16 %v268, %v267
  %v274 = vsel %vm112, %v260, 0
  %276 = vmatprep.subr.bf16.mxu0 0
  %277 = vmatpush1.bf16.msra.mxu0 %v269
  %278 = vmatprep.subr.bf16.mxu0 0
  %279 = vmatpush1.bf16.msra.mxu0 %v270
  %280 = vmatprep.subr.bf16.mxu0 0
  %281 = vmatpush1.bf16.msra.mxu0 0
  %282 = vmatprep.subr.bf16.mxu0 0
  %283 = vmatpush1.bf16.msra.mxu0 0
  %284 = vmatprep.subr.bf16.mxu0 0
  %285 = vmatpush1.bf16.msra.mxu0 0
  %286 = vmatprep.subr.bf16.mxu0 0
  %287 = vmatpush1.bf16.msra.mxu0 0
  %288 = vmatprep.subr.bf16.mxu0 0
  %289 = vmatpush1.bf16.msra.mxu0 0
  %290 = vmatprep.subr.bf16.mxu0 0
  %291 = vmatpush1.bf16.msra.mxu0 0
  %292 = vmatprep.subr.bf16.mxu0 0
  %293 = vmatpush1.bf16.msra.mxu0 0
  %294 = vmatprep.subr.bf16.mxu0 0
  %295 = vmatpush1.bf16.msra.mxu0 0
  %296 = vmatprep.subr.bf16.mxu0 0
  %297 = vmatpush1.bf16.msra.mxu0 0
  %298 = vmatprep.subr.bf16.mxu0 0
  %299 = vmatpush1.bf16.msra.mxu0 0
  %300 = vmatprep.subr.bf16.mxu0 0
  %301 = vmatpush1.bf16.msra.mxu0 0
  %302 = vmatprep.subr.bf16.mxu0 0
  %303 = vmatpush1.bf16.msra.mxu0 0
  %304 = vmatprep.subr.bf16.mxu0 0
  %305 = vmatpush1.bf16.msra.mxu0 0
  %306 = vmatprep.subr.bf16.mxu0 0
  %307 = vmatpush1.bf16.msra.mxu0 0
  %308 = vmatprep.mubr.bf16.mxu0 0
  %309 = vmatmul.mubr.bf16.gmra.mrb[0].mxu0 %v274
  %v310 = vpop.f32.mrb[0].mxu0
  %v311 = vadd.f32 0.0, %v310
  %v312 = vpop.f32.mrb[0].mxu0
  %v313 = vpop.f32.mrb[0].mxu0
  %v314 = vadd.f32 0.0, %v313
  %v315 = vpop.f32.mrb[0].mxu0
  %316 = vdwg.mxu0
  %v317 = vadd.f32 %v258, %v311
  %v318 = vadd.f32 %v259, %v314
  %v319 = vmul.f32 %v317, 0.5
  %v320 = vmul.f32 %v318, 0.5
  %v321 = vtanh.pop %v319
  %v322 = vtanh.pop %v320
  %v323 = vmul.f32 %v321, 0.5
  %v324 = vmul.f32 %v322, 0.5
  %v325 = vadd.f32 %v323, 0.5
  %v326 = vadd.f32 %v324, 0.5
  %v327 = vtanh.pop %v317
  %v328 = vtanh.pop %v318
  %331 = vrot.lane.b32.xlu0 %v256, 32
  %v332 = vpop.permute.xlu0 %331
  %333 = vrot.lane.b32.xlu0 %v257, 32
  %v334 = vpop.permute.xlu0 %333
  %v337 = vmul.f32 %v325, %v332
  %v338 = vmul.f32 %v326, %v334
  %341 = vrot.lane.b32.xlu0 %v327, 64
  %v342 = vpop.permute.xlu0 %341
  %343 = vrot.lane.b32.xlu0 %v328, 64
  %v344 = vpop.permute.xlu0 %343
  %v347 = vmul.f32 %v325, %v342
  %v348 = vmul.f32 %v326, %v344
  %351 = vrot.lane.b32.xlu0 %v347, 32
  %v352 = vpop.permute.xlu0 %351
  %353 = vrot.lane.b32.xlu0 %v348, 32
  %v354 = vpop.permute.xlu0 %353
  %v357 = vadd.f32 %v337, %v352
  %v358 = vadd.f32 %v338, %v354
  %v359 = vtanh.pop %v357
  %v360 = vtanh.pop %v358
  %363 = vrot.lane.b32.xlu0 %v359, 64
  %v364 = vpop.permute.xlu0 %363
  %365 = vrot.lane.b32.xlu0 %v360, 64
  %v366 = vpop.permute.xlu0 %365
  %v369 = vmul.f32 %v325, %v364
  %v370 = vmul.f32 %v326, %v366
  %s371 = scalar_lea.vmem [#allocation2], 16
  %v372 = vld [vmem:[%s371] sm:$0xff]
  %v373 = vld [vmem:[%s371 + $0x8] sm:$0xff]
  %v374 = vpack.c.bf16 %v370, %v369
  %376 = vrot.lane.b32.xlu0 %v374, 32
  %v377 = vpop.permute.xlu0 %376
  %v379 = vsel %vm112, %v377, 0
  %381 = vmatprep.subr.bf16.mxu0 0
  %382 = vmatpush1.bf16.msra.mxu0 %v269
  %383 = vmatprep.subr.bf16.mxu0 0
  %384 = vmatpush1.bf16.msra.mxu0 %v270
  %385 = vmatprep.subr.bf16.mxu0 0
  %386 = vmatpush1.bf16.msra.mxu0 0
  %387 = vmatprep.subr.bf16.mxu0 0
  %388 = vmatpush1.bf16.msra.mxu0 0
  %389 = vmatprep.subr.bf16.mxu0 0
  %390 = vmatpush1.bf16.msra.mxu0 0
  %391 = vmatprep.subr.bf16.mxu0 0
  %392 = vmatpush1.bf16.msra.mxu0 0
  %393 = vmatprep.subr.bf16.mxu0 0
  %394 = vmatpush1.bf16.msra.mxu0 0
  %395 = vmatprep.subr.bf16.mxu0 0
  %396 = vmatpush1.bf16.msra.mxu0 0
  %397 = vmatprep.subr.bf16.mxu0 0
  %398 = vmatpush1.bf16.msra.mxu0 0
  %399 = vmatprep.subr.bf16.mxu0 0
  %400 = vmatpush1.bf16.msra.mxu0 0
  %401 = vmatprep.subr.bf16.mxu0 0
  %402 = vmatpush1.bf16.msra.mxu0 0
  %403 = vmatprep.subr.bf16.mxu0 0
  %404 = vmatpush1.bf16.msra.mxu0 0
  %405 = vmatprep.subr.bf16.mxu0 0
  %406 = vmatpush1.bf16.msra.mxu0 0
  %407 = vmatprep.subr.bf16.mxu0 0
  %408 = vmatpush1.bf16.msra.mxu0 0
  %409 = vmatprep.subr.bf16.mxu0 0
  %410 = vmatpush1.bf16.msra.mxu0 0
  %411 = vmatprep.subr.bf16.mxu0 0
  %412 = vmatpush1.bf16.msra.mxu0 0
  %413 = vmatprep.mubr.bf16.mxu0 0
  %414 = vmatmul.mubr.bf16.gmra.mrb[0].mxu0 %v379
  %v415 = vpop.f32.mrb[0].mxu0
  %v416 = vadd.f32 0.0, %v415
  %v417 = vpop.f32.mrb[0].mxu0
  %v418 = vpop.f32.mrb[0].mxu0
  %v419 = vadd.f32 0.0, %v418
  %v420 = vpop.f32.mrb[0].mxu0
  %421 = vdwg.mxu0
  %v422 = vadd.f32 %v372, %v416
  %v423 = vadd.f32 %v373, %v419
  %v424 = vmul.f32 %v422, 0.5
  %v425 = vmul.f32 %v423, 0.5
  %v426 = vtanh.pop %v424
  %v427 = vtanh.pop %v425
  %v428 = vmul.f32 %v426, 0.5
  %v429 = vmul.f32 %v427, 0.5
  %v430 = vadd.f32 %v428, 0.5
  %v431 = vadd.f32 %v429, 0.5
  %v432 = vtanh.pop %v422
  %v433 = vtanh.pop %v423
  %v434 = vmul.f32 %v430, %v357
  %v435 = vmul.f32 %v431, %v358
  %438 = vrot.lane.b32.xlu0 %v432, 64
  %v439 = vpop.permute.xlu0 %438
  %440 = vrot.lane.b32.xlu0 %v433, 64
  %v441 = vpop.permute.xlu0 %440
  %v444 = vmul.f32 %v430, %v439
  %v445 = vmul.f32 %v431, %v441
  %448 = vrot.lane.b32.xlu0 %v444, 32
  %v449 = vpop.permute.xlu0 %448
  %450 = vrot.lane.b32.xlu0 %v445, 32
  %v451 = vpop.permute.xlu0 %450
  %v454 = vadd.f32 %v434, %v449
  %v455 = vadd.f32 %v435, %v451
  %v456 = vtanh.pop %v454
  %v457 = vtanh.pop %v455
  %460 = vrot.lane.b32.xlu0 %v456, 64
  %v461 = vpop.permute.xlu0 %460
  %462 = vrot.lane.b32.xlu0 %v457, 64
  %v463 = vpop.permute.xlu0 %462
  %v466 = vmul.f32 %v430, %v461
  %v467 = vmul.f32 %v431, %v463
  %s468 = scalar_lea.vmem [#allocation2], 32
  %v469 = vld [vmem:[%s468] sm:$0xff]
  %v470 = vld [vmem:[%s468 + $0x8] sm:$0xff]
  %v471 = vpack.c.bf16 %v467, %v466
  %473 = vrot.lane.b32.xlu0 %v471, 32
  %v474 = vpop.permute.xlu0 %473
  %v476 = vsel %vm112, %v474, 0
  %478 = vmatprep.subr.bf16.mxu0 0
  %479 = vmatpush1.bf16.msra.mxu0 %v269
  %480 = vmatprep.subr.bf16.mxu0 0
  %481 = vmatpush1.bf16.msra.mxu0 %v270
  %482 = vmatprep.subr.bf16.mxu0 0
  %483 = vmatpush1.bf16.msra.mxu0 0
  %484 = vmatprep.subr.bf16.mxu0 0
  %485 = vmatpush1.bf16.msra.mxu0 0
  %486 = vmatprep.subr.bf16.mxu0 0
  %487 = vmatpush1.bf16.msra.mxu0 0
  %488 = vmatprep.subr.bf16.mxu0 0
  %489 = vmatpush1.bf16.msra.mxu0 0
  %490 = vmatprep.subr.bf16.mxu0 0
  %491 = vmatpush1.bf16.msra.mxu0 0
  %492 = vmatprep.subr.bf16.mxu0 0
  %493 = vmatpush1.bf16.msra.mxu0 0
  %494 = vmatprep.subr.bf16.mxu0 0
  %495 = vmatpush1.bf16.msra.mxu0 0
  %496 = vmatprep.subr.bf16.mxu0 0
  %497 = vmatpush1.bf16.msra.mxu0 0
  %498 = vmatprep.subr.bf16.mxu0 0
  %499 = vmatpush1.bf16.msra.mxu0 0
  %500 = vmatprep.subr.bf16.mxu0 0
  %501 = vmatpush1.bf16.msra.mxu0 0
  %502 = vmatprep.subr.bf16.mxu0 0
  %503 = vmatpush1.bf16.msra.mxu0 0
  %504 = vmatprep.subr.bf16.mxu0 0
  %505 = vmatpush1.bf16.msra.mxu0 0
  %506 = vmatprep.subr.bf16.mxu0 0
  %507 = vmatpush1.bf16.msra.mxu0 0
  %508 = vmatprep.subr.bf16.mxu0 0
  %509 = vmatpush1.bf16.msra.mxu0 0
  %510 = vmatprep.mubr.bf16.mxu0 0
  %511 = vmatmul.mubr.bf16.gmra.mrb[0].mxu0 %v476
  %v512 = vpop.f32.mrb[0].mxu0
  %v513 = vadd.f32 0.0, %v512
  %v514 = vpop.f32.mrb[0].mxu0
  %v515 = vpop.f32.mrb[0].mxu0
  %v516 = vadd.f32 0.0, %v515
  %v517 = vpop.f32.mrb[0].mxu0
  %518 = vdwg.mxu0
  %v519 = vadd.f32 %v469, %v513
  %v520 = vadd.f32 %v470, %v516
  %v521 = vmul.f32 %v519, 0.5
  %v522 = vmul.f32 %v520, 0.5
  %v523 = vtanh.pop %v521
  %v524 = vtanh.pop %v522
  %v525 = vmul.f32 %v523, 0.5
  %v526 = vmul.f32 %v524, 0.5
  %v527 = vadd.f32 %v525, 0.5
  %v528 = vadd.f32 %v526, 0.5
  %v529 = vtanh.pop %v519
  %v530 = vtanh.pop %v520
  %v531 = vmul.f32 %v527, %v454
  %v532 = vmul.f32 %v528, %v455
  %535 = vrot.lane.b32.xlu0 %v529, 64
  %v536 = vpop.permute.xlu0 %535
  %537 = vrot.lane.b32.xlu0 %v530, 64
  %v538 = vpop.permute.xlu0 %537
  %v541 = vmul.f32 %v527, %v536
  %v542 = vmul.f32 %v528, %v538
  %545 = vrot.lane.b32.xlu0 %v541, 32
  %v546 = vpop.permute.xlu0 %545
  %547 = vrot.lane.b32.xlu0 %v542, 32
  %v548 = vpop.permute.xlu0 %547
  %v551 = vadd.f32 %v531, %v546
  %v552 = vadd.f32 %v532, %v548
  %v553 = vtanh.pop %v551
  %v554 = vtanh.pop %v552
  %557 = vrot.lane.b32.xlu0 %v553, 64
  %v558 = vpop.permute.xlu0 %557
  %559 = vrot.lane.b32.xlu0 %v554, 64
  %v560 = vpop.permute.xlu0 %559
  %v563 = vmul.f32 %v527, %v558
  %v564 = vmul.f32 %v528, %v560
  %s565 = scalar_lea.vmem [#allocation2], 48
  %v566 = vld [vmem:[%s565] sm:$0xff]
  %v567 = vld [vmem:[%s565 + $0x8] sm:$0xff]
  %v568 = vpack.c.bf16 %v564, %v563
  %570 = vrot.lane.b32.xlu0 %v568, 32
  %v571 = vpop.permute.xlu0 %570
  %v573 = vsel %vm112, %v571, 0
  %575 = vmatprep.subr.bf16.mxu0 0
  %576 = vmatpush1.bf16.msra.mxu0 %v269
  %577 = vmatprep.subr.bf16.mxu0 0
  %578 = vmatpush1.bf16.msra.mxu0 %v270
  %579 = vmatprep.subr.bf16.mxu0 0
  %580 = vmatpush1.bf16.msra.mxu0 0
  %581 = vmatprep.subr.bf16.mxu0 0
  %582 = vmatpush1.bf16.msra.mxu0 0
  %583 = vmatprep.subr.bf16.mxu0 0
  %584 = vmatpush1.bf16.msra.mxu0 0
  %585 = vmatprep.subr.bf16.mxu0 0
  %586 = vmatpush1.bf16.msra.mxu0 0
  %587 = vmatprep.subr.bf16.mxu0 0
  %588 = vmatpush1.bf16.msra.mxu0 0
  %589 = vmatprep.subr.bf16.mxu0 0
  %590 = vmatpush1.bf16.msra.mxu0 0
  %591 = vmatprep.subr.bf16.mxu0 0
  %592 = vmatpush1.bf16.msra.mxu0 0
  %593 = vmatprep.subr.bf16.mxu0 0
  %594 = vmatpush1.bf16.msra.mxu0 0
  %595 = vmatprep.subr.bf16.mxu0 0
  %596 = vmatpush1.bf16.msra.mxu0 0
  %597 = vmatprep.subr.bf16.mxu0 0
  %598 = vmatpush1.bf16.msra.mxu0 0
  %599 = vmatprep.subr.bf16.mxu0 0
  %600 = vmatpush1.bf16.msra.mxu0 0
  %601 = vmatprep.subr.bf16.mxu0 0
  %602 = vmatpush1.bf16.msra.mxu0 0
  %603 = vmatprep.subr.bf16.mxu0 0
  %604 = vmatpush1.bf16.msra.mxu0 0
  %605 = vmatprep.subr.bf16.mxu0 0
  %606 = vmatpush1.bf16.msra.mxu0 0
  %607 = vmatprep.mubr.bf16.mxu0 0
  %608 = vmatmul.mubr.bf16.gmra.mrb[0].mxu0 %v573
  %v609 = vpop.f32.mrb[0].mxu0
  %v610 = vadd.f32 0.0, %v609
  %v611 = vpop.f32.mrb[0].mxu0
  %v612 = vpop.f32.mrb[0].mxu0
  %v613 = vadd.f32 0.0, %v612
  %v614 = vpop.f32.mrb[0].mxu0
  %615 = vdwg.mxu0
  %v616 = vadd.f32 %v566, %v610
  %v617 = vadd.f32 %v567, %v613
  %v618 = vmul.f32 %v616, 0.5
  %v619 = vmul.f32 %v617, 0.5
  %v620 = vtanh.pop %v618
  %v621 = vtanh.pop %v619
  %v622 = vmul.f32 %v620, 0.5
  %v623 = vmul.f32 %v621, 0.5
  %v624 = vadd.f32 %v622, 0.5
  %v625 = vadd.f32 %v623, 0.5
  %v626 = vtanh.pop %v616
  %v627 = vtanh.pop %v617
  %v628 = vmul.f32 %v624, %v551
  %v629 = vmul.f32 %v625, %v552
  %632 = vrot.lane.b32.xlu0 %v626, 64
  %v633 = vpop.permute.xlu0 %632
  %634 = vrot.lane.b32.xlu0 %v627, 64
  %v635 = vpop.permute.xlu0 %634
  %v638 = vmul.f32 %v624, %v633
  %v639 = vmul.f32 %v625, %v635
  %642 = vrot.lane.b32.xlu0 %v638, 32
  %v643 = vpop.permute.xlu0 %642
  %644 = vrot.lane.b32.xlu0 %v639, 32
  %v645 = vpop.permute.xlu0 %644
  %v648 = vadd.f32 %v628, %v643
  %v649 = vadd.f32 %v629, %v645
  %v650 = vtanh.pop %v648
  %v651 = vtanh.pop %v649
  %654 = vrot.lane.b32.xlu0 %v650, 64
  %v655 = vpop.permute.xlu0 %654
  %656 = vrot.lane.b32.xlu0 %v651, 64
  %v657 = vpop.permute.xlu0 %656
  %v660 = vmul.f32 %v624, %v655
  %v661 = vmul.f32 %v625, %v657
  %s662 = scalar_lea.vmem [#allocation2], 64
  %v663 = vld [vmem:[%s662] sm:$0xff]
  %v664 = vld [vmem:[%s662 + $0x8] sm:$0xff]
  %v665 = vpack.c.bf16 %v661, %v660
  %667 = vrot.lane.b32.xlu0 %v665, 32
  %v668 = vpop.permute.xlu0 %667
  %v670 = vsel %vm112, %v668, 0
  %672 = vmatprep.subr.bf16.mxu0 0
  %673 = vmatpush1.bf16.msra.mxu0 %v269
  %674 = vmatprep.subr.bf16.mxu0 0
  %675 = vmatpush1.bf16.msra.mxu0 %v270
  %676 = vmatprep.subr.bf16.mxu0 0
  %677 = vmatpush1.bf16.msra.mxu0 0
  %678 = vmatprep.subr.bf16.mxu0 0
  %679 = vmatpush1.bf16.msra.mxu0 0
  %680 = vmatprep.subr.bf16.mxu0 0
  %681 = vmatpush1.bf16.msra.mxu0 0
  %682 = vmatprep.subr.bf16.mxu0 0
  %683 = vmatpush1.bf16.msra.mxu0 0
  %684 = vmatprep.subr.bf16.mxu0 0
  %685 = vmatpush1.bf16.msra.mxu0 0
  %686 = vmatprep.subr.bf16.mxu0 0
  %687 = vmatpush1.bf16.msra.mxu0 0
  %688 = vmatprep.subr.bf16.mxu0 0
  %689 = vmatpush1.bf16.msra.mxu0 0
  %690 = vmatprep.subr.bf16.mxu0 0
  %691 = vmatpush1.bf16.msra.mxu0 0
  %692 = vmatprep.subr.bf16.mxu0 0
  %693 = vmatpush1.bf16.msra.mxu0 0
  %694 = vmatprep.subr.bf16.mxu0 0
  %695 = vmatpush1.bf16.msra.mxu0 0
  %696 = vmatprep.subr.bf16.mxu0 0
  %697 = vmatpush1.bf16.msra.mxu0 0
  %698 = vmatprep.subr.bf16.mxu0 0
  %699 = vmatpush1.bf16.msra.mxu0 0
  %700 = vmatprep.subr.bf16.mxu0 0
  %701 = vmatpush1.bf16.msra.mxu0 0
  %702 = vmatprep.subr.bf16.mxu0 0
  %703 = vmatpush1.bf16.msra.mxu0 0
  %704 = vmatprep.mubr.bf16.mxu0 0
  %705 = vmatmul.mubr.bf16.gmra.mrb[0].mxu0 %v670
  %v706 = vpop.f32.mrb[0].mxu0
  %v707 = vadd.f32 0.0, %v706
  %v708 = vpop.f32.mrb[0].mxu0
  %v709 = vpop.f32.mrb[0].mxu0
  %v710 = vadd.f32 0.0, %v709
  %v711 = vpop.f32.mrb[0].mxu0
  %712 = vdwg.mxu0
  %v713 = vadd.f32 %v663, %v707
  %v714 = vadd.f32 %v664, %v710
  %v715 = vmul.f32 %v713, 0.5
  %v716 = vmul.f32 %v714, 0.5
  %v717 = vtanh.pop %v715
  %v718 = vtanh.pop %v716
  %v719 = vmul.f32 %v717, 0.5
  %v720 = vmul.f32 %v718, 0.5
  %v721 = vadd.f32 %v719, 0.5
  %v722 = vadd.f32 %v720, 0.5
  %v723 = vtanh.pop %v713
  %v724 = vtanh.pop %v714
  %v725 = vmul.f32 %v721, %v648
  %v726 = vmul.f32 %v722, %v649
  %729 = vrot.lane.b32.xlu0 %v723, 64
  %v730 = vpop.permute.xlu0 %729
  %731 = vrot.lane.b32.xlu0 %v724, 64
  %v732 = vpop.permute.xlu0 %731
  %v735 = vmul.f32 %v721, %v730
  %v736 = vmul.f32 %v722, %v732
  %739 = vrot.lane.b32.xlu0 %v735, 32
  %v740 = vpop.permute.xlu0 %739
  %741 = vrot.lane.b32.xlu0 %v736, 32
  %v742 = vpop.permute.xlu0 %741
  %v745 = vadd.f32 %v725, %v740
  %v746 = vadd.f32 %v726, %v742
  %v747 = vtanh.pop %v745
  %v748 = vtanh.pop %v746
  %751 = vrot.lane.b32.xlu0 %v747, 64
  %v752 = vpop.permute.xlu0 %751
  %753 = vrot.lane.b32.xlu0 %v748, 64
  %v754 = vpop.permute.xlu0 %753
  %v757 = vmul.f32 %v721, %v752
  %v758 = vmul.f32 %v722, %v754
  %s759 = scalar_lea.vmem [#allocation2], 80
  %v760 = vld [vmem:[%s759] sm:$0xff]
  %v761 = vld [vmem:[%s759 + $0x8] sm:$0xff]
  %v762 = vpack.c.bf16 %v758, %v757
  %764 = vrot.lane.b32.xlu0 %v762, 32
  %v765 = vpop.permute.xlu0 %764
  %v767 = vsel %vm112, %v765, 0
  %769 = vmatprep.subr.bf16.mxu0 0
  %770 = vmatpush1.bf16.msra.mxu0 %v269
  %771 = vmatprep.subr.bf16.mxu0 0
  %772 = vmatpush1.bf16.msra.mxu0 %v270
  %773 = vmatprep.subr.bf16.mxu0 0
  %774 = vmatpush1.bf16.msra.mxu0 0
  %775 = vmatprep.subr.bf16.mxu0 0
  %776 = vmatpush1.bf16.msra.mxu0 0
  %777 = vmatprep.subr.bf16.mxu0 0
  %778 = vmatpush1.bf16.msra.mxu0 0
  %779 = vmatprep.subr.bf16.mxu0 0
  %780 = vmatpush1.bf16.msra.mxu0 0
  %781 = vmatprep.subr.bf16.mxu0 0
  %782 = vmatpush1.bf16.msra.mxu0 0
  %783 = vmatprep.subr.bf16.mxu0 0
  %784 = vmatpush1.bf16.msra.mxu0 0
  %785 = vmatprep.subr.bf16.mxu0 0
  %786 = vmatpush1.bf16.msra.mxu0 0
  %787 = vmatprep.subr.bf16.mxu0 0
  %788 = vmatpush1.bf16.msra.mxu0 0
  %789 = vmatprep.subr.bf16.mxu0 0
  %790 = vmatpush1.bf16.msra.mxu0 0
  %791 = vmatprep.subr.bf16.mxu0 0
  %792 = vmatpush1.bf16.msra.mxu0 0
  %793 = vmatprep.subr.bf16.mxu0 0
  %794 = vmatpush1.bf16.msra.mxu0 0
  %795 = vmatprep.subr.bf16.mxu0 0
  %796 = vmatpush1.bf16.msra.mxu0 0
  %797 = vmatprep.subr.bf16.mxu0 0
  %798 = vmatpush1.bf16.msra.mxu0 0
  %799 = vmatprep.subr.bf16.mxu0 0
  %800 = vmatpush1.bf16.msra.mxu0 0
  %801 = vmatprep.mubr.bf16.mxu0 0
  %802 = vmatmul.mubr.bf16.gmra.mrb[0].mxu0 %v767
  %v803 = vpop.f32.mrb[0].mxu0
  %v804 = vadd.f32 0.0, %v803
  %v805 = vpop.f32.mrb[0].mxu0
  %v806 = vpop.f32.mrb[0].mxu0
  %v807 = vadd.f32 0.0, %v806
  %v808 = vpop.f32.mrb[0].mxu0
  %809 = vdwg.mxu0
  %v810 = vadd.f32 %v760, %v804
  %v811 = vadd.f32 %v761, %v807
  %v812 = vmul.f32 %v810, 0.5
  %v813 = vmul.f32 %v811, 0.5
  %v814 = vtanh.pop %v812
  %v815 = vtanh.pop %v813
  %v816 = vmul.f32 %v814, 0.5
  %v817 = vmul.f32 %v815, 0.5
  %v818 = vadd.f32 %v816, 0.5
  %v819 = vadd.f32 %v817, 0.5
  %v820 = vtanh.pop %v810
  %v821 = vtanh.pop %v811
  %v822 = vmul.f32 %v818, %v745
  %v823 = vmul.f32 %v819, %v746
  %826 = vrot.lane.b32.xlu0 %v820, 64
  %v827 = vpop.permute.xlu0 %826
  %828 = vrot.lane.b32.xlu0 %v821, 64
  %v829 = vpop.permute.xlu0 %828
  %v832 = vmul.f32 %v818, %v827
  %v833 = vmul.f32 %v819, %v829
  %836 = vrot.lane.b32.xlu0 %v832, 32
  %v837 = vpop.permute.xlu0 %836
  %838 = vrot.lane.b32.xlu0 %v833, 32
  %v839 = vpop.permute.xlu0 %838
  %v842 = vadd.f32 %v822, %v837
  %v843 = vadd.f32 %v823, %v839
  %v844 = vtanh.pop %v842
  %v845 = vtanh.pop %v843
  %848 = vrot.lane.b32.xlu0 %v844, 64
  %v849 = vpop.permute.xlu0 %848
  %850 = vrot.lane.b32.xlu0 %v845, 64
  %v851 = vpop.permute.xlu0 %850
  %v854 = vmul.f32 %v818, %v849
  %v855 = vmul.f32 %v819, %v851
  %s856 = scalar_lea.vmem [#allocation2], 96
  %v857 = vld [vmem:[%s856] sm:$0xff]
  %v858 = vld [vmem:[%s856 + $0x8] sm:$0xff]
  %v859 = vpack.c.bf16 %v855, %v854
  %861 = vrot.lane.b32.xlu0 %v859, 32
  %v862 = vpop.permute.xlu0 %861
  %v864 = vsel %vm112, %v862, 0
  %866 = vmatprep.subr.bf16.mxu0 0
  %867 = vmatpush1.bf16.msra.mxu0 %v269
  %868 = vmatprep.subr.bf16.mxu0 0
  %869 = vmatpush1.bf16.msra.mxu0 %v270
  %870 = vmatprep.subr.bf16.mxu0 0
  %871 = vmatpush1.bf16.msra.mxu0 0
  %872 = vmatprep.subr.bf16.mxu0 0
  %873 = vmatpush1.bf16.msra.mxu0 0
  %874 = vmatprep.subr.bf16.mxu0 0
  %875 = vmatpush1.bf16.msra.mxu0 0
  %876 = vmatprep.subr.bf16.mxu0 0
  %877 = vmatpush1.bf16.msra.mxu0 0
  %878 = vmatprep.subr.bf16.mxu0 0
  %879 = vmatpush1.bf16.msra.mxu0 0
  %880 = vmatprep.subr.bf16.mxu0 0
  %881 = vmatpush1.bf16.msra.mxu0 0
  %882 = vmatprep.subr.bf16.mxu0 0
  %883 = vmatpush1.bf16.msra.mxu0 0
  %884 = vmatprep.subr.bf16.mxu0 0
  %885 = vmatpush1.bf16.msra.mxu0 0
  %886 = vmatprep.subr.bf16.mxu0 0
  %887 = vmatpush1.bf16.msra.mxu0 0
  %888 = vmatprep.subr.bf16.mxu0 0
  %889 = vmatpush1.bf16.msra.mxu0 0
  %890 = vmatprep.subr.bf16.mxu0 0
  %891 = vmatpush1.bf16.msra.mxu0 0
  %892 = vmatprep.subr.bf16.mxu0 0
  %893 = vmatpush1.bf16.msra.mxu0 0
  %894 = vmatprep.subr.bf16.mxu0 0
  %895 = vmatpush1.bf16.msra.mxu0 0
  %896 = vmatprep.subr.bf16.mxu0 0
  %897 = vmatpush1.bf16.msra.mxu0 0
  %898 = vmatprep.mubr.bf16.mxu0 0
  %899 = vmatmul.mubr.bf16.gmra.mrb[0].mxu0 %v864
  %v900 = vpop.f32.mrb[0].mxu0
  %v901 = vadd.f32 0.0, %v900
  %v902 = vpop.f32.mrb[0].mxu0
  %v903 = vpop.f32.mrb[0].mxu0
  %v904 = vadd.f32 0.0, %v903
  %v905 = vpop.f32.mrb[0].mxu0
  %906 = vdwg.mxu0
  %v907 = vadd.f32 %v857, %v901
  %v908 = vadd.f32 %v858, %v904
  %v909 = vmul.f32 %v907, 0.5
  %v910 = vmul.f32 %v908, 0.5
  %v911 = vtanh.pop %v909
  %v912 = vtanh.pop %v910
  %v913 = vmul.f32 %v911, 0.5
  %v914 = vmul.f32 %v912, 0.5
  %v915 = vadd.f32 %v913, 0.5
  %v916 = vadd.f32 %v914, 0.5
  %v917 = vtanh.pop %v907
  %v918 = vtanh.pop %v908
  %v919 = vmul.f32 %v915, %v842
  %v920 = vmul.f32 %v916, %v843
  %923 = vrot.lane.b32.xlu0 %v917, 64
  %v924 = vpop.permute.xlu0 %923
  %925 = vrot.lane.b32.xlu0 %v918, 64
  %v926 = vpop.permute.xlu0 %925
  %v929 = vmul.f32 %v915, %v924
  %v930 = vmul.f32 %v916, %v926
  %933 = vrot.lane.b32.xlu0 %v929, 32
  %v934 = vpop.permute.xlu0 %933
  %935 = vrot.lane.b32.xlu0 %v930, 32
  %v936 = vpop.permute.xlu0 %935
  %v939 = vadd.f32 %v919, %v934
  %v940 = vadd.f32 %v920, %v936
  %v941 = vtanh.pop %v939
  %v942 = vtanh.pop %v940
  %945 = vrot.lane.b32.xlu0 %v941, 64
  %v946 = vpop.permute.xlu0 %945
  %947 = vrot.lane.b32.xlu0 %v942, 64
  %v948 = vpop.permute.xlu0 %947
  %v951 = vmul.f32 %v915, %v946
  %v952 = vmul.f32 %v916, %v948
  %s953 = scalar_lea.vmem [#allocation2], 112
  %v954 = vld [vmem:[%s953] sm:$0xff]
  %v955 = vld [vmem:[%s953 + $0x8] sm:$0xff]
  %v956 = vpack.c.bf16 %v952, %v951
  %958 = vrot.lane.b32.xlu0 %v956, 32
  %v959 = vpop.permute.xlu0 %958
  %v961 = vsel %vm112, %v959, 0
  %963 = vmatprep.subr.bf16.mxu0 0
  %964 = vmatpush1.bf16.msra.mxu0 %v269
  %965 = vmatprep.subr.bf16.mxu0 0
  %966 = vmatpush1.bf16.msra.mxu0 %v270
  %967 = vmatprep.subr.bf16.mxu0 0
  %968 = vmatpush1.bf16.msra.mxu0 0
  %969 = vmatprep.subr.bf16.mxu0 0
  %970 = vmatpush1.bf16.msra.mxu0 0
  %971 = vmatprep.subr.bf16.mxu0 0
  %972 = vmatpush1.bf16.msra.mxu0 0
  %973 = vmatprep.subr.bf16.mxu0 0
  %974 = vmatpush1.bf16.msra.mxu0 0
  %975 = vmatprep.subr.bf16.mxu0 0
  %976 = vmatpush1.bf16.msra.mxu0 0
  %977 = vmatprep.subr.bf16.mxu0 0
  %978 = vmatpush1.bf16.msra.mxu0 0
  %979 = vmatprep.subr.bf16.mxu0 0
  %980 = vmatpush1.bf16.msra.mxu0 0
  %981 = vmatprep.subr.bf16.mxu0 0
  %982 = vmatpush1.bf16.msra.mxu0 0
  %983 = vmatprep.subr.bf16.mxu0 0
  %984 = vmatpush1.bf16.msra.mxu0 0
  %985 = vmatprep.subr.bf16.mxu0 0
  %986 = vmatpush1.bf16.msra.mxu0 0
  %987 = vmatprep.subr.bf16.mxu0 0
  %988 = vmatpush1.bf16.msra.mxu0 0
  %989 = vmatprep.subr.bf16.mxu0 0
  %990 = vmatpush1.bf16.msra.mxu0 0
  %991 = vmatprep.subr.bf16.mxu0 0
  %992 = vmatpush1.bf16.msra.mxu0 0
  %993 = vmatprep.subr.bf16.mxu0 0
  %994 = vmatpush1.bf16.msra.mxu0 0
  %995 = vmatprep.mubr.bf16.mxu0 0
  %996 = vmatmul.mubr.bf16.gmra.mrb[0].mxu0 %v961
  %v997 = vpop.f32.mrb[0].mxu0
  %v998 = vadd.f32 0.0, %v997
  %v999 = vpop.f32.mrb[0].mxu0
  %v1000 = vpop.f32.mrb[0].mxu0
  %v1001 = vadd.f32 0.0, %v1000
  %v1002 = vpop.f32.mrb[0].mxu0
  %1003 = vdwg.mxu0
  %v1004 = vadd.f32 %v954, %v998
  %v1005 = vadd.f32 %v955, %v1001
  %v1006 = vmul.f32 %v1004, 0.5
  %v1007 = vmul.f32 %v1005, 0.5
  %v1008 = vtanh.pop %v1006
  %v1009 = vtanh.pop %v1007
  %v1010 = vmul.f32 %v1008, 0.5
  %v1011 = vmul.f32 %v1009, 0.5
  %v1012 = vadd.f32 %v1010, 0.5
  %v1013 = vadd.f32 %v1011, 0.5
  %v1014 = vtanh.pop %v1004
  %v1015 = vtanh.pop %v1005
  %v1016 = vmul.f32 %v1012, %v939
  %v1017 = vmul.f32 %v1013, %v940
  %1020 = vrot.lane.b32.xlu0 %v1014, 64
  %v1021 = vpop.permute.xlu0 %1020
  %1022 = vrot.lane.b32.xlu0 %v1015, 64
  %v1023 = vpop.permute.xlu0 %1022
  %v1026 = vmul.f32 %v1012, %v1021
  %v1027 = vmul.f32 %v1013, %v1023
  %1030 = vrot.lane.b32.xlu0 %v1026, 32
  %v1031 = vpop.permute.xlu0 %1030
  %1032 = vrot.lane.b32.xlu0 %v1027, 32
  %v1033 = vpop.permute.xlu0 %1032
  %v1036 = vadd.f32 %v1016, %v1031
  %v1037 = vadd.f32 %v1017, %v1033
  %v1038 = vtanh.pop %v1036
  %v1039 = vtanh.pop %v1037
  %1042 = vrot.lane.b32.xlu0 %v1038, 64
  %v1043 = vpop.permute.xlu0 %1042
  %1044 = vrot.lane.b32.xlu0 %v1039, 64
  %v1045 = vpop.permute.xlu0 %1044
  %v1048 = vmul.f32 %v1012, %v1043
  %v1049 = vmul.f32 %v1013, %v1045
  %1052 = vrot.lane.b32.xlu0 %v1048, 32
  %v1053 = vpop.permute.xlu0 %1052
  %1054 = vrot.lane.b32.xlu0 %v1049, 32
  %v1055 = vpop.permute.xlu0 %1054
  %1058 = vst.msk [vmem:[#allocation3] sm:$0xff] %vm112, %v1053
  %1059 = vst.msk [vmem:[#allocation3 + $0x8] sm:$0xff] %vm112, %v1055
  %1062 = vrot.lane.b32.xlu0 %v1036, 96
  %v1063 = vpop.permute.xlu0 %1062
  %1064 = vrot.lane.b32.xlu0 %v1037, 96
  %v1065 = vpop.permute.xlu0 %1064
  %1068 = vst.msk [vmem:[#allocation4] sm:$0xff] %vm112, %v1063
  %1069 = vst.msk [vmem:[#allocation4 + $0x8] sm:$0xff] %vm112, %v1065
  // Predicated region
  $region30: #{lstm_module_forward.3} parent=0 // pred_check
    %p1070 = pneg %p24
  $region31: #{lstm_module_forward.3} parent=0 // pred_check_branch
    %1072 = sbr.rel (%p1070) target = $region33
  $region32: #{lstm_module_forward.3} parent=0 // pred_region
    %v1073 = vpack.c.bf16 %v1049, %v1048
    %v1074 = vld [vmem:[%s4] sm:$0xf]
    %v1075 = vld [vmem:[%s4 + $0x4] sm:$0xf]
    %v1076 = vld [vmem:[%s4 + $0x8] sm:$0xf]
    %v1077 = vld [vmem:[%s4 + $0xc] sm:$0xf]
    %v1078 = vld [vmem:[%s5] sm:$0x1]
    %v1080 = vlaneseq
    %v1081 = vshrl.u32 %v1080, 7
    %v1082 = vsub.s32 0, %v1081
    %v1083 = vrot.slane %v1078, %v1082
    %1086 = vrot.lane.b32.xlu0 %v1073, 32
    %v1087 = vpop.permute.xlu0 %1086
    %v1092 = vunpack.c.l.b16 %v1074
    %v1093 = vunpack.c.l.b16 %v1075
    %v1094 = vunpack.c.l.b16 %v1076
    %v1095 = vunpack.c.l.b16 %v1077
    %v1096 = vpack.c.b16 %v1093, %v1092
    %v1097 = vpack.c.b16 %v1095, %v1094
    %v1101 = vsel %vm112, %v1087, 0
    %1103 = vmatprep.subr.bf16.mxu0 0
    %1104 = vmatpush1.bf16.msra.mxu0 %v1096
    %1105 = vmatprep.subr.bf16.mxu0 0
    %1106 = vmatpush1.bf16.msra.mxu0 %v1097
    %1107 = vmatprep.subr.bf16.mxu0 0
    %1108 = vmatpush1.bf16.msra.mxu0 0
    %1109 = vmatprep.subr.bf16.mxu0 0
    %1110 = vmatpush1.bf16.msra.mxu0 0
    %1111 = vmatprep.subr.bf16.mxu0 0
    %1112 = vmatpush1.bf16.msra.mxu0 0
    %1113 = vmatprep.subr.bf16.mxu0 0
    %1114 = vmatpush1.bf16.msra.mxu0 0
    %1115 = vmatprep.subr.bf16.mxu0 0
    %1116 = vmatpush1.bf16.msra.mxu0 0
    %1117 = vmatprep.subr.bf16.mxu0 0
    %1118 = vmatpush1.bf16.msra.mxu0 0
    %1119 = vmatprep.subr.bf16.mxu0 0
    %1120 = vmatpush1.bf16.msra.mxu0 0
    %1121 = vmatprep.subr.bf16.mxu0 0
    %1122 = vmatpush1.bf16.msra.mxu0 0
    %1123 = vmatprep.subr.bf16.mxu0 0
    %1124 = vmatpush1.bf16.msra.mxu0 0
    %1125 = vmatprep.subr.bf16.mxu0 0
    %1126 = vmatpush1.bf16.msra.mxu0 0
    %1127 = vmatprep.subr.bf16.mxu0 0
    %1128 = vmatpush1.bf16.msra.mxu0 0
    %1129 = vmatprep.subr.bf16.mxu0 0
    %1130 = vmatpush1.bf16.msra.mxu0 0
    %1131 = vmatprep.subr.bf16.mxu0 0
    %1132 = vmatpush1.bf16.msra.mxu0 0
    %1133 = vmatprep.subr.bf16.mxu0 0
    %1134 = vmatpush1.bf16.msra.mxu0 0
    %1135 = vmatprep.mubr.bf16.mxu0 0
    %1136 = vmatmul.mubr.bf16.gmra.mrb[0].mxu0 %v1101
    %v1137 = vpop.f32.mrb[0].mxu0
    %v1138 = vadd.f32 %v1083, %v1137
    %v1139 = vpop.f32.mrb[0].mxu0
    %v1140 = vpop.f32.mrb[0].mxu0
    %v1141 = vadd.f32 %v1083, %v1140
    %v1142 = vpop.f32.mrb[0].mxu0
    %1143 = vdwg.mxu0
    %vm1144 = vcmask 31744
    %1145 = vst.msk [vmem:[%s6] sm:$0xff] %vm1144, %v1138
    %1146 = vst.msk [vmem:[%s6 + $0x8] sm:$0xff] %vm1144, %v1141
  $region33: #{lstm_module_forward.3} parent=0 // pred_fallthru
    _
  // Predicated region
  $region34: #{lstm_module_forward.3} parent=0 // pred_check
    _
  $region35: #{lstm_module_forward.3} parent=0 // pred_check_branch
    %1148 = sbr.rel (0) target = $region37
  $region36: #{lstm_module_forward.3} parent=0 // pred_region
    _
  $region37: #{lstm_module_forward.3} parent=0 // pred_fallthru
    _
  // Predicated region
  $region38: #{lstm_module_forward.3} parent=0 // pred_check
    _
  $region39: #{lstm_module_forward.3} parent=0 // pred_check_branch
    %1150 = sbr.rel (0) target = $region41
  $region40: #{lstm_module_forward.3} parent=0 // pred_region
    _
  $region41: #{lstm_module_forward.3} parent=0 // pred_fallthru
    _

</llo_original>
